<compile_context>
chip_gen: v7x
topology: tpu7x:2x2x1
jax: 0.10.0
libtpu: 0.0.40
codegen_flags: <defaults>
</compile_context>

<pallas_src>
import functools

import jax
import jax.numpy as jnp
from jax.experimental import pallas as pl
from jax.experimental.pallas import tpu as pltpu

EPS = 1e-5
NEG_SLOPE = 0.2
LANES = 128      # channel padding target (lane width)
PAD_OFF = 8      # sublane-aligned interior offset inside the f32 padded scratch


def _leaky(v):
    return jnp.where(v >= 0, v, NEG_SLOPE * v)


def _round_up(n, m):
    return ((n + m - 1) // m) * m


# ------------------------------ in-kernel helpers ------------------------------

def _fill_padded(pad_ref, val, first):
    """Write `val` (Tn, L, C) into VMEM scratch so rows [PAD_OFF-1, PAD_OFF+L]
    hold [0, val, 0] (zero padding for a k=3 conv).  The two zero rows are only
    written on the first grid step (scratch persists and the interior store never
    touches them).  Rows outside [PAD_OFF-1, PAD_OFF+L] are never read."""
    tn, l, c = val.shape

    @pl.when(first)
    def _():
        z = jnp.zeros((tn, 1, c), pad_ref.dtype)
        pad_ref[:, PAD_OFF - 1:PAD_OFF, :] = z
        pad_ref[:, PAD_OFF + l:PAD_OFF + l + 1, :] = z

    pad_ref[:, PAD_OFF:PAD_OFF + l, :] = val.astype(pad_ref.dtype)


def _conv_k3(pad_ref, w_ref, b_ref, l_out, stride):
    """kernel-size-3 conv as ONE im2col matmul (K = 3*Ci on the MXU), bf16 inputs,
    f32 accumulation.  pad_ref: zero-padded f32 VMEM scratch; w_ref: (3*Ci, Co)
    tap-major bf16; b_ref: (1, Co) f32.
    NOTE(v5e): if profiling shows store-slot/VMEM pressure from the 3x slab, split
    into three accumulating K=Ci dots instead (cheap on the 4x128x128 MXU)."""
    taps = []
    for k in range(3):                          # static unroll, Ref-level slices
        start = PAD_OFF - 1 + k
        if stride == 1:
            sl = pad_ref[:, pl.ds(start, l_out), :]
        else:
            sl = pad_ref[:, pl.ds(start, l_out, stride=stride), :]
        taps.append(sl.astype(jnp.bfloat16))
    slab = jnp.concatenate(taps, axis=-1)       # (Tn, l_out, 3*Ci) bf16, lane-aligned
    tn, lo, k3 = slab.shape
    y = jnp.dot(slab.reshape(tn * lo, k3), w_ref[...],
                preferred_element_type=jnp.float32)
    return y.reshape(tn, lo, -1) + b_ref[...][None]


def _channel_stats(h):
    """Per-tile BN partials in the parallel-variance form:
    (1, 2, C) = [per-channel sum, per-channel sum((x - tile_mean)^2)]."""
    flat = h.reshape(-1, h.shape[-1])
    n = flat.shape[0]
    s = jnp.sum(flat, axis=0, keepdims=True)
    d = flat - s * (1.0 / n)
    m2 = jnp.sum(d * d, axis=0, keepdims=True)
    return jnp.concatenate([s, m2], axis=0)[None]


# ----------------------------------- kernels -----------------------------------

def _sweep_a_kernel(x_ref, w1_ref, b1_ref, s1_ref, xpad_ref, *, stride, l1):
    first = pl.program_id(0) == 0
    _fill_padded(xpad_ref, x_ref[...], first)
    h1 = _conv_k3(xpad_ref, w1_ref, b1_ref, l1, stride)
    s1_ref[...] = _channel_stats(h1)


def _sweep_b_kernel(x_ref, w1_ref, b1_ref, sc1_ref, sh1_ref,
                    w2_ref, b2_ref, s2_ref, xpad_ref, hpad_ref, *, stride, l1):
    first = pl.program_id(0) == 0
    _fill_padded(xpad_ref, x_ref[...], first)
    h1 = _conv_k3(xpad_ref, w1_ref, b1_ref, l1, stride)
    a1 = _leaky(h1 * sc1_ref[...] + sh1_ref[...])
    _fill_padded(hpad_ref, a1, first)
    h2 = _conv_k3(hpad_ref, w2_ref, b2_ref, l1, 1)
    s2_ref[...] = _channel_stats(h2)


def _sweep_c_kernel(x_ref, w1_ref, b1_ref, sc1_ref, sh1_ref,
                    w2_ref, b2_ref, sc2_ref, sh2_ref,
                    wr_ref, br_ref, o_ref, xpad_ref, hpad_ref, *, stride, l1):
    first = pl.program_id(0) == 0
    _fill_padded(xpad_ref, x_ref[...], first)
    h1 = _conv_k3(xpad_ref, w1_ref, b1_ref, l1, stride)
    a1 = _leaky(h1 * sc1_ref[...] + sh1_ref[...])
    _fill_padded(hpad_ref, a1, first)
    h2 = _conv_k3(hpad_ref, w2_ref, b2_ref, l1, 1)
    y = h2 * sc2_ref[...] + sh2_ref[...]
    # residual 1x1 conv (stride s) fused into the epilogue; strided Ref slice.
    if stride == 1:
        xs = x_ref[...]
    else:
        xs = x_ref[:, pl.ds(0, l1, stride=stride), :]
    tn, lo, ci = xs.shape
    r = jnp.dot(xs.reshape(tn * lo, ci).astype(jnp.bfloat16), wr_ref[...],
                preferred_element_type=jnp.float32).reshape(tn, lo, -1)
    # TODO(synk): emit bf16 here (and keep NLC end-to-end) if the consumer
    # tolerates it -- halves the HBM writeback and drops the epilogue transpose.
    o_ref[...] = _leaky(y + r + br_ref[...][None]).astype(o_ref.dtype)


# ------------------------------ host-side helpers ------------------------------

def _fold_bn(stats, g, bt, n_tile, n_total):
    """Merge per-tile [sum, centered sumsq] partials (parallel-variance formula)
    and fold mean/var + affine params into (1, C) scale/shift.  Runs as a tiny
    XLA reduction between pallas_calls (hoisted out of the per-step kernels)."""
    tile_sum = stats[:, 0, :]                              # (G, C)
    tile_m2 = stats[:, 1, :]                               # (G, C)
    mean = jnp.sum(tile_sum, axis=0, keepdims=True) / n_total         # (1, C)
    tile_mean = tile_sum / n_tile
    m2 = (jnp.sum(tile_m2, axis=0, keepdims=True)
          + n_tile * jnp.sum((tile_mean - mean) ** 2, axis=0, keepdims=True))
    var = m2 / n_total                                     # biased (training mode)
    scale = g * jax.lax.rsqrt(var + EPS)
    shift = bt - mean * scale
    return scale, shift


def _choose_tn(n, l, l1, cip, cop, vmem_limit):
    """Largest divisor of N that fits the per-step VMEM footprint and keeps the
    grid length >= 2 (so v7x's 2 TensorCores both get work)."""
    f32, bf16 = 4, 2
    per_sample = (
        2 * l * cip * f32                      # x block (double-buffered input)
        + 2 * l1 * cop * f32                   # output block (double-buffered)
        + (l + 2 * PAD_OFF) * cip * f32        # xpad scratch
        + (l1 + 2 * PAD_OFF) * cop * f32       # hpad scratch
        + 3 * l1 * (cip + cop) * bf16          # bf16 im2col slabs
        + 10 * l1 * cop * f32                  # f32 temporaries (h1, a1, h2, y, r, ...)
        + 2 * l1 * cip * f32                   # residual-path temporaries
    )
    fixed = 2 * (3 * cip * cop + 3 * cop * cop + cip * cop) * bf16 + (1 << 20)
    budget = int(vmem_limit * 0.75) - fixed
    cap = max(1, budget // per_sample)
    best = 1
    for tn in range(1, n + 1):
        if n % tn == 0 and tn <= cap and n // tn >= 2:
            best = tn
    return best


# ----------------------------------- wrapper -----------------------------------

def residual_block_disc(x_ncl, params, stride=1):
    """x_ncl: (N, Cin, L) float32 (PyTorch layout). Returns (N, Cout, L_out)."""
    N, Cin, L = x_ncl.shape
    Cout = params["w1"].shape[0]
    L1 = (L - 1) // stride + 1              # == (L + 2 - 3)//stride + 1
    Cip = _round_up(Cin, LANES)
    Cop = _round_up(Cout, LANES)

    # ---- layout glue: NCL -> NLC and zero-pad channels to lane width.
    # TODO(synk): keep the surrounding model channels-last (NLC, lane-padded)
    # end-to-end so this transpose/pad and the final transpose disappear; if real
    # Cin/Cout stay far below 128, fold a factor of L into the lane axis instead
    # of padding 4->128 / 8->128 (that padding dominates all other costs here).
    def pad_to(a, axis, size):
        widths = [(0, 0)] * a.ndim
        widths[axis] = (0, size - a.shape[axis])
        return jnp.pad(a, widths)

    x = pad_to(jnp.transpose(x_ncl, (0, 2, 1)).astype(jnp.float32), 2, Cip)

    def im2col_w(w, cip, cop):              # torch (Co, Ci, 3) -> (3*cip, cop) bf16
        w = jnp.transpose(w, (2, 1, 0))     # (3, Ci, Co), tap-major
        w = pad_to(pad_to(w, 1, cip), 2, cop)
        return w.reshape(3 * cip, cop).astype(jnp.bfloat16)

    w1 = im2col_w(params["w1"], Cip, Cop)
    w2 = im2col_w(params["w2"], Cop, Cop)
    wr = pad_to(pad_to(jnp.transpose(params["wr"][:, :, 0]), 0, Cip),
                1, Cop).astype(jnp.bfloat16)
    vec = lambda v: pad_to(v.reshape(1, -1).astype(jnp.float32), 1, Cop)
    b1, g1, bt1 = vec(params["b1"]), vec(params["g1"]), vec(params["bt1"])
    b2, g2, bt2 = vec(params["b2"]), vec(params["g2"]), vec(params["bt2"])
    br = vec(params["br"])

    # ---- per-chip VMEM budget (v7x: 64 MiB, v5e/v6e: 128 MiB physical).
    try:
        vmem_cap = pltpu.get_tpu_info().vmem_capacity_bytes
    except Exception:
        vmem_cap = 64 * 1024 * 1024         # conservative (v7x) fallback
    vmem_limit = min(int(vmem_cap * 3 // 4), 100 * 1024 * 1024)

    # ---- grid: tile over batch; full L per tile (no cross-tile conv halo).
    TN = _choose_tn(N, L, L1, Cip, Cop, vmem_limit)
    assert N % TN == 0
    grid = (N // TN,)
    n_tile = TN * L1
    n_total = N * L1                        # BN stats are global over (N, L1)

    cparams = pltpu.CompilerParams(
        dimension_semantics=("parallel",),          # shardable across v7x's 2 TCs
        vmem_limit_bytes=vmem_limit,
    )

    def full(a):                            # whole-array block, resident every step
        zero = (0,) * a.ndim
        return pl.BlockSpec(a.shape, lambda i, z=zero: z)

    # NOTE: if xprof shows exposed DMA on the x block after raising TN, add
    # pipeline_mode=pl.Buffered(3) here instead of shrinking the tile.
    x_spec = pl.BlockSpec((TN, L, Cip), lambda i: (i, 0, 0))
    stats_spec = pl.BlockSpec((1, 2, Cop), lambda i: (i, 0, 0))
    stats_shape = jax.ShapeDtypeStruct((grid[0], 2, Cop), jnp.float32)
    xpad_scratch = pltpu.VMEM((TN, L + 2 * PAD_OFF, Cip), jnp.float32)
    hpad_scratch = pltpu.VMEM((TN, L1 + 2 * PAD_OFF, Cop), jnp.float32)

    # Sweep A: conv1 -> per-tile BN1 partial stats.
    stats1 = pl.pallas_call(
        functools.partial(_sweep_a_kernel, stride=stride, l1=L1),
        grid=grid,
        out_shape=stats_shape,
        in_specs=[x_spec, full(w1), full(b1)],
        out_specs=stats_spec,
        scratch_shapes=[xpad_scratch],
        compiler_params=cparams,
    )(x, w1, b1)
    sc1, sh1 = _fold_bn(stats1, g1, bt1, n_tile, n_total)

    # Sweep B: conv1 -> BN1 -> LeakyReLU -> conv2 -> per-tile BN2 partial stats.
    stats2 = pl.pallas_call(
        functools.partial(_sweep_b_kernel, stride=stride, l1=L1),
        grid=grid,
        out_shape=stats_shape,
        in_specs=[x_spec, full(w1), full(b1), full(sc1), full(sh1),
                  full(w2), full(b2)],
        out_specs=stats_spec,
        scratch_shapes=[xpad_scratch, hpad_scratch],
        compiler_params=cparams,
    )(x, w1, b1, sc1, sh1, w2, b2)
    sc2, sh2 = _fold_bn(stats2, g2, bt2, n_tile, n_total)

    # Sweep C: full main branch + fused residual 1x1 conv + final LeakyReLU.
    out_nlc = pl.pallas_call(
        functools.partial(_sweep_c_kernel, stride=stride, l1=L1),
        grid=grid,
        out_shape=jax.ShapeDtypeStruct((N, L1, Cop), jnp.float32),
        in_specs=[x_spec, full(w1), full(b1), full(sc1), full(sh1),
                  full(w2), full(b2), full(sc2), full(sh2), full(wr), full(br)],
        out_specs=pl.BlockSpec((TN, L1, Cop), lambda i: (i, 0, 0)),
        scratch_shapes=[xpad_scratch, hpad_scratch],
        compiler_params=cparams,
    )(x, w1, b1, sc1, sh1, w2, b2, sc2, sh2, wr, br)

    # layout glue back to the PyTorch NCL interface.
    return jnp.transpose(out_nlc[:, :, :Cout], (0, 2, 1))


# ---------------- pure-JAX reference (mirrors PyTorch semantics) ----------------
def reference(x, p, stride=1):
    def conv1d(x, w, b, s, pad):
        y = jax.lax.conv_general_dilated(
            x, w, window_strides=(s,), padding=[(pad, pad)],
            dimension_numbers=("NCH", "OIH", "NCH"))
        return y + b[None, :, None]

    def bn(y, g, bt):
        mean = y.mean(axis=(0, 2), keepdims=True)
        var = ((y - mean) ** 2).mean(axis=(0, 2), keepdims=True)
        return (y - mean) / jnp.sqrt(var + EPS) * g[None, :, None] + bt[None, :, None]

    h = _leaky(bn(conv1d(x, p["w1"], p["b1"], stride, 1), p["g1"], p["bt1"]))
    h = bn(conv1d(h, p["w2"], p["b2"], 1, 1), p["g2"], p["bt2"])
    r = conv1d(x, p["wr"], p["br"], stride, 0)
    return _leaky(h + r)


if __name__ == "__main__":
    N, Cin, Cout, L = 4, 4, 8, 16

    key = jax.random.PRNGKey(0)
    ks = jax.random.split(key, 8)
    params = {
        "w1": 0.1 * jax.random.normal(ks[0], (Cout, Cin, 3), jnp.float32),
        "b1": 0.1 * jax.random.normal(ks[1], (Cout,), jnp.float32),
        "g1": 1.0 + 0.1 * jax.random.normal(ks[2], (Cout,), jnp.float32),
        "bt1": 0.1 * jax.random.normal(ks[3], (Cout,), jnp.float32),
        "w2": 0.1 * jax.random.normal(ks[4], (Cout, Cout, 3), jnp.float32),
        "b2": 0.1 * jax.random.normal(ks[5], (Cout,), jnp.float32),
        "g2": jnp.ones((Cout,), jnp.float32),
        "bt2": jnp.zeros((Cout,), jnp.float32),
        "wr": 0.1 * jax.random.normal(ks[6], (Cout, Cin, 1), jnp.float32),
        "br": 0.1 * jax.random.normal(ks[7], (Cout,), jnp.float32),
    }
    x = jax.random.normal(jax.random.PRNGKey(1), (N, Cin, L), jnp.float32)

    for stride in (1, 2):
        run = jax.jit(functools.partial(residual_block_disc, stride=stride))
        out = jax.block_until_ready(run(x, params))
        ref = jax.block_until_ready(reference(x, params, stride=stride))
        assert out.shape == ref.shape, (out.shape, ref.shape)
        err = float(jnp.max(jnp.abs(out - ref)))
        # tolerance loosened for bf16 MXU matmuls (f32 accumulation / BN stats kept).
        assert jnp.allclose(out, ref, atol=1e-1, rtol=1e-1), (stride, err)

    print("KERNEL_OK")
</pallas_src>

<mosaic_0001>
module attributes {stable_mosaic.version = 11 : i64} {
  func.func @_sweep_a_kernel(%arg0: i32, %arg1: memref<2x16x128xf32, #tpu.memory_space<vmem>>, %arg2: memref<384x128xbf16, #tpu.memory_space<vmem>>, %arg3: memref<1x128xf32, #tpu.memory_space<vmem>>, %arg4: memref<1x2x128xf32, #tpu.memory_space<vmem>>, %arg5: memref<2x32x128xf32, #tpu.memory_space<vmem>>) attributes {dimension_semantics = [#tpu.dimension_semantics<parallel>], iteration_bounds = array<i64: 2>, scalar_prefetch = 0 : i64, scratch_operands = 1 : i64, tpu.core_type = #tpu.core_type<tc>, window_params = [{transform_indices = @transform_0, window_bounds = array<i64: 2, 16, 128>}, {pipeline_mode = #tpu.pipeline_mode<synchronous>, transform_indices = @transform_1, window_bounds = array<i64: 384, 128>}, {pipeline_mode = #tpu.pipeline_mode<synchronous>, transform_indices = @transform_2, window_bounds = array<i64: 1, 128>}, {transform_indices = @transform_3, window_bounds = array<i64: 1, 2, 128>}]} {
    %c0_i32 = arith.constant 0 : i32
    %0 = arith.cmpi eq, %arg0, %c0_i32 : i32
    %c0 = arith.constant 0 : index
    %c0_0 = arith.constant 0 : index
    %c0_1 = arith.constant 0 : index
    %1 = vector.load %arg1[%c0, %c0_0, %c0_1] : memref<2x16x128xf32, #tpu.memory_space<vmem>>, vector<2x16x128xf32>
    %2 = arith.extui %0 : i1 to i32
    %c0_i32_2 = arith.constant 0 : i32
    %3 = arith.cmpi ne, %2, %c0_i32_2 : i32
    scf.if %3 {
      %cst_22 = arith.constant 0.000000e+00 : f32
      %33 = vector.broadcast %cst_22 : f32 to vector<2x1x128xf32>
      %c0_23 = arith.constant 0 : index
      %c7_24 = arith.constant 7 : index
      %c0_25 = arith.constant 0 : index
      %34 = vector.load %arg5[%c0_23, %c7_24, %c0_25] : memref<2x32x128xf32, #tpu.memory_space<vmem>>, vector<2x1x128xf32>
      tpu.vector_store %arg5[%c0_23, %c7_24, %c0_25], %33 {strides = array<i32>} : memref<2x32x128xf32, #tpu.memory_space<vmem>>, vector<2x1x128xf32>,
      %c0_26 = arith.constant 0 : index
      %c24 = arith.constant 24 : index
      %c0_27 = arith.constant 0 : index
      %35 = vector.load %arg5[%c0_26, %c24, %c0_27] : memref<2x32x128xf32, #tpu.memory_space<vmem>>, vector<2x1x128xf32>
      tpu.vector_store %arg5[%c0_26, %c24, %c0_27], %33 {strides = array<i32>} : memref<2x32x128xf32, #tpu.memory_space<vmem>>, vector<2x1x128xf32>,
    } else {
    }
    %c0_3 = arith.constant 0 : index
    %c8 = arith.constant 8 : index
    %c0_4 = arith.constant 0 : index
    %4 = vector.load %arg5[%c0_3, %c8, %c0_4] : memref<2x32x128xf32, #tpu.memory_space<vmem>>, vector<2x16x128xf32>
    tpu.vector_store %arg5[%c0_3, %c8, %c0_4], %1 {strides = array<i32>} : memref<2x32x128xf32, #tpu.memory_space<vmem>>, vector<2x16x128xf32>,
    %c0_5 = arith.constant 0 : index
    %c7 = arith.constant 7 : index
    %c0_6 = arith.constant 0 : index
    %5 = vector.load %arg5[%c0_5, %c7, %c0_6] : memref<2x32x128xf32, #tpu.memory_space<vmem>>, vector<2x16x128xf32>
    %6 = arith.truncf %5 : vector<2x16x128xf32> to vector<2x16x128xbf16>
    %c0_7 = arith.constant 0 : index
    %c8_8 = arith.constant 8 : index
    %c0_9 = arith.constant 0 : index
    %7 = vector.load %arg5[%c0_7, %c8_8, %c0_9] : memref<2x32x128xf32, #tpu.memory_space<vmem>>, vector<2x16x128xf32>
    %8 = arith.truncf %7 : vector<2x16x128xf32> to vector<2x16x128xbf16>
    %c0_10 = arith.constant 0 : index
    %c9 = arith.constant 9 : index
    %c0_11 = arith.constant 0 : index
    %9 = vector.load %arg5[%c0_10, %c9, %c0_11] : memref<2x32x128xf32, #tpu.memory_space<vmem>>, vector<2x16x128xf32>
    %10 = arith.truncf %9 : vector<2x16x128xf32> to vector<2x16x128xbf16>
    %11 = tpu.concatenate %6, %8, %10 in 2 : vector<2x16x128xbf16>, vector<2x16x128xbf16>, vector<2x16x128xbf16> -> vector<2x16x384xbf16>
    %12 = vector.shape_cast %11 : vector<2x16x384xbf16> to vector<32x384xbf16>
    %c0_12 = arith.constant 0 : index
    %c0_13 = arith.constant 0 : index
    %13 = vector.load %arg2[%c0_12, %c0_13] : memref<384x128xbf16, #tpu.memory_space<vmem>>, vector<384x128xbf16>
    %cst = arith.constant dense<0.000000e+00> : vector<32x128xf32>
    %14 = tpu.matmul %12, %13, %cst {dimension_numbers = #tpu.dot_dimension_numbers<[1], [0], [0], [1], [0, 0, 1, 1], [], []>} : vector<32x384xbf16>, vector<384x128xbf16>, vector<32x128xf32> -> vector<32x128xf32>
    %15 = vector.shape_cast %14 : vector<32x128xf32> to vector<2x16x128xf32>
    %c0_14 = arith.constant 0 : index
    %c0_15 = arith.constant 0 : index
    %16 = vector.load %arg3[%c0_14, %c0_15] : memref<1x128xf32, #tpu.memory_space<vmem>>, vector<1x128xf32>
    %17 = vector.shape_cast %16 : vector<1x128xf32> to vector<1x1x128xf32>
    %18 = vector.broadcast %17 : vector<1x1x128xf32> to vector<2x16x128xf32>
    %19 = arith.addf %15, %18 : vector<2x16x128xf32>
    %20 = vector.shape_cast %19 : vector<2x16x128xf32> to vector<32x128xf32>
    %cst_16 = arith.constant dense<0.000000e+00> : vector<128xf32>
    %21 = vector.multi_reduction <add>, %20, %cst_16 [0] : vector<32x128xf32> to vector<128xf32>
    %22 = vector.shape_cast %21 : vector<128xf32> to vector<1x128xf32>
    %cst_17 = arith.constant 3.125000e-02 : f32
    %23 = vector.broadcast %cst_17 : f32 to vector<1x128xf32>
    %24 = arith.mulf %22, %23 : vector<1x128xf32>
    %25 = vector.broadcast %24 : vector<1x128xf32> to vector<32x128xf32>
    %26 = arith.subf %20, %25 : vector<32x128xf32>
    %27 = arith.mulf %26, %26 : vector<32x128xf32>
    %cst_18 = arith.constant dense<0.000000e+00> : vector<128xf32>
    %28 = vector.multi_reduction <add>, %27, %cst_18 [0] : vector<32x128xf32> to vector<128xf32>
    %29 = vector.shape_cast %28 : vector<128xf32> to vector<1x128xf32>
    %30 = tpu.concatenate %22, %29 in 0 : vector<1x128xf32>, vector<1x128xf32> -> vector<2x128xf32>
    %31 = vector.shape_cast %30 : vector<2x128xf32> to vector<1x2x128xf32>
    %c0_19 = arith.constant 0 : index
    %c0_20 = arith.constant 0 : index
    %c0_21 = arith.constant 0 : index
    %32 = vector.load %arg4[%c0_19, %c0_20, %c0_21] : memref<1x2x128xf32, #tpu.memory_space<vmem>>, vector<1x2x128xf32>
    tpu.vector_store %arg4[%c0_19, %c0_20, %c0_21], %31 {strides = array<i32>} : memref<1x2x128xf32, #tpu.memory_space<vmem>>, vector<1x2x128xf32>,
    return
  }
  func.func @transform_0(%arg0: i32) -> (i32, i32, i32) {
    %c0_i32 = arith.constant 0 : i32
    %c0_i32_0 = arith.constant 0 : i32
    %c0_i32_1 = arith.constant 0 : i32
    return %arg0, %c0_i32, %c0_i32_0 : i32, i32, i32
  }
  func.func @transform_1(%arg0: i32) -> (i32, i32) {
    %c0_i32 = arith.constant 0 : i32
    %c0_i32_0 = arith.constant 0 : i32
    %c0_i32_1 = arith.constant 0 : i32
    return %c0_i32, %c0_i32_0 : i32, i32
  }
  func.func @transform_2(%arg0: i32) -> (i32, i32) {
    %c0_i32 = arith.constant 0 : i32
    %c0_i32_0 = arith.constant 0 : i32
    %c0_i32_1 = arith.constant 0 : i32
    return %c0_i32, %c0_i32_0 : i32, i32
  }
  func.func @transform_3(%arg0: i32) -> (i32, i32, i32) {
    %c0_i32 = arith.constant 0 : i32
    %c0_i32_0 = arith.constant 0 : i32
    %c0_i32_1 = arith.constant 0 : i32
    return %arg0, %c0_i32, %c0_i32_0 : i32, i32, i32
  }
}

module attributes {stable_mosaic.version = 11 : i64} {
  func.func @_sweep_b_kernel(%arg0: i32, %arg1: memref<2x16x128xf32, #tpu.memory_space<vmem>>, %arg2: memref<384x128xbf16, #tpu.memory_space<vmem>>, %arg3: memref<1x128xf32, #tpu.memory_space<vmem>>, %arg4: memref<1x128xf32, #tpu.memory_space<vmem>>, %arg5: memref<1x128xf32, #tpu.memory_space<vmem>>, %arg6: memref<384x128xbf16, #tpu.memory_space<vmem>>, %arg7: memref<1x128xf32, #tpu.memory_space<vmem>>, %arg8: memref<1x2x128xf32, #tpu.memory_space<vmem>>, %arg9: memref<2x32x128xf32, #tpu.memory_space<vmem>>, %arg10: memref<2x32x128xf32, #tpu.memory_space<vmem>>) attributes {dimension_semantics = [#tpu.dimension_semantics<parallel>], iteration_bounds = array<i64: 2>, scalar_prefetch = 0 : i64, scratch_operands = 2 : i64, tpu.core_type = #tpu.core_type<tc>, window_params = [{transform_indices = @transform_0, window_bounds = array<i64: 2, 16, 128>}, {pipeline_mode = #tpu.pipeline_mode<synchronous>, transform_indices = @transform_1, window_bounds = array<i64: 384, 128>}, {pipeline_mode = #tpu.pipeline_mode<synchronous>, transform_indices = @transform_2, window_bounds = array<i64: 1, 128>}, {pipeline_mode = #tpu.pipeline_mode<synchronous>, transform_indices = @transform_3, window_bounds = array<i64: 1, 128>}, {pipeline_mode = #tpu.pipeline_mode<synchronous>, transform_indices = @transform_4, window_bounds = array<i64: 1, 128>}, {pipeline_mode = #tpu.pipeline_mode<synchronous>, transform_indices = @transform_5, window_bounds = array<i64: 384, 128>}, {pipeline_mode = #tpu.pipeline_mode<synchronous>, transform_indices = @transform_6, window_bounds = array<i64: 1, 128>}, {transform_indices = @transform_7, window_bounds = array<i64: 1, 2, 128>}]} {
    %c0_i32 = arith.constant 0 : i32
    %0 = arith.cmpi eq, %arg0, %c0_i32 : i32
    %c0 = arith.constant 0 : index
    %c0_0 = arith.constant 0 : index
    %c0_1 = arith.constant 0 : index
    %1 = vector.load %arg1[%c0, %c0_0, %c0_1] : memref<2x16x128xf32, #tpu.memory_space<vmem>>, vector<2x16x128xf32>
    %2 = arith.extui %0 : i1 to i32
    %c0_i32_2 = arith.constant 0 : i32
    %3 = arith.cmpi ne, %2, %c0_i32_2 : i32
    scf.if %3 {
      %cst_46 = arith.constant 0.000000e+00 : f32
      %64 = vector.broadcast %cst_46 : f32 to vector<2x1x128xf32>
      %c0_47 = arith.constant 0 : index
      %c7_48 = arith.constant 7 : index
      %c0_49 = arith.constant 0 : index
      %65 = vector.load %arg9[%c0_47, %c7_48, %c0_49] : memref<2x32x128xf32, #tpu.memory_space<vmem>>, vector<2x1x128xf32>
      tpu.vector_store %arg9[%c0_47, %c7_48, %c0_49], %64 {strides = array<i32>} : memref<2x32x128xf32, #tpu.memory_space<vmem>>, vector<2x1x128xf32>,
      %c0_50 = arith.constant 0 : index
      %c24 = arith.constant 24 : index
      %c0_51 = arith.constant 0 : index
      %66 = vector.load %arg9[%c0_50, %c24, %c0_51] : memref<2x32x128xf32, #tpu.memory_space<vmem>>, vector<2x1x128xf32>
      tpu.vector_store %arg9[%c0_50, %c24, %c0_51], %64 {strides = array<i32>} : memref<2x32x128xf32, #tpu.memory_space<vmem>>, vector<2x1x128xf32>,
    } else {
    }
    %c0_3 = arith.constant 0 : index
    %c8 = arith.constant 8 : index
    %c0_4 = arith.constant 0 : index
    %4 = vector.load %arg9[%c0_3, %c8, %c0_4] : memref<2x32x128xf32, #tpu.memory_space<vmem>>, vector<2x16x128xf32>
    tpu.vector_store %arg9[%c0_3, %c8, %c0_4], %1 {strides = array<i32>} : memref<2x32x128xf32, #tpu.memory_space<vmem>>, vector<2x16x128xf32>,
    %c0_5 = arith.constant 0 : index
    %c7 = arith.constant 7 : index
    %c0_6 = arith.constant 0 : index
    %5 = vector.load %arg9[%c0_5, %c7, %c0_6] : memref<2x32x128xf32, #tpu.memory_space<vmem>>, vector<2x16x128xf32>
    %6 = arith.truncf %5 : vector<2x16x128xf32> to vector<2x16x128xbf16>
    %c0_7 = arith.constant 0 : index
    %c8_8 = arith.constant 8 : index
    %c0_9 = arith.constant 0 : index
    %7 = vector.load %arg9[%c0_7, %c8_8, %c0_9] : memref<2x32x128xf32, #tpu.memory_space<vmem>>, vector<2x16x128xf32>
    %8 = arith.truncf %7 : vector<2x16x128xf32> to vector<2x16x128xbf16>
    %c0_10 = arith.constant 0 : index
    %c9 = arith.constant 9 : index
    %c0_11 = arith.constant 0 : index
    %9 = vector.load %arg9[%c0_10, %c9, %c0_11] : memref<2x32x128xf32, #tpu.memory_space<vmem>>, vector<2x16x128xf32>
    %10 = arith.truncf %9 : vector<2x16x128xf32> to vector<2x16x128xbf16>
    %11 = tpu.concatenate %6, %8, %10 in 2 : vector<2x16x128xbf16>, vector<2x16x128xbf16>, vector<2x16x128xbf16> -> vector<2x16x384xbf16>
    %12 = vector.shape_cast %11 : vector<2x16x384xbf16> to vector<32x384xbf16>
    %c0_12 = arith.constant 0 : index
    %c0_13 = arith.constant 0 : index
    %13 = vector.load %arg2[%c0_12, %c0_13] : memref<384x128xbf16, #tpu.memory_space<vmem>>, vector<384x128xbf16>
    %cst = arith.constant dense<0.000000e+00> : vector<32x128xf32>
    %14 = tpu.matmul %12, %13, %cst {dimension_numbers = #tpu.dot_dimension_numbers<[1], [0], [0], [1], [0, 0, 1, 1], [], []>} : vector<32x384xbf16>, vector<384x128xbf16>, vector<32x128xf32> -> vector<32x128xf32>
    %15 = vector.shape_cast %14 : vector<32x128xf32> to vector<2x16x128xf32>
    %c0_14 = arith.constant 0 : index
    %c0_15 = arith.constant 0 : index
    %16 = vector.load %arg3[%c0_14, %c0_15] : memref<1x128xf32, #tpu.memory_space<vmem>>, vector<1x128xf32>
    %17 = vector.shape_cast %16 : vector<1x128xf32> to vector<1x1x128xf32>
    %18 = vector.broadcast %17 : vector<1x1x128xf32> to vector<2x16x128xf32>
    %19 = arith.addf %15, %18 : vector<2x16x128xf32>
    %c0_16 = arith.constant 0 : index
    %c0_17 = arith.constant 0 : index
    %20 = vector.load %arg4[%c0_16, %c0_17] : memref<1x128xf32, #tpu.memory_space<vmem>>, vector<1x128xf32>
    %21 = vector.shape_cast %20 : vector<1x128xf32> to vector<1x1x128xf32>
    %22 = vector.broadcast %21 : vector<1x1x128xf32> to vector<2x16x128xf32>
    %23 = arith.mulf %19, %22 : vector<2x16x128xf32>
    %c0_18 = arith.constant 0 : index
    %c0_19 = arith.constant 0 : index
    %24 = vector.load %arg5[%c0_18, %c0_19] : memref<1x128xf32, #tpu.memory_space<vmem>>, vector<1x128xf32>
    %25 = vector.shape_cast %24 : vector<1x128xf32> to vector<1x1x128xf32>
    %26 = vector.broadcast %25 : vector<1x1x128xf32> to vector<2x16x128xf32>
    %27 = arith.addf %23, %26 : vector<2x16x128xf32>
    %cst_20 = arith.constant 0.000000e+00 : f32
    %28 = vector.broadcast %cst_20 : f32 to vector<2x16x128xf32>
    %29 = arith.cmpf oge, %27, %28 : vector<2x16x128xf32>
    %cst_21 = arith.constant 2.000000e-01 : f32
    %30 = vector.broadcast %cst_21 : f32 to vector<2x16x128xf32>
    %31 = arith.mulf %30, %27 : vector<2x16x128xf32>
    %32 = arith.select %29, %27, %31 : vector<2x16x128xi1>, vector<2x16x128xf32>
    %33 = arith.extui %0 : i1 to i32
    %c0_i32_22 = arith.constant 0 : i32
    %34 = arith.cmpi ne, %33, %c0_i32_22 : i32
    scf.if %34 {
      %cst_46 = arith.constant 0.000000e+00 : f32
      %64 = vector.broadcast %cst_46 : f32 to vector<2x1x128xf32>
      %c0_47 = arith.constant 0 : index
      %c7_48 = arith.constant 7 : index
      %c0_49 = arith.constant 0 : index
      %65 = vector.load %arg10[%c0_47, %c7_48, %c0_49] : memref<2x32x128xf32, #tpu.memory_space<vmem>>, vector<2x1x128xf32>
      tpu.vector_store %arg10[%c0_47, %c7_48, %c0_49], %64 {strides = array<i32>} : memref<2x32x128xf32, #tpu.memory_space<vmem>>, vector<2x1x128xf32>,
      %c0_50 = arith.constant 0 : index
      %c24 = arith.constant 24 : index
      %c0_51 = arith.constant 0 : index
      %66 = vector.load %arg10[%c0_50, %c24, %c0_51] : memref<2x32x128xf32, #tpu.memory_space<vmem>>, vector<2x1x128xf32>
      tpu.vector_store %arg10[%c0_50, %c24, %c0_51], %64 {strides = array<i32>} : memref<2x32x128xf32, #tpu.memory_space<vmem>>, vector<2x1x128xf32>,
    } else {
    }
    %c0_23 = arith.constant 0 : index
    %c8_24 = arith.constant 8 : index
    %c0_25 = arith.constant 0 : index
    %35 = vector.load %arg10[%c0_23, %c8_24, %c0_25] : memref<2x32x128xf32, #tpu.memory_space<vmem>>, vector<2x16x128xf32>
    tpu.vector_store %arg10[%c0_23, %c8_24, %c0_25], %32 {strides = array<i32>} : memref<2x32x128xf32, #tpu.memory_space<vmem>>, vector<2x16x128xf32>,
    %c0_26 = arith.constant 0 : index
    %c7_27 = arith.constant 7 : index
    %c0_28 = arith.constant 0 : index
    %36 = vector.load %arg10[%c0_26, %c7_27, %c0_28] : memref<2x32x128xf32, #tpu.memory_space<vmem>>, vector<2x16x128xf32>
    %37 = arith.truncf %36 : vector<2x16x128xf32> to vector<2x16x128xbf16>
    %c0_29 = arith.constant 0 : index
    %c8_30 = arith.constant 8 : index
    %c0_31 = arith.constant 0 : index
    %38 = vector.load %arg10[%c0_29, %c8_30, %c0_31] : memref<2x32x128xf32, #tpu.memory_space<vmem>>, vector<2x16x128xf32>
    %39 = arith.truncf %38 : vector<2x16x128xf32> to vector<2x16x128xbf16>
    %c0_32 = arith.constant 0 : index
    %c9_33 = arith.constant 9 : index
    %c0_34 = arith.constant 0 : index
    %40 = vector.load %arg10[%c0_32, %c9_33, %c0_34] : memref<2x32x128xf32, #tpu.memory_space<vmem>>, vector<2x16x128xf32>
    %41 = arith.truncf %40 : vector<2x16x128xf32> to vector<2x16x128xbf16>
    %42 = tpu.concatenate %37, %39, %41 in 2 : vector<2x16x128xbf16>, vector<2x16x128xbf16>, vector<2x16x128xbf16> -> vector<2x16x384xbf16>
    %43 = vector.shape_cast %42 : vector<2x16x384xbf16> to vector<32x384xbf16>
    %c0_35 = arith.constant 0 : index
    %c0_36 = arith.constant 0 : index
    %44 = vector.load %arg6[%c0_35, %c0_36] : memref<384x128xbf16, #tpu.memory_space<vmem>>, vector<384x128xbf16>
    %cst_37 = arith.constant dense<0.000000e+00> : vector<32x128xf32>
    %45 = tpu.matmul %43, %44, %cst_37 {dimension_numbers = #tpu.dot_dimension_numbers<[1], [0], [0], [1], [0, 0, 1, 1], [], []>} : vector<32x384xbf16>, vector<384x128xbf16>, vector<32x128xf32> -> vector<32x128xf32>
    %46 = vector.shape_cast %45 : vector<32x128xf32> to vector<2x16x128xf32>
    %c0_38 = arith.constant 0 : index
    %c0_39 = arith.constant 0 : index
    %47 = vector.load %arg7[%c0_38, %c0_39] : memref<1x128xf32, #tpu.memory_space<vmem>>, vector<1x128xf32>
    %48 = vector.shape_cast %47 : vector<1x128xf32> to vector<1x1x128xf32>
    %49 = vector.broadcast %48 : vector<1x1x128xf32> to vector<2x16x128xf32>
    %50 = arith.addf %46, %49 : vector<2x16x128xf32>
    %51 = vector.shape_cast %50 : vector<2x16x128xf32> to vector<32x128xf32>
    %cst_40 = arith.constant dense<0.000000e+00> : vector<128xf32>
    %52 = vector.multi_reduction <add>, %51, %cst_40 [0] : vector<32x128xf32> to vector<128xf32>
    %53 = vector.shape_cast %52 : vector<128xf32> to vector<1x128xf32>
    %cst_41 = arith.constant 3.125000e-02 : f32
    %54 = vector.broadcast %cst_41 : f32 to vector<1x128xf32>
    %55 = arith.mulf %53, %54 : vector<1x128xf32>
    %56 = vector.broadcast %55 : vector<1x128xf32> to vector<32x128xf32>
    %57 = arith.subf %51, %56 : vector<32x128xf32>
    %58 = arith.mulf %57, %57 : vector<32x128xf32>
    %cst_42 = arith.constant dense<0.000000e+00> : vector<128xf32>
    %59 = vector.multi_reduction <add>, %58, %cst_42 [0] : vector<32x128xf32> to vector<128xf32>
    %60 = vector.shape_cast %59 : vector<128xf32> to vector<1x128xf32>
    %61 = tpu.concatenate %53, %60 in 0 : vector<1x128xf32>, vector<1x128xf32> -> vector<2x128xf32>
    %62 = vector.shape_cast %61 : vector<2x128xf32> to vector<1x2x128xf32>
    %c0_43 = arith.constant 0 : index
    %c0_44 = arith.constant 0 : index
    %c0_45 = arith.constant 0 : index
    %63 = vector.load %arg8[%c0_43, %c0_44, %c0_45] : memref<1x2x128xf32, #tpu.memory_space<vmem>>, vector<1x2x128xf32>
    tpu.vector_store %arg8[%c0_43, %c0_44, %c0_45], %62 {strides = array<i32>} : memref<1x2x128xf32, #tpu.memory_space<vmem>>, vector<1x2x128xf32>,
    return
  }
  func.func @transform_0(%arg0: i32) -> (i32, i32, i32) {
    %c0_i32 = arith.constant 0 : i32
    %c0_i32_0 = arith.constant 0 : i32
    %c0_i32_1 = arith.constant 0 : i32
    return %arg0, %c0_i32, %c0_i32_0 : i32, i32, i32
  }
  func.func @transform_1(%arg0: i32) -> (i32, i32) {
    %c0_i32 = arith.constant 0 : i32
    %c0_i32_0 = arith.constant 0 : i32
    %c0_i32_1 = arith.constant 0 : i32
    return %c0_i32, %c0_i32_0 : i32, i32
  }
  func.func @transform_2(%arg0: i32) -> (i32, i32) {
    %c0_i32 = arith.constant 0 : i32
    %c0_i32_0 = arith.constant 0 : i32
    %c0_i32_1 = arith.constant 0 : i32
    return %c0_i32, %c0_i32_0 : i32, i32
  }
  func.func @transform_3(%arg0: i32) -> (i32, i32) {
    %c0_i32 = arith.constant 0 : i32
    %c0_i32_0 = arith.constant 0 : i32
    %c0_i32_1 = arith.constant 0 : i32
    return %c0_i32, %c0_i32_0 : i32, i32
  }
  func.func @transform_4(%arg0: i32) -> (i32, i32) {
    %c0_i32 = arith.constant 0 : i32
    %c0_i32_0 = arith.constant 0 : i32
    %c0_i32_1 = arith.constant 0 : i32
    return %c0_i32, %c0_i32_0 : i32, i32
  }
  func.func @transform_5(%arg0: i32) -> (i32, i32) {
    %c0_i32 = arith.constant 0 : i32
    %c0_i32_0 = arith.constant 0 : i32
    %c0_i32_1 = arith.constant 0 : i32
    return %c0_i32, %c0_i32_0 : i32, i32
  }
  func.func @transform_6(%arg0: i32) -> (i32, i32) {
    %c0_i32 = arith.constant 0 : i32
    %c0_i32_0 = arith.constant 0 : i32
    %c0_i32_1 = arith.constant 0 : i32
    return %c0_i32, %c0_i32_0 : i32, i32
  }
  func.func @transform_7(%arg0: i32) -> (i32, i32, i32) {
    %c0_i32 = arith.constant 0 : i32
    %c0_i32_0 = arith.constant 0 : i32
    %c0_i32_1 = arith.constant 0 : i32
    return %arg0, %c0_i32, %c0_i32_0 : i32, i32, i32
  }
}

module attributes {stable_mosaic.version = 11 : i64} {
  func.func @_sweep_c_kernel(%arg0: i32, %arg1: memref<2x16x128xf32, #tpu.memory_space<vmem>>, %arg2: memref<384x128xbf16, #tpu.memory_space<vmem>>, %arg3: memref<1x128xf32, #tpu.memory_space<vmem>>, %arg4: memref<1x128xf32, #tpu.memory_space<vmem>>, %arg5: memref<1x128xf32, #tpu.memory_space<vmem>>, %arg6: memref<384x128xbf16, #tpu.memory_space<vmem>>, %arg7: memref<1x128xf32, #tpu.memory_space<vmem>>, %arg8: memref<1x128xf32, #tpu.memory_space<vmem>>, %arg9: memref<1x128xf32, #tpu.memory_space<vmem>>, %arg10: memref<128x128xbf16, #tpu.memory_space<vmem>>, %arg11: memref<1x128xf32, #tpu.memory_space<vmem>>, %arg12: memref<2x16x128xf32, #tpu.memory_space<vmem>>, %arg13: memref<2x32x128xf32, #tpu.memory_space<vmem>>, %arg14: memref<2x32x128xf32, #tpu.memory_space<vmem>>) attributes {dimension_semantics = [#tpu.dimension_semantics<parallel>], iteration_bounds = array<i64: 2>, scalar_prefetch = 0 : i64, scratch_operands = 2 : i64, tpu.core_type = #tpu.core_type<tc>, window_params = [{transform_indices = @transform_0, window_bounds = array<i64: 2, 16, 128>}, {pipeline_mode = #tpu.pipeline_mode<synchronous>, transform_indices = @transform_1, window_bounds = array<i64: 384, 128>}, {pipeline_mode = #tpu.pipeline_mode<synchronous>, transform_indices = @transform_2, window_bounds = array<i64: 1, 128>}, {pipeline_mode = #tpu.pipeline_mode<synchronous>, transform_indices = @transform_3, window_bounds = array<i64: 1, 128>}, {pipeline_mode = #tpu.pipeline_mode<synchronous>, transform_indices = @transform_4, window_bounds = array<i64: 1, 128>}, {pipeline_mode = #tpu.pipeline_mode<synchronous>, transform_indices = @transform_5, window_bounds = array<i64: 384, 128>}, {pipeline_mode = #tpu.pipeline_mode<synchronous>, transform_indices = @transform_6, window_bounds = array<i64: 1, 128>}, {pipeline_mode = #tpu.pipeline_mode<synchronous>, transform_indices = @transform_7, window_bounds = array<i64: 1, 128>}, {pipeline_mode = #tpu.pipeline_mode<synchronous>, transform_indices = @transform_8, window_bounds = array<i64: 1, 128>}, {pipeline_mode = #tpu.pipeline_mode<synchronous>, transform_indices = @transform_9, window_bounds = array<i64: 128, 128>}, {pipeline_mode = #tpu.pipeline_mode<synchronous>, transform_indices = @transform_10, window_bounds = array<i64: 1, 128>}, {transform_indices = @transform_11, window_bounds = array<i64: 2, 16, 128>}]} {
    %c0_i32 = arith.constant 0 : i32
    %0 = arith.cmpi eq, %arg0, %c0_i32 : i32
    %c0 = arith.constant 0 : index
    %c0_0 = arith.constant 0 : index
    %c0_1 = arith.constant 0 : index
    %1 = vector.load %arg1[%c0, %c0_0, %c0_1] : memref<2x16x128xf32, #tpu.memory_space<vmem>>, vector<2x16x128xf32>
    %2 = arith.extui %0 : i1 to i32
    %c0_i32_2 = arith.constant 0 : i32
    %3 = arith.cmpi ne, %2, %c0_i32_2 : i32
    scf.if %3 {
      %cst_57 = arith.constant 0.000000e+00 : f32
      %76 = vector.broadcast %cst_57 : f32 to vector<2x1x128xf32>
      %c0_58 = arith.constant 0 : index
      %c7_59 = arith.constant 7 : index
      %c0_60 = arith.constant 0 : index
      %77 = vector.load %arg13[%c0_58, %c7_59, %c0_60] : memref<2x32x128xf32, #tpu.memory_space<vmem>>, vector<2x1x128xf32>
      tpu.vector_store %arg13[%c0_58, %c7_59, %c0_60], %76 {strides = array<i32>} : memref<2x32x128xf32, #tpu.memory_space<vmem>>, vector<2x1x128xf32>,
      %c0_61 = arith.constant 0 : index
      %c24 = arith.constant 24 : index
      %c0_62 = arith.constant 0 : index
      %78 = vector.load %arg13[%c0_61, %c24, %c0_62] : memref<2x32x128xf32, #tpu.memory_space<vmem>>, vector<2x1x128xf32>
      tpu.vector_store %arg13[%c0_61, %c24, %c0_62], %76 {strides = array<i32>} : memref<2x32x128xf32, #tpu.memory_space<vmem>>, vector<2x1x128xf32>,
    } else {
    }
    %c0_3 = arith.constant 0 : index
    %c8 = arith.constant 8 : index
    %c0_4 = arith.constant 0 : index
    %4 = vector.load %arg13[%c0_3, %c8, %c0_4] : memref<2x32x128xf32, #tpu.memory_space<vmem>>, vector<2x16x128xf32>
    tpu.vector_store %arg13[%c0_3, %c8, %c0_4], %1 {strides = array<i32>} : memref<2x32x128xf32, #tpu.memory_space<vmem>>, vector<2x16x128xf32>,
    %c0_5 = arith.constant 0 : index
    %c7 = arith.constant 7 : index
    %c0_6 = arith.constant 0 : index
    %5 = vector.load %arg13[%c0_5, %c7, %c0_6] : memref<2x32x128xf32, #tpu.memory_space<vmem>>, vector<2x16x128xf32>
    %6 = arith.truncf %5 : vector<2x16x128xf32> to vector<2x16x128xbf16>
    %c0_7 = arith.constant 0 : index
    %c8_8 = arith.constant 8 : index
    %c0_9 = arith.constant 0 : index
    %7 = vector.load %arg13[%c0_7, %c8_8, %c0_9] : memref<2x32x128xf32, #tpu.memory_space<vmem>>, vector<2x16x128xf32>
    %8 = arith.truncf %7 : vector<2x16x128xf32> to vector<2x16x128xbf16>
    %c0_10 = arith.constant 0 : index
    %c9 = arith.constant 9 : index
    %c0_11 = arith.constant 0 : index
    %9 = vector.load %arg13[%c0_10, %c9, %c0_11] : memref<2x32x128xf32, #tpu.memory_space<vmem>>, vector<2x16x128xf32>
    %10 = arith.truncf %9 : vector<2x16x128xf32> to vector<2x16x128xbf16>
    %11 = tpu.concatenate %6, %8, %10 in 2 : vector<2x16x128xbf16>, vector<2x16x128xbf16>, vector<2x16x128xbf16> -> vector<2x16x384xbf16>
    %12 = vector.shape_cast %11 : vector<2x16x384xbf16> to vector<32x384xbf16>
    %c0_12 = arith.constant 0 : index
    %c0_13 = arith.constant 0 : index
    %13 = vector.load %arg2[%c0_12, %c0_13] : memref<384x128xbf16, #tpu.memory_space<vmem>>, vector<384x128xbf16>
    %cst = arith.constant dense<0.000000e+00> : vector<32x128xf32>
    %14 = tpu.matmul %12, %13, %cst {dimension_numbers = #tpu.dot_dimension_numbers<[1], [0], [0], [1], [0, 0, 1, 1], [], []>} : vector<32x384xbf16>, vector<384x128xbf16>, vector<32x128xf32> -> vector<32x128xf32>
    %15 = vector.shape_cast %14 : vector<32x128xf32> to vector<2x16x128xf32>
    %c0_14 = arith.constant 0 : index
    %c0_15 = arith.constant 0 : index
    %16 = vector.load %arg3[%c0_14, %c0_15] : memref<1x128xf32, #tpu.memory_space<vmem>>, vector<1x128xf32>
    %17 = vector.shape_cast %16 : vector<1x128xf32> to vector<1x1x128xf32>
    %18 = vector.broadcast %17 : vector<1x1x128xf32> to vector<2x16x128xf32>
    %19 = arith.addf %15, %18 : vector<2x16x128xf32>
    %c0_16 = arith.constant 0 : index
    %c0_17 = arith.constant 0 : index
    %20 = vector.load %arg4[%c0_16, %c0_17] : memref<1x128xf32, #tpu.memory_space<vmem>>, vector<1x128xf32>
    %21 = vector.shape_cast %20 : vector<1x128xf32> to vector<1x1x128xf32>
    %22 = vector.broadcast %21 : vector<1x1x128xf32> to vector<2x16x128xf32>
    %23 = arith.mulf %19, %22 : vector<2x16x128xf32>
    %c0_18 = arith.constant 0 : index
    %c0_19 = arith.constant 0 : index
    %24 = vector.load %arg5[%c0_18, %c0_19] : memref<1x128xf32, #tpu.memory_space<vmem>>, vector<1x128xf32>
    %25 = vector.shape_cast %24 : vector<1x128xf32> to vector<1x1x128xf32>
    %26 = vector.broadcast %25 : vector<1x1x128xf32> to vector<2x16x128xf32>
    %27 = arith.addf %23, %26 : vector<2x16x128xf32>
    %cst_20 = arith.constant 0.000000e+00 : f32
    %28 = vector.broadcast %cst_20 : f32 to vector<2x16x128xf32>
    %29 = arith.cmpf oge, %27, %28 : vector<2x16x128xf32>
    %cst_21 = arith.constant 2.000000e-01 : f32
    %30 = vector.broadcast %cst_21 : f32 to vector<2x16x128xf32>
    %31 = arith.mulf %30, %27 : vector<2x16x128xf32>
    %32 = arith.select %29, %27, %31 : vector<2x16x128xi1>, vector<2x16x128xf32>
    %33 = arith.extui %0 : i1 to i32
    %c0_i32_22 = arith.constant 0 : i32
    %34 = arith.cmpi ne, %33, %c0_i32_22 : i32
    scf.if %34 {
      %cst_57 = arith.constant 0.000000e+00 : f32
      %76 = vector.broadcast %cst_57 : f32 to vector<2x1x128xf32>
      %c0_58 = arith.constant 0 : index
      %c7_59 = arith.constant 7 : index
      %c0_60 = arith.constant 0 : index
      %77 = vector.load %arg14[%c0_58, %c7_59, %c0_60] : memref<2x32x128xf32, #tpu.memory_space<vmem>>, vector<2x1x128xf32>
      tpu.vector_store %arg14[%c0_58, %c7_59, %c0_60], %76 {strides = array<i32>} : memref<2x32x128xf32, #tpu.memory_space<vmem>>, vector<2x1x128xf32>,
      %c0_61 = arith.constant 0 : index
      %c24 = arith.constant 24 : index
      %c0_62 = arith.constant 0 : index
      %78 = vector.load %arg14[%c0_61, %c24, %c0_62] : memref<2x32x128xf32, #tpu.memory_space<vmem>>, vector<2x1x128xf32>
      tpu.vector_store %arg14[%c0_61, %c24, %c0_62], %76 {strides = array<i32>} : memref<2x32x128xf32, #tpu.memory_space<vmem>>, vector<2x1x128xf32>,
    } else {
    }
    %c0_23 = arith.constant 0 : index
    %c8_24 = arith.constant 8 : index
    %c0_25 = arith.constant 0 : index
    %35 = vector.load %arg14[%c0_23, %c8_24, %c0_25] : memref<2x32x128xf32, #tpu.memory_space<vmem>>, vector<2x16x128xf32>
    tpu.vector_store %arg14[%c0_23, %c8_24, %c0_25], %32 {strides = array<i32>} : memref<2x32x128xf32, #tpu.memory_space<vmem>>, vector<2x16x128xf32>,
    %c0_26 = arith.constant 0 : index
    %c7_27 = arith.constant 7 : index
    %c0_28 = arith.constant 0 : index
    %36 = vector.load %arg14[%c0_26, %c7_27, %c0_28] : memref<2x32x128xf32, #tpu.memory_space<vmem>>, vector<2x16x128xf32>
    %37 = arith.truncf %36 : vector<2x16x128xf32> to vector<2x16x128xbf16>
    %c0_29 = arith.constant 0 : index
    %c8_30 = arith.constant 8 : index
    %c0_31 = arith.constant 0 : index
    %38 = vector.load %arg14[%c0_29, %c8_30, %c0_31] : memref<2x32x128xf32, #tpu.memory_space<vmem>>, vector<2x16x128xf32>
    %39 = arith.truncf %38 : vector<2x16x128xf32> to vector<2x16x128xbf16>
    %c0_32 = arith.constant 0 : index
    %c9_33 = arith.constant 9 : index
    %c0_34 = arith.constant 0 : index
    %40 = vector.load %arg14[%c0_32, %c9_33, %c0_34] : memref<2x32x128xf32, #tpu.memory_space<vmem>>, vector<2x16x128xf32>
    %41 = arith.truncf %40 : vector<2x16x128xf32> to vector<2x16x128xbf16>
    %42 = tpu.concatenate %37, %39, %41 in 2 : vector<2x16x128xbf16>, vector<2x16x128xbf16>, vector<2x16x128xbf16> -> vector<2x16x384xbf16>
    %43 = vector.shape_cast %42 : vector<2x16x384xbf16> to vector<32x384xbf16>
    %c0_35 = arith.constant 0 : index
    %c0_36 = arith.constant 0 : index
    %44 = vector.load %arg6[%c0_35, %c0_36] : memref<384x128xbf16, #tpu.memory_space<vmem>>, vector<384x128xbf16>
    %cst_37 = arith.constant dense<0.000000e+00> : vector<32x128xf32>
    %45 = tpu.matmul %43, %44, %cst_37 {dimension_numbers = #tpu.dot_dimension_numbers<[1], [0], [0], [1], [0, 0, 1, 1], [], []>} : vector<32x384xbf16>, vector<384x128xbf16>, vector<32x128xf32> -> vector<32x128xf32>
    %46 = vector.shape_cast %45 : vector<32x128xf32> to vector<2x16x128xf32>
    %c0_38 = arith.constant 0 : index
    %c0_39 = arith.constant 0 : index
    %47 = vector.load %arg7[%c0_38, %c0_39] : memref<1x128xf32, #tpu.memory_space<vmem>>, vector<1x128xf32>
    %48 = vector.shape_cast %47 : vector<1x128xf32> to vector<1x1x128xf32>
    %49 = vector.broadcast %48 : vector<1x1x128xf32> to vector<2x16x128xf32>
    %50 = arith.addf %46, %49 : vector<2x16x128xf32>
    %c0_40 = arith.constant 0 : index
    %c0_41 = arith.constant 0 : index
    %51 = vector.load %arg8[%c0_40, %c0_41] : memref<1x128xf32, #tpu.memory_space<vmem>>, vector<1x128xf32>
    %52 = vector.shape_cast %51 : vector<1x128xf32> to vector<1x1x128xf32>
    %53 = vector.broadcast %52 : vector<1x1x128xf32> to vector<2x16x128xf32>
    %54 = arith.mulf %50, %53 : vector<2x16x128xf32>
    %c0_42 = arith.constant 0 : index
    %c0_43 = arith.constant 0 : index
    %55 = vector.load %arg9[%c0_42, %c0_43] : memref<1x128xf32, #tpu.memory_space<vmem>>, vector<1x128xf32>
    %56 = vector.shape_cast %55 : vector<1x128xf32> to vector<1x1x128xf32>
    %57 = vector.broadcast %56 : vector<1x1x128xf32> to vector<2x16x128xf32>
    %58 = arith.addf %54, %57 : vector<2x16x128xf32>
    %c0_44 = arith.constant 0 : index
    %c0_45 = arith.constant 0 : index
    %c0_46 = arith.constant 0 : index
    %59 = vector.load %arg1[%c0_44, %c0_45, %c0_46] : memref<2x16x128xf32, #tpu.memory_space<vmem>>, vector<2x16x128xf32>
    %60 = vector.shape_cast %59 : vector<2x16x128xf32> to vector<32x128xf32>
    %61 = arith.truncf %60 : vector<32x128xf32> to vector<32x128xbf16>
    %c0_47 = arith.constant 0 : index
    %c0_48 = arith.constant 0 : index
    %62 = vector.load %arg10[%c0_47, %c0_48] : memref<128x128xbf16, #tpu.memory_space<vmem>>, vector<128x128xbf16>
    %cst_49 = arith.constant dense<0.000000e+00> : vector<32x128xf32>
    %63 = tpu.matmul %61, %62, %cst_49 {dimension_numbers = #tpu.dot_dimension_numbers<[1], [0], [0], [1], [0, 0, 1, 1], [], []>} : vector<32x128xbf16>, vector<128x128xbf16>, vector<32x128xf32> -> vector<32x128xf32>
    %64 = vector.shape_cast %63 : vector<32x128xf32> to vector<2x16x128xf32>
    %65 = arith.addf %58, %64 : vector<2x16x128xf32>
    %c0_50 = arith.constant 0 : index
    %c0_51 = arith.constant 0 : index
    %66 = vector.load %arg11[%c0_50, %c0_51] : memref<1x128xf32, #tpu.memory_space<vmem>>, vector<1x128xf32>
    %67 = vector.shape_cast %66 : vector<1x128xf32> to vector<1x1x128xf32>
    %68 = vector.broadcast %67 : vector<1x1x128xf32> to vector<2x16x128xf32>
    %69 = arith.addf %65, %68 : vector<2x16x128xf32>
    %cst_52 = arith.constant 0.000000e+00 : f32
    %70 = vector.broadcast %cst_52 : f32 to vector<2x16x128xf32>
    %71 = arith.cmpf oge, %69, %70 : vector<2x16x128xf32>
    %cst_53 = arith.constant 2.000000e-01 : f32
    %72 = vector.broadcast %cst_53 : f32 to vector<2x16x128xf32>
    %73 = arith.mulf %72, %69 : vector<2x16x128xf32>
    %74 = arith.select %71, %69, %73 : vector<2x16x128xi1>, vector<2x16x128xf32>
    %c0_54 = arith.constant 0 : index
    %c0_55 = arith.constant 0 : index
    %c0_56 = arith.constant 0 : index
    %75 = vector.load %arg12[%c0_54, %c0_55, %c0_56] : memref<2x16x128xf32, #tpu.memory_space<vmem>>, vector<2x16x128xf32>
    tpu.vector_store %arg12[%c0_54, %c0_55, %c0_56], %74 {strides = array<i32>} : memref<2x16x128xf32, #tpu.memory_space<vmem>>, vector<2x16x128xf32>,
    return
  }
  func.func @transform_0(%arg0: i32) -> (i32, i32, i32) {
    %c0_i32 = arith.constant 0 : i32
    %c0_i32_0 = arith.constant 0 : i32
    %c0_i32_1 = arith.constant 0 : i32
    return %arg0, %c0_i32, %c0_i32_0 : i32, i32, i32
  }
  func.func @transform_1(%arg0: i32) -> (i32, i32) {
    %c0_i32 = arith.constant 0 : i32
    %c0_i32_0 = arith.constant 0 : i32
    %c0_i32_1 = arith.constant 0 : i32
    return %c0_i32, %c0_i32_0 : i32, i32
  }
  func.func @transform_2(%arg0: i32) -> (i32, i32) {
    %c0_i32 = arith.constant 0 : i32
    %c0_i32_0 = arith.constant 0 : i32
    %c0_i32_1 = arith.constant 0 : i32
    return %c0_i32, %c0_i32_0 : i32, i32
  }
  func.func @transform_3(%arg0: i32) -> (i32, i32) {
    %c0_i32 = arith.constant 0 : i32
    %c0_i32_0 = arith.constant 0 : i32
    %c0_i32_1 = arith.constant 0 : i32
    return %c0_i32, %c0_i32_0 : i32, i32
  }
  func.func @transform_4(%arg0: i32) -> (i32, i32) {
    %c0_i32 = arith.constant 0 : i32
    %c0_i32_0 = arith.constant 0 : i32
    %c0_i32_1 = arith.constant 0 : i32
    return %c0_i32, %c0_i32_0 : i32, i32
  }
  func.func @transform_5(%arg0: i32) -> (i32, i32) {
    %c0_i32 = arith.constant 0 : i32
    %c0_i32_0 = arith.constant 0 : i32
    %c0_i32_1 = arith.constant 0 : i32
    return %c0_i32, %c0_i32_0 : i32, i32
  }
  func.func @transform_6(%arg0: i32) -> (i32, i32) {
    %c0_i32 = arith.constant 0 : i32
    %c0_i32_0 = arith.constant 0 : i32
    %c0_i32_1 = arith.constant 0 : i32
    return %c0_i32, %c0_i32_0 : i32, i32
  }
  func.func @transform_7(%arg0: i32) -> (i32, i32) {
    %c0_i32 = arith.constant 0 : i32
    %c0_i32_0 = arith.constant 0 : i32
    %c0_i32_1 = arith.constant 0 : i32
    return %c0_i32, %c0_i32_0 : i32, i32
  }
  func.func @transform_8(%arg0: i32) -> (i32, i32) {
    %c0_i32 = arith.constant 0 : i32
    %c0_i32_0 = arith.constant 0 : i32
    %c0_i32_1 = arith.constant 0 : i32
    return %c0_i32, %c0_i32_0 : i32, i32
  }
  func.func @transform_9(%arg0: i32) -> (i32, i32) {
    %c0_i32 = arith.constant 0 : i32
    %c0_i32_0 = arith.constant 0 : i32
    %c0_i32_1 = arith.constant 0 : i32
    return %c0_i32, %c0_i32_0 : i32, i32
  }
  func.func @transform_10(%arg0: i32) -> (i32, i32) {
    %c0_i32 = arith.constant 0 : i32
    %c0_i32_0 = arith.constant 0 : i32
    %c0_i32_1 = arith.constant 0 : i32
    return %c0_i32, %c0_i32_0 : i32, i32
  }
  func.func @transform_11(%arg0: i32) -> (i32, i32, i32) {
    %c0_i32 = arith.constant 0 : i32
    %c0_i32_0 = arith.constant 0 : i32
    %c0_i32_1 = arith.constant 0 : i32
    return %arg0, %c0_i32, %c0_i32_0 : i32, i32, i32
  }
}

</mosaic_0001>

<llo_original>
// kernel: residual_block_disc.3
$region0: #{residual_block_disc.3}
  #allocation0 [shape = 'u32[]', space=smem, size = 0x4, offset = 0x4, fixed_abs, tag = 'smem constant byte address 0x4 - core index']
  #allocation1 [shape = 'u32[144,128]{1,0:T(1,128)}', space=vmem, size = 0x12000, scoped, tag = 'internal scratch']
  #allocation2 [shape = 'f32[2,32,128]{2,1,0:T(8,128)}', space=vmem, size = 0x8000, scoped, tag = 'scratch operand']
  %s0 = inlined_call_operand.vmem [shape: f32[4,16,128], index: 0, kind: input, shape index: {}]
  %s1 = inlined_call_operand.vmem [shape: bf16[384,128], index: 1, kind: input, shape index: {}]
  %s2 = inlined_call_operand.vmem [shape: f32[1,128], index: 2, kind: input, shape index: {}]
  %s3 = inlined_call_operand.vmem [shape: f32[2,2,128], index: 3, kind: output, shape index: {}]
  %s4 = sld [smem:[#allocation0]]
  $region49: #{residual_block_disc.3} parent=0
    _
  %s6 = ssub.s32 1, %s4
  %s7 = scalar_select 0, %s6, %s4
  loop: start=0, step=1, limit=4
  $region2: #{residual_block_disc.3} parent=0 // loop_pre_header
    _
  $region3: #{residual_block_disc.3} parent=0 // loop_header
    %s9 = sphi 0, %s13
    %p10 = scmp.ge.s32.totalorder %s9, 4
    %s19 = sphi 0, %s21
    %s22 = sphi 0, %s19
    %s23 = sphi 0, %s22
    %s39 = sphi 0, %s23
    %s43 = sphi 0, %s43
    %s45 = sphi 0, %s43
    %s46 = sphi 0, %s45
    %s60 = sphi 0, %s46
    %s64 = sphi 0, %s64
    %s66 = sphi 0, %s64
    %s67 = sphi 0, %s66
    %s81 = sphi 0, %s67
    %s87 = sphi 0, %s89
    %s90 = sphi 0, %s87
    %s91 = sphi 0, %s90
    %s107 = sphi 0, %s91
  $region4: #{residual_block_disc.3} parent=0 // loop_header_branch
    %12 = sbr.rel (%p10) target = $region8
  $region5: #{residual_block_disc.3} parent=0 // loop_body
    %s14 = ssub.s32 %s9, 1
    %s15 = ssub.s32 %s9, 2
    %s16 = sadd.s32 %s9, 1
    %s17 = ssub.s32 %s9, %s16
    %p18 = scmp.eq.s32.totalorder %s17, 0
    %s20 = sadd.s32 %s19, 1
    %s21 = scalar_select %p18, %s19, %s20
    %p24 = pneg %p18
    %p25 = scmp.eq.s32.totalorder %s9, 1
    %p26 = por %p24, %p25
    %p27 = scmp.ne.s32.totalorder %s19, %s22
    %p28 = scmp.eq.s32.totalorder %s9, 0
    %p29 = por %p27, %p28
    %p30 = scmp.ne.s32.totalorder %s19, %s22
    %p31 = scmp.eq.s32.totalorder %s14, 1
    %p32 = por %p30, %p31
    %p33 = scmp.ne.s32.totalorder %s22, %s23
    %p34 = scmp.eq.s32.totalorder %s14, 0
    %p35 = por %p33, %p34
    %p36 = scmp.ne.s32.totalorder %s22, %s23
    %p37 = scmp.eq.s32.totalorder %s15, 1
    %p38 = por %p36, %p37
    %p40 = scmp.ne.s32.totalorder %s23, %s39
    %p41 = scmp.eq.s32.totalorder %s15, 0
    %p42 = por %p40, %p41
    %s44 = sadd.s32 %s43, 1
    %p47 = scmp.eq.s32.totalorder %s9, 1
    %p48 = scmp.ne.s32.totalorder %s43, %s45
    %p49 = scmp.eq.s32.totalorder %s9, 0
    %p50 = por %p48, %p49
    %p51 = scmp.ne.s32.totalorder %s43, %s45
    %p52 = scmp.eq.s32.totalorder %s14, 1
    %p53 = por %p51, %p52
    %p54 = scmp.ne.s32.totalorder %s45, %s46
    %p55 = scmp.eq.s32.totalorder %s14, 0
    %p56 = por %p54, %p55
    %p57 = scmp.ne.s32.totalorder %s45, %s46
    %p58 = scmp.eq.s32.totalorder %s15, 1
    %p59 = por %p57, %p58
    %p61 = scmp.ne.s32.totalorder %s46, %s60
    %p62 = scmp.eq.s32.totalorder %s15, 0
    %p63 = por %p61, %p62
    %s65 = sadd.s32 %s64, 1
    %p68 = scmp.eq.s32.totalorder %s9, 1
    %p69 = scmp.ne.s32.totalorder %s64, %s66
    %p70 = scmp.eq.s32.totalorder %s9, 0
    %p71 = por %p69, %p70
    %p72 = scmp.ne.s32.totalorder %s64, %s66
    %p73 = scmp.eq.s32.totalorder %s14, 1
    %p74 = por %p72, %p73
    %p75 = scmp.ne.s32.totalorder %s66, %s67
    %p76 = scmp.eq.s32.totalorder %s14, 0
    %p77 = por %p75, %p76
    %p78 = scmp.ne.s32.totalorder %s66, %s67
    %p79 = scmp.eq.s32.totalorder %s15, 1
    %p80 = por %p78, %p79
    %p82 = scmp.ne.s32.totalorder %s67, %s81
    %p83 = scmp.eq.s32.totalorder %s15, 0
    %p84 = por %p82, %p83
    %s85 = ssub.s32 %s9, %s16
    %p86 = scmp.eq.s32.totalorder %s85, 0
    %s88 = sadd.s32 %s87, 1
    %s89 = scalar_select %p86, %s87, %s88
    %p92 = pneg %p86
    %p93 = scmp.eq.s32.totalorder %s9, 1
    %p94 = por %p92, %p93
    %p95 = scmp.ne.s32.totalorder %s87, %s90
    %p96 = scmp.eq.s32.totalorder %s9, 0
    %p97 = por %p95, %p96
    %p98 = scmp.ne.s32.totalorder %s87, %s90
    %p99 = scmp.eq.s32.totalorder %s14, 1
    %p100 = por %p98, %p99
    %p101 = scmp.ne.s32.totalorder %s90, %s91
    %p102 = scmp.eq.s32.totalorder %s14, 0
    %p103 = por %p101, %p102
    %p104 = scmp.ne.s32.totalorder %s90, %s91
    %p105 = scmp.eq.s32.totalorder %s15, 1
    %p106 = por %p104, %p105
    %p108 = scmp.ne.s32.totalorder %s91, %s107
    %p109 = scmp.eq.s32.totalorder %s15, 0
    %p110 = por %p108, %p109
    %p111 = scmp.le.s32.totalorder 1, %s9
    %p112 = scmp.lt.s32.totalorder %s9, 3
    %p113 = pnand %p111, %p112
    %p114 = pneg %p113
    // Predicated region
    $region9: #{residual_block_disc.3} parent=5 // pred_check
      _
    $region10: #{residual_block_disc.3} parent=5 // pred_check_branch
      %116 = sbr.rel (%p113) target = $region12
    $region11: #{residual_block_disc.3} parent=5 // pred_region
      %s117 = ssub.s32 %s9, 1
      // Predicated region
      $region13: #{residual_block_disc.3} parent=11 // pred_check
        %p118 = pneg %p56
      $region14: #{residual_block_disc.3} parent=11 // pred_check_branch
        %120 = sbr.rel (%p118) target = $region16
      $region15: #{residual_block_disc.3} parent=11 // pred_region
        _
      $region16: #{residual_block_disc.3} parent=11 // pred_fallthru
        _
      // Predicated region
      $region17: #{residual_block_disc.3} parent=11 // pred_check
        %p121 = pneg %p77
      $region18: #{residual_block_disc.3} parent=11 // pred_check_branch
        %123 = sbr.rel (%p121) target = $region20
      $region19: #{residual_block_disc.3} parent=11 // pred_region
        _
      $region20: #{residual_block_disc.3} parent=11 // pred_fallthru
        _
    $region12: #{residual_block_disc.3} parent=5 // pred_fallthru
      _
    %p124 = scmp.lt.s32.totalorder %s9, 2
    // Predicated region
    $region21: #{residual_block_disc.3} parent=5 // pred_check
      %p125 = pneg %p124
    $region22: #{residual_block_disc.3} parent=5 // pred_check_branch
      %127 = sbr.rel (%p125) target = $region24
    $region23: #{residual_block_disc.3} parent=5 // pred_region
      // Predicated region
      $region25: #{residual_block_disc.3} parent=23 // pred_check
        %p128 = pneg %p29
      $region26: #{residual_block_disc.3} parent=23 // pred_check_branch
        %130 = sbr.rel (%p128) target = $region28
      $region27: #{residual_block_disc.3} parent=23 // pred_region
        %s131 = smul.u32 2, %s9
        %p132 = scmp.lt.s32.totalorder %s131, 3
        %s133 = scalar_select %p132, %s131, 3
        %s134 = smul.addr %s133, 2
        %s135 = smul.addr %s134, 8
        %s136 = scalar_lea.vmem %s0, %s135
        %s137 = smul.u32 2, %s9
      $region28: #{residual_block_disc.3} parent=23 // pred_fallthru
        _
    $region24: #{residual_block_disc.3} parent=5 // pred_fallthru
      _
    %p138 = scmp.le.s32.totalorder 1, %s9
    %p139 = scmp.lt.s32.totalorder %s9, 3
    %p140 = pnand %p138, %p139
    %p141 = pneg %p140
    // Predicated region
    $region29: #{residual_block_disc.3} parent=5 // pred_check
      _
    $region30: #{residual_block_disc.3} parent=5 // pred_check_branch
      %143 = sbr.rel (%p140) target = $region32
    $region31: #{residual_block_disc.3} parent=5 // pred_region
      %s144 = ssub.s32 %s9, 1
      %s145 = smul.u32 2, %s14
      %p146 = scmp.lt.s32.totalorder %s145, 3
      %s147 = scalar_select %p146, %s145, 3
      %s148 = smul.addr %s147, 2
      %s149 = smul.addr %s148, 8
      %s150 = scalar_lea.vmem %s0, %s149
      %p151 = pneg %p35
      %p152 = pneg %p32
      %p153 = pneg %p56
      %p154 = pneg %p53
      %p155 = pneg %p77
      %p156 = pneg %p74
      %p157 = pneg %p103
      %p158 = pneg %p100
      %p159 = scmp.lt.s32.totalorder %s14, 1
      %s160 = scalar_select %p159, %s14, 1
      %s161 = smul.addr %s160, 2
      %s162 = scalar_lea.vmem %s3, %s161
      %s163 = smul.u32 2, %s14
      %p164 = scmp.lt.s32.totalorder %s163, 3
      %s165 = scalar_select %p164, %s163, 3
      %s166 = smul.addr %s165, 2
      %s167 = smul.addr %s166, 8
      %s168 = scalar_lea.vmem %s0, %s167
      %s169 = smul.u32 2, %s14
      %p170 = scmp.lt.s32.totalorder %s14, 1
      %s171 = scalar_select %p170, %s14, 1
      %s172 = smul.addr %s171, 2
      %s173 = scalar_lea.vmem %s3, %s172
      %p175 = scmp.eq.s32.totalorder %s14, 0
      %v176 = vld [vmem:[%s168] sm:$0xff]
      %v177 = vld [vmem:[%s168 + $0x8] sm:$0xff]
      %v178 = vld [vmem:[%s168 + $0x10] sm:$0xff]
      %v179 = vld [vmem:[%s168 + $0x18] sm:$0xff]
      // Predicated region
      $region33: #{residual_block_disc.3} parent=31 // pred_check
        %p180 = pneg %p175
      $region34: #{residual_block_disc.3} parent=31 // pred_check_branch
        %182 = sbr.rel (%p180) target = $region36
      $region35: #{residual_block_disc.3} parent=31 // pred_region
        %183 = vst [vmem:[#allocation2 + $0x7] sm:$0x1] 0.0
        %184 = vst [vmem:[#allocation2 + $0x27] sm:$0x1] 0.0
        %185 = vst [vmem:[#allocation2 + $0x18] sm:$0x1] 0.0
        %186 = vst [vmem:[#allocation2 + $0x38] sm:$0x1] 0.0
      $region36: #{residual_block_disc.3} parent=31 // pred_fallthru
        _
      %187 = vst [vmem:[#allocation2 + $0x8] sm:$0xff] %v176
      %188 = vst [vmem:[#allocation2 + $0x10] sm:$0xff] %v177
      %189 = vst [vmem:[#allocation2 + $0x28] sm:$0xff] %v178
      %190 = vst [vmem:[#allocation2 + $0x30] sm:$0xff] %v179
      %v191 = vld [vmem:[#allocation2 + $0x7] sm:$0xff]
      %v192 = vld [vmem:[#allocation2 + $0xf] sm:$0xff]
      %v193 = vld [vmem:[#allocation2 + $0x27] sm:$0xff]
      %v194 = vld [vmem:[#allocation2 + $0x2f] sm:$0xff]
      %v195 = vpack.c.bf16 %v192, %v191
      %v196 = vpack.c.bf16 %v194, %v193
      %v197 = vld [vmem:[#allocation2 + $0x8] sm:$0xff]
      %v198 = vld [vmem:[#allocation2 + $0x10] sm:$0xff]
      %v199 = vld [vmem:[#allocation2 + $0x28] sm:$0xff]
      %v200 = vld [vmem:[#allocation2 + $0x30] sm:$0xff]
      %v201 = vpack.c.bf16 %v198, %v197
      %v202 = vpack.c.bf16 %v200, %v199
      %v203 = vld [vmem:[#allocation2 + $0x9] sm:$0xff]
      %v204 = vld [vmem:[#allocation2 + $0x11] sm:$0xff]
      %v205 = vld [vmem:[#allocation2 + $0x29] sm:$0xff]
      %v206 = vld [vmem:[#allocation2 + $0x31] sm:$0xff]
      %v207 = vpack.c.bf16 %v204, %v203
      %v208 = vpack.c.bf16 %v206, %v205
      %v209 = vld [vmem:[%s1] sm:$0xf]
      %v210 = vld [vmem:[%s1 + $0x4] sm:$0xf]
      %v211 = vld [vmem:[%s1 + $0x8] sm:$0xf]
      %v212 = vld [vmem:[%s1 + $0xc] sm:$0xf]
      %v213 = vld [vmem:[%s1 + $0x10] sm:$0xf]
      %v214 = vld [vmem:[%s1 + $0x14] sm:$0xf]
      %v215 = vld [vmem:[%s1 + $0x18] sm:$0xf]
      %v216 = vld [vmem:[%s1 + $0x1c] sm:$0xf]
      %v217 = vld [vmem:[%s1 + $0x20] sm:$0xf]
      %v218 = vld [vmem:[%s1 + $0x24] sm:$0xf]
      %v219 = vld [vmem:[%s1 + $0x28] sm:$0xf]
      %v220 = vld [vmem:[%s1 + $0x2c] sm:$0xf]
      %v221 = vld [vmem:[%s1 + $0x30] sm:$0xf]
      %v222 = vld [vmem:[%s1 + $0x34] sm:$0xf]
      %v223 = vld [vmem:[%s1 + $0x38] sm:$0xf]
      %v224 = vld [vmem:[%s1 + $0x3c] sm:$0xf]
      %v225 = vld [vmem:[%s1 + $0x40] sm:$0xf]
      %v226 = vld [vmem:[%s1 + $0x44] sm:$0xf]
      %v227 = vld [vmem:[%s1 + $0x48] sm:$0xf]
      %v228 = vld [vmem:[%s1 + $0x4c] sm:$0xf]
      %v229 = vld [vmem:[%s1 + $0x50] sm:$0xf]
      %v230 = vld [vmem:[%s1 + $0x54] sm:$0xf]
      %v231 = vld [vmem:[%s1 + $0x58] sm:$0xf]
      %v232 = vld [vmem:[%s1 + $0x5c] sm:$0xf]
      %v233 = vld [vmem:[%s1 + $0x60] sm:$0xf]
      %v234 = vld [vmem:[%s1 + $0x64] sm:$0xf]
      %v235 = vld [vmem:[%s1 + $0x68] sm:$0xf]
      %v236 = vld [vmem:[%s1 + $0x6c] sm:$0xf]
      %v237 = vld [vmem:[%s1 + $0x70] sm:$0xf]
      %v238 = vld [vmem:[%s1 + $0x74] sm:$0xf]
      %v239 = vld [vmem:[%s1 + $0x78] sm:$0xf]
      %v240 = vld [vmem:[%s1 + $0x7c] sm:$0xf]
      %v241 = vld [vmem:[%s1 + $0x80] sm:$0xf]
      %v242 = vld [vmem:[%s1 + $0x84] sm:$0xf]
      %v243 = vld [vmem:[%s1 + $0x88] sm:$0xf]
      %v244 = vld [vmem:[%s1 + $0x8c] sm:$0xf]
      %v245 = vld [vmem:[%s1 + $0x90] sm:$0xf]
      %v246 = vld [vmem:[%s1 + $0x94] sm:$0xf]
      %v247 = vld [vmem:[%s1 + $0x98] sm:$0xf]
      %v248 = vld [vmem:[%s1 + $0x9c] sm:$0xf]
      %v249 = vld [vmem:[%s1 + $0xa0] sm:$0xf]
      %v250 = vld [vmem:[%s1 + $0xa4] sm:$0xf]
      %v251 = vld [vmem:[%s1 + $0xa8] sm:$0xf]
      %v252 = vld [vmem:[%s1 + $0xac] sm:$0xf]
      %v253 = vld [vmem:[%s1 + $0xb0] sm:$0xf]
      %v254 = vld [vmem:[%s1 + $0xb4] sm:$0xf]
      %v255 = vld [vmem:[%s1 + $0xb8] sm:$0xf]
      %v256 = vld [vmem:[%s1 + $0xbc] sm:$0xf]
      %v305 = vunpack.c.l.b16 %v209
      %v306 = vunpack.c.l.b16 %v210
      %v307 = vunpack.c.l.b16 %v211
      %v308 = vunpack.c.l.b16 %v212
      %v309 = vunpack.c.l.b16 %v213
      %v310 = vunpack.c.l.b16 %v214
      %v311 = vunpack.c.l.b16 %v215
      %v312 = vunpack.c.l.b16 %v216
      %v313 = vunpack.c.l.b16 %v217
      %v314 = vunpack.c.l.b16 %v218
      %v315 = vunpack.c.l.b16 %v219
      %v316 = vunpack.c.l.b16 %v220
      %v317 = vunpack.c.l.b16 %v221
      %v318 = vunpack.c.l.b16 %v222
      %v319 = vunpack.c.l.b16 %v223
      %v320 = vunpack.c.l.b16 %v224
      %v321 = vunpack.c.l.b16 %v225
      %v322 = vunpack.c.l.b16 %v226
      %v323 = vunpack.c.l.b16 %v227
      %v324 = vunpack.c.l.b16 %v228
      %v325 = vunpack.c.l.b16 %v229
      %v326 = vunpack.c.l.b16 %v230
      %v327 = vunpack.c.l.b16 %v231
      %v328 = vunpack.c.l.b16 %v232
      %v329 = vunpack.c.l.b16 %v233
      %v330 = vunpack.c.l.b16 %v234
      %v331 = vunpack.c.l.b16 %v235
      %v332 = vunpack.c.l.b16 %v236
      %v333 = vunpack.c.l.b16 %v237
      %v334 = vunpack.c.l.b16 %v238
      %v335 = vunpack.c.l.b16 %v239
      %v336 = vunpack.c.l.b16 %v240
      %v337 = vunpack.c.l.b16 %v241
      %v338 = vunpack.c.l.b16 %v242
      %v339 = vunpack.c.l.b16 %v243
      %v340 = vunpack.c.l.b16 %v244
      %v341 = vunpack.c.l.b16 %v245
      %v342 = vunpack.c.l.b16 %v246
      %v343 = vunpack.c.l.b16 %v247
      %v344 = vunpack.c.l.b16 %v248
      %v345 = vunpack.c.l.b16 %v249
      %v346 = vunpack.c.l.b16 %v250
      %v347 = vunpack.c.l.b16 %v251
      %v348 = vunpack.c.l.b16 %v252
      %v349 = vunpack.c.l.b16 %v253
      %v350 = vunpack.c.l.b16 %v254
      %v351 = vunpack.c.l.b16 %v255
      %v352 = vunpack.c.l.b16 %v256
      %v353 = vpack.c.b16 %v306, %v305
      %v354 = vpack.c.b16 %v308, %v307
      %v355 = vpack.c.b16 %v310, %v309
      %v356 = vpack.c.b16 %v312, %v311
      %v357 = vpack.c.b16 %v314, %v313
      %v358 = vpack.c.b16 %v316, %v315
      %v359 = vpack.c.b16 %v318, %v317
      %v360 = vpack.c.b16 %v320, %v319
      %v361 = vpack.c.b16 %v322, %v321
      %v362 = vpack.c.b16 %v324, %v323
      %v363 = vpack.c.b16 %v326, %v325
      %v364 = vpack.c.b16 %v328, %v327
      %v365 = vpack.c.b16 %v330, %v329
      %v366 = vpack.c.b16 %v332, %v331
      %v367 = vpack.c.b16 %v334, %v333
      %v368 = vpack.c.b16 %v336, %v335
      %v369 = vpack.c.b16 %v338, %v337
      %v370 = vpack.c.b16 %v340, %v339
      %v371 = vpack.c.b16 %v342, %v341
      %v372 = vpack.c.b16 %v344, %v343
      %v373 = vpack.c.b16 %v346, %v345
      %v374 = vpack.c.b16 %v348, %v347
      %v375 = vpack.c.b16 %v350, %v349
      %v376 = vpack.c.b16 %v352, %v351
      %401 = vmatprep.subr.bf16.mxu0 0
      %402 = vmatpush1.bf16.msra.mxu0 %v353
      %403 = vmatprep.subr.bf16.mxu0 0
      %404 = vmatpush1.bf16.msra.mxu0 %v354
      %405 = vmatprep.subr.bf16.mxu0 0
      %406 = vmatpush1.bf16.msra.mxu0 %v355
      %407 = vmatprep.subr.bf16.mxu0 0
      %408 = vmatpush1.bf16.msra.mxu0 %v356
      %409 = vmatprep.subr.bf16.mxu0 0
      %410 = vmatpush1.bf16.msra.mxu0 %v357
      %411 = vmatprep.subr.bf16.mxu0 0
      %412 = vmatpush1.bf16.msra.mxu0 %v358
      %413 = vmatprep.subr.bf16.mxu0 0
      %414 = vmatpush1.bf16.msra.mxu0 %v359
      %415 = vmatprep.subr.bf16.mxu0 0
      %416 = vmatpush1.bf16.msra.mxu0 %v360
      %417 = vmatprep.subr.bf16.mxu0 0
      %418 = vmatpush1.bf16.msra.mxu0 %v361
      %419 = vmatprep.subr.bf16.mxu0 0
      %420 = vmatpush1.bf16.msra.mxu0 %v362
      %421 = vmatprep.subr.bf16.mxu0 0
      %422 = vmatpush1.bf16.msra.mxu0 %v363
      %423 = vmatprep.subr.bf16.mxu0 0
      %424 = vmatpush1.bf16.msra.mxu0 %v364
      %425 = vmatprep.subr.bf16.mxu0 0
      %426 = vmatpush1.bf16.msra.mxu0 %v365
      %427 = vmatprep.subr.bf16.mxu0 0
      %428 = vmatpush1.bf16.msra.mxu0 %v366
      %429 = vmatprep.subr.bf16.mxu0 0
      %430 = vmatpush1.bf16.msra.mxu0 %v367
      %431 = vmatprep.subr.bf16.mxu0 0
      %432 = vmatpush1.bf16.msra.mxu0 %v368
      %433 = vmatprep.mubr.bf16.mxu0 %v201
      %434 = vmatmul.mubr.bf16.gmra.mrb[0].mxu0 %v195
      %v435 = vpop.f32.mrb[0].mxu0
      %v436 = vadd.f32 0.0, %v435
      %v437 = vpop.f32.mrb[0].mxu0
      %v438 = vpop.f32.mrb[0].mxu0
      %v439 = vadd.f32 0.0, %v438
      %v440 = vpop.f32.mrb[0].mxu0
      %441 = vmatprep.mubr.bf16.mxu0 %v202
      %442 = vmatmul.mubr.bf16.gmra.mrb[0].mxu0 %v196
      %v443 = vpop.f32.mrb[0].mxu0
      %v444 = vadd.f32 0.0, %v443
      %v445 = vpop.f32.mrb[0].mxu0
      %v446 = vpop.f32.mrb[0].mxu0
      %v447 = vadd.f32 0.0, %v446
      %v448 = vpop.f32.mrb[0].mxu0
      %449 = vdwg.mxu0
      %450 = vmatprep.subr.bf16.mxu0 0
      %451 = vmatpush1.bf16.msra.mxu0 %v369
      %452 = vmatprep.subr.bf16.mxu0 0
      %453 = vmatpush1.bf16.msra.mxu0 %v370
      %454 = vmatprep.subr.bf16.mxu0 0
      %455 = vmatpush1.bf16.msra.mxu0 %v371
      %456 = vmatprep.subr.bf16.mxu0 0
      %457 = vmatpush1.bf16.msra.mxu0 %v372
      %458 = vmatprep.subr.bf16.mxu0 0
      %459 = vmatpush1.bf16.msra.mxu0 %v373
      %460 = vmatprep.subr.bf16.mxu0 0
      %461 = vmatpush1.bf16.msra.mxu0 %v374
      %462 = vmatprep.subr.bf16.mxu0 0
      %463 = vmatpush1.bf16.msra.mxu0 %v375
      %464 = vmatprep.subr.bf16.mxu0 0
      %465 = vmatpush1.bf16.msra.mxu0 %v376
      %466 = vmatprep.subr.bf16.mxu0 0
      %467 = vmatpush1.bf16.msra.mxu0 0
      %468 = vmatprep.subr.bf16.mxu0 0
      %469 = vmatpush1.bf16.msra.mxu0 0
      %470 = vmatprep.subr.bf16.mxu0 0
      %471 = vmatpush1.bf16.msra.mxu0 0
      %472 = vmatprep.subr.bf16.mxu0 0
      %473 = vmatpush1.bf16.msra.mxu0 0
      %474 = vmatprep.subr.bf16.mxu0 0
      %475 = vmatpush1.bf16.msra.mxu0 0
      %476 = vmatprep.subr.bf16.mxu0 0
      %477 = vmatpush1.bf16.msra.mxu0 0
      %478 = vmatprep.subr.bf16.mxu0 0
      %479 = vmatpush1.bf16.msra.mxu0 0
      %480 = vmatprep.subr.bf16.mxu0 0
      %481 = vmatpush1.bf16.msra.mxu0 0
      %482 = vmatprep.mubr.bf16.mxu0 0
      %483 = vmatmul.mubr.bf16.gmra.mrb[0].mxu0 %v207
      %v484 = vpop.f32.mrb[0].mxu0
      %v485 = vadd.f32 %v436, %v484
      %v486 = vpop.f32.mrb[0].mxu0
      %v487 = vpop.f32.mrb[0].mxu0
      %v488 = vadd.f32 %v439, %v487
      %v489 = vpop.f32.mrb[0].mxu0
      %490 = vmatprep.mubr.bf16.mxu0 0
      %491 = vmatmul.mubr.bf16.gmra.mrb[0].mxu0 %v208
      %v492 = vpop.f32.mrb[0].mxu0
      %v493 = vadd.f32 %v444, %v492
      %v494 = vpop.f32.mrb[0].mxu0
      %v495 = vpop.f32.mrb[0].mxu0
      %v496 = vadd.f32 %v447, %v495
      %v497 = vpop.f32.mrb[0].mxu0
      %498 = vdwg.mxu0
      %v499 = vld [vmem:[%s2] sm:$0x1]
      %v501 = vlaneseq
      %v502 = vshrl.u32 %v501, 7
      %v503 = vsub.s32 0, %v502
      %v504 = vrot.slane %v499, %v503
      %v506 = vadd.f32 %v485, %v504
      %v507 = vadd.f32 %v488, %v504
      %v508 = vadd.f32 %v493, %v504
      %v509 = vadd.f32 %v496, %v504
      %v510 = vadd.f32 %v506, %v507
      %v511 = vadd.f32 %v510, %v508
      %v512 = vadd.f32 %v511, %v509
      %v513 = vrot.slane %v512, 4
      %v514 = vadd.f32 %v512, %v513
      %v515 = vrot.slane %v514, 2
      %v516 = vadd.f32 %v514, %v515
      %v517 = vrot.slane %v516, 1
      %v518 = vadd.f32 %v516, %v517
      %v519 = vmul.f32 %v518, 0.03125
      %v520 = vsub.f32 %v506, %v519
      %v521 = vsub.f32 %v507, %v519
      %v522 = vsub.f32 %v508, %v519
      %v523 = vsub.f32 %v509, %v519
      %v524 = vmul.f32 %v520, %v520
      %v525 = vmul.f32 %v521, %v521
      %v526 = vmul.f32 %v522, %v522
      %v527 = vmul.f32 %v523, %v523
      %v528 = vadd.f32 %v524, %v525
      %v529 = vadd.f32 %v528, %v526
      %v530 = vadd.f32 %v529, %v527
      %v531 = vrot.slane %v530, 4
      %v532 = vadd.f32 %v530, %v531
      %v533 = vrot.slane %v532, 2
      %v534 = vadd.f32 %v532, %v533
      %v535 = vrot.slane %v534, 1
      %v536 = vadd.f32 %v534, %v535
      %vm537 = vcmask 1040384
      %v538 = vsel %vm537, %v518, %v536
      %539 = vst [vmem:[%s173] sm:$0x3] %v538
      %p540 = scmp.lt.s32.totalorder %s14, 1
      %s541 = scalar_select %p540, %s14, 1
      %s542 = smul.addr %s541, 2
      %s543 = scalar_lea.vmem %s3, %s542
      // Predicated region
      $region37: #{residual_block_disc.3} parent=31 // pred_check
        %p544 = pneg %p100
      $region38: #{residual_block_disc.3} parent=31 // pred_check_branch
        %546 = sbr.rel (%p544) target = $region40
      $region39: #{residual_block_disc.3} parent=31 // pred_region
        _
      $region40: #{residual_block_disc.3} parent=31 // pred_fallthru
        _
    $region32: #{residual_block_disc.3} parent=5 // pred_fallthru
      _
    %p547 = scmp.le.s32.totalorder 2, %s9
    // Predicated region
    $region41: #{residual_block_disc.3} parent=5 // pred_check
      %p548 = pneg %p547
    $region42: #{residual_block_disc.3} parent=5 // pred_check_branch
      %550 = sbr.rel (%p548) target = $region44
    $region43: #{residual_block_disc.3} parent=5 // pred_region
      %s551 = ssub.s32 %s9, 2
      // Predicated region
      $region45: #{residual_block_disc.3} parent=43 // pred_check
        %p552 = pneg %p106
      $region46: #{residual_block_disc.3} parent=43 // pred_check_branch
        %554 = sbr.rel (%p552) target = $region48
      $region47: #{residual_block_disc.3} parent=43 // pred_region
        %p555 = scmp.lt.s32.totalorder %s15, 1
        %s556 = scalar_select %p555, %s15, 1
        %s557 = smul.addr %s556, 2
        %s558 = scalar_lea.vmem %s3, %s557
      $region48: #{residual_block_disc.3} parent=43 // pred_fallthru
        _
    $region44: #{residual_block_disc.3} parent=5 // pred_fallthru
      _
  $region6: #{residual_block_disc.3} parent=0 // loop_footer
    %s13 = sadd.s32 1, %s9
  $region7: #{residual_block_disc.3} parent=0 // loop_footer_branch
    %8 = sbr.rel target = $region3
  $region8: #{residual_block_disc.3} parent=0 // loop_exit
    _

// kernel: residual_block_disc.4
$region0: #{residual_block_disc.4}
  #allocation0 [shape = 'u32[]', space=smem, size = 0x4, offset = 0x4, fixed_abs, tag = 'smem constant byte address 0x4 - core index']
  #allocation1 [shape = 'u32[144,128]{1,0:T(1,128)}', space=vmem, size = 0x12000, scoped, tag = 'internal scratch']
  #allocation2 [shape = 'f32[2,32,128]{2,1,0:T(8,128)}', space=vmem, size = 0x8000, scoped, tag = 'scratch operand']
  #allocation3 [shape = 'f32[2,32,128]{2,1,0:T(8,128)}', space=vmem, size = 0x8000, scoped, tag = 'scratch operand']
  %s0 = inlined_call_operand.vmem [shape: f32[4,16,128], index: 0, kind: input, shape index: {}]
  %s1 = inlined_call_operand.vmem [shape: bf16[384,128], index: 1, kind: input, shape index: {}]
  %s2 = inlined_call_operand.vmem [shape: f32[1,128], index: 2, kind: input, shape index: {}]
  %s3 = inlined_call_operand.vmem [shape: f32[1,128], index: 3, kind: input, shape index: {}]
  %s4 = inlined_call_operand.vmem [shape: f32[1,128], index: 4, kind: input, shape index: {}]
  %s5 = inlined_call_operand.vmem [shape: bf16[384,128], index: 5, kind: input, shape index: {}]
  %s6 = inlined_call_operand.vmem [shape: f32[1,128], index: 6, kind: input, shape index: {}]
  %s7 = inlined_call_operand.vmem [shape: f32[2,2,128], index: 7, kind: output, shape index: {}]
  %s8 = sld [smem:[#allocation0]]
  $region69: #{residual_block_disc.4} parent=0
    _
  %s10 = ssub.s32 1, %s8
  %s11 = scalar_select 0, %s10, %s8
  loop: start=0, step=1, limit=4
  $region2: #{residual_block_disc.4} parent=0 // loop_pre_header
    _
  $region3: #{residual_block_disc.4} parent=0 // loop_header
    %s13 = sphi 0, %s17
    %p14 = scmp.ge.s32.totalorder %s13, 4
    %s23 = sphi 0, %s25
    %s26 = sphi 0, %s23
    %s27 = sphi 0, %s26
    %s43 = sphi 0, %s27
    %s47 = sphi 0, %s47
    %s49 = sphi 0, %s47
    %s50 = sphi 0, %s49
    %s64 = sphi 0, %s50
    %s68 = sphi 0, %s68
    %s70 = sphi 0, %s68
    %s71 = sphi 0, %s70
    %s85 = sphi 0, %s71
    %s89 = sphi 0, %s89
    %s91 = sphi 0, %s89
    %s92 = sphi 0, %s91
    %s106 = sphi 0, %s92
    %s110 = sphi 0, %s110
    %s112 = sphi 0, %s110
    %s113 = sphi 0, %s112
    %s127 = sphi 0, %s113
    %s131 = sphi 0, %s131
    %s133 = sphi 0, %s131
    %s134 = sphi 0, %s133
    %s148 = sphi 0, %s134
    %s152 = sphi 0, %s152
    %s154 = sphi 0, %s152
    %s155 = sphi 0, %s154
    %s169 = sphi 0, %s155
    %s175 = sphi 0, %s177
    %s178 = sphi 0, %s175
    %s179 = sphi 0, %s178
    %s195 = sphi 0, %s179
  $region4: #{residual_block_disc.4} parent=0 // loop_header_branch
    %16 = sbr.rel (%p14) target = $region8
  $region5: #{residual_block_disc.4} parent=0 // loop_body
    %s18 = ssub.s32 %s13, 1
    %s19 = ssub.s32 %s13, 2
    %s20 = sadd.s32 %s13, 1
    %s21 = ssub.s32 %s13, %s20
    %p22 = scmp.eq.s32.totalorder %s21, 0
    %s24 = sadd.s32 %s23, 1
    %s25 = scalar_select %p22, %s23, %s24
    %p28 = pneg %p22
    %p29 = scmp.eq.s32.totalorder %s13, 1
    %p30 = por %p28, %p29
    %p31 = scmp.ne.s32.totalorder %s23, %s26
    %p32 = scmp.eq.s32.totalorder %s13, 0
    %p33 = por %p31, %p32
    %p34 = scmp.ne.s32.totalorder %s23, %s26
    %p35 = scmp.eq.s32.totalorder %s18, 1
    %p36 = por %p34, %p35
    %p37 = scmp.ne.s32.totalorder %s26, %s27
    %p38 = scmp.eq.s32.totalorder %s18, 0
    %p39 = por %p37, %p38
    %p40 = scmp.ne.s32.totalorder %s26, %s27
    %p41 = scmp.eq.s32.totalorder %s19, 1
    %p42 = por %p40, %p41
    %p44 = scmp.ne.s32.totalorder %s27, %s43
    %p45 = scmp.eq.s32.totalorder %s19, 0
    %p46 = por %p44, %p45
    %s48 = sadd.s32 %s47, 1
    %p51 = scmp.eq.s32.totalorder %s13, 1
    %p52 = scmp.ne.s32.totalorder %s47, %s49
    %p53 = scmp.eq.s32.totalorder %s13, 0
    %p54 = por %p52, %p53
    %p55 = scmp.ne.s32.totalorder %s47, %s49
    %p56 = scmp.eq.s32.totalorder %s18, 1
    %p57 = por %p55, %p56
    %p58 = scmp.ne.s32.totalorder %s49, %s50
    %p59 = scmp.eq.s32.totalorder %s18, 0
    %p60 = por %p58, %p59
    %p61 = scmp.ne.s32.totalorder %s49, %s50
    %p62 = scmp.eq.s32.totalorder %s19, 1
    %p63 = por %p61, %p62
    %p65 = scmp.ne.s32.totalorder %s50, %s64
    %p66 = scmp.eq.s32.totalorder %s19, 0
    %p67 = por %p65, %p66
    %s69 = sadd.s32 %s68, 1
    %p72 = scmp.eq.s32.totalorder %s13, 1
    %p73 = scmp.ne.s32.totalorder %s68, %s70
    %p74 = scmp.eq.s32.totalorder %s13, 0
    %p75 = por %p73, %p74
    %p76 = scmp.ne.s32.totalorder %s68, %s70
    %p77 = scmp.eq.s32.totalorder %s18, 1
    %p78 = por %p76, %p77
    %p79 = scmp.ne.s32.totalorder %s70, %s71
    %p80 = scmp.eq.s32.totalorder %s18, 0
    %p81 = por %p79, %p80
    %p82 = scmp.ne.s32.totalorder %s70, %s71
    %p83 = scmp.eq.s32.totalorder %s19, 1
    %p84 = por %p82, %p83
    %p86 = scmp.ne.s32.totalorder %s71, %s85
    %p87 = scmp.eq.s32.totalorder %s19, 0
    %p88 = por %p86, %p87
    %s90 = sadd.s32 %s89, 1
    %p93 = scmp.eq.s32.totalorder %s13, 1
    %p94 = scmp.ne.s32.totalorder %s89, %s91
    %p95 = scmp.eq.s32.totalorder %s13, 0
    %p96 = por %p94, %p95
    %p97 = scmp.ne.s32.totalorder %s89, %s91
    %p98 = scmp.eq.s32.totalorder %s18, 1
    %p99 = por %p97, %p98
    %p100 = scmp.ne.s32.totalorder %s91, %s92
    %p101 = scmp.eq.s32.totalorder %s18, 0
    %p102 = por %p100, %p101
    %p103 = scmp.ne.s32.totalorder %s91, %s92
    %p104 = scmp.eq.s32.totalorder %s19, 1
    %p105 = por %p103, %p104
    %p107 = scmp.ne.s32.totalorder %s92, %s106
    %p108 = scmp.eq.s32.totalorder %s19, 0
    %p109 = por %p107, %p108
    %s111 = sadd.s32 %s110, 1
    %p114 = scmp.eq.s32.totalorder %s13, 1
    %p115 = scmp.ne.s32.totalorder %s110, %s112
    %p116 = scmp.eq.s32.totalorder %s13, 0
    %p117 = por %p115, %p116
    %p118 = scmp.ne.s32.totalorder %s110, %s112
    %p119 = scmp.eq.s32.totalorder %s18, 1
    %p120 = por %p118, %p119
    %p121 = scmp.ne.s32.totalorder %s112, %s113
    %p122 = scmp.eq.s32.totalorder %s18, 0
    %p123 = por %p121, %p122
    %p124 = scmp.ne.s32.totalorder %s112, %s113
    %p125 = scmp.eq.s32.totalorder %s19, 1
    %p126 = por %p124, %p125
    %p128 = scmp.ne.s32.totalorder %s113, %s127
    %p129 = scmp.eq.s32.totalorder %s19, 0
    %p130 = por %p128, %p129
    %s132 = sadd.s32 %s131, 1
    %p135 = scmp.eq.s32.totalorder %s13, 1
    %p136 = scmp.ne.s32.totalorder %s131, %s133
    %p137 = scmp.eq.s32.totalorder %s13, 0
    %p138 = por %p136, %p137
    %p139 = scmp.ne.s32.totalorder %s131, %s133
    %p140 = scmp.eq.s32.totalorder %s18, 1
    %p141 = por %p139, %p140
    %p142 = scmp.ne.s32.totalorder %s133, %s134
    %p143 = scmp.eq.s32.totalorder %s18, 0
    %p144 = por %p142, %p143
    %p145 = scmp.ne.s32.totalorder %s133, %s134
    %p146 = scmp.eq.s32.totalorder %s19, 1
    %p147 = por %p145, %p146
    %p149 = scmp.ne.s32.totalorder %s134, %s148
    %p150 = scmp.eq.s32.totalorder %s19, 0
    %p151 = por %p149, %p150
    %s153 = sadd.s32 %s152, 1
    %p156 = scmp.eq.s32.totalorder %s13, 1
    %p157 = scmp.ne.s32.totalorder %s152, %s154
    %p158 = scmp.eq.s32.totalorder %s13, 0
    %p159 = por %p157, %p158
    %p160 = scmp.ne.s32.totalorder %s152, %s154
    %p161 = scmp.eq.s32.totalorder %s18, 1
    %p162 = por %p160, %p161
    %p163 = scmp.ne.s32.totalorder %s154, %s155
    %p164 = scmp.eq.s32.totalorder %s18, 0
    %p165 = por %p163, %p164
    %p166 = scmp.ne.s32.totalorder %s154, %s155
    %p167 = scmp.eq.s32.totalorder %s19, 1
    %p168 = por %p166, %p167
    %p170 = scmp.ne.s32.totalorder %s155, %s169
    %p171 = scmp.eq.s32.totalorder %s19, 0
    %p172 = por %p170, %p171
    %s173 = ssub.s32 %s13, %s20
    %p174 = scmp.eq.s32.totalorder %s173, 0
    %s176 = sadd.s32 %s175, 1
    %s177 = scalar_select %p174, %s175, %s176
    %p180 = pneg %p174
    %p181 = scmp.eq.s32.totalorder %s13, 1
    %p182 = por %p180, %p181
    %p183 = scmp.ne.s32.totalorder %s175, %s178
    %p184 = scmp.eq.s32.totalorder %s13, 0
    %p185 = por %p183, %p184
    %p186 = scmp.ne.s32.totalorder %s175, %s178
    %p187 = scmp.eq.s32.totalorder %s18, 1
    %p188 = por %p186, %p187
    %p189 = scmp.ne.s32.totalorder %s178, %s179
    %p190 = scmp.eq.s32.totalorder %s18, 0
    %p191 = por %p189, %p190
    %p192 = scmp.ne.s32.totalorder %s178, %s179
    %p193 = scmp.eq.s32.totalorder %s19, 1
    %p194 = por %p192, %p193
    %p196 = scmp.ne.s32.totalorder %s179, %s195
    %p197 = scmp.eq.s32.totalorder %s19, 0
    %p198 = por %p196, %p197
    %p199 = scmp.le.s32.totalorder 1, %s13
    %p200 = scmp.lt.s32.totalorder %s13, 3
    %p201 = pnand %p199, %p200
    %p202 = pneg %p201
    // Predicated region
    $region9: #{residual_block_disc.4} parent=5 // pred_check
      _
    $region10: #{residual_block_disc.4} parent=5 // pred_check_branch
      %204 = sbr.rel (%p201) target = $region12
    $region11: #{residual_block_disc.4} parent=5 // pred_region
      %s205 = ssub.s32 %s13, 1
      // Predicated region
      $region13: #{residual_block_disc.4} parent=11 // pred_check
        %p206 = pneg %p60
      $region14: #{residual_block_disc.4} parent=11 // pred_check_branch
        %208 = sbr.rel (%p206) target = $region16
      $region15: #{residual_block_disc.4} parent=11 // pred_region
        _
      $region16: #{residual_block_disc.4} parent=11 // pred_fallthru
        _
      // Predicated region
      $region17: #{residual_block_disc.4} parent=11 // pred_check
        %p209 = pneg %p81
      $region18: #{residual_block_disc.4} parent=11 // pred_check_branch
        %211 = sbr.rel (%p209) target = $region20
      $region19: #{residual_block_disc.4} parent=11 // pred_region
        _
      $region20: #{residual_block_disc.4} parent=11 // pred_fallthru
        _
      // Predicated region
      $region21: #{residual_block_disc.4} parent=11 // pred_check
        %p212 = pneg %p102
      $region22: #{residual_block_disc.4} parent=11 // pred_check_branch
        %214 = sbr.rel (%p212) target = $region24
      $region23: #{residual_block_disc.4} parent=11 // pred_region
        _
      $region24: #{residual_block_disc.4} parent=11 // pred_fallthru
        _
      // Predicated region
      $region25: #{residual_block_disc.4} parent=11 // pred_check
        %p215 = pneg %p123
      $region26: #{residual_block_disc.4} parent=11 // pred_check_branch
        %217 = sbr.rel (%p215) target = $region28
      $region27: #{residual_block_disc.4} parent=11 // pred_region
        _
      $region28: #{residual_block_disc.4} parent=11 // pred_fallthru
        _
      // Predicated region
      $region29: #{residual_block_disc.4} parent=11 // pred_check
        %p218 = pneg %p144
      $region30: #{residual_block_disc.4} parent=11 // pred_check_branch
        %220 = sbr.rel (%p218) target = $region32
      $region31: #{residual_block_disc.4} parent=11 // pred_region
        _
      $region32: #{residual_block_disc.4} parent=11 // pred_fallthru
        _
      // Predicated region
      $region33: #{residual_block_disc.4} parent=11 // pred_check
        %p221 = pneg %p165
      $region34: #{residual_block_disc.4} parent=11 // pred_check_branch
        %223 = sbr.rel (%p221) target = $region36
      $region35: #{residual_block_disc.4} parent=11 // pred_region
        _
      $region36: #{residual_block_disc.4} parent=11 // pred_fallthru
        _
    $region12: #{residual_block_disc.4} parent=5 // pred_fallthru
      _
    %p224 = scmp.lt.s32.totalorder %s13, 2
    // Predicated region
    $region37: #{residual_block_disc.4} parent=5 // pred_check
      %p225 = pneg %p224
    $region38: #{residual_block_disc.4} parent=5 // pred_check_branch
      %227 = sbr.rel (%p225) target = $region40
    $region39: #{residual_block_disc.4} parent=5 // pred_region
      // Predicated region
      $region41: #{residual_block_disc.4} parent=39 // pred_check
        %p228 = pneg %p33
      $region42: #{residual_block_disc.4} parent=39 // pred_check_branch
        %230 = sbr.rel (%p228) target = $region44
      $region43: #{residual_block_disc.4} parent=39 // pred_region
        %s231 = smul.u32 2, %s13
        %p232 = scmp.lt.s32.totalorder %s231, 3
        %s233 = scalar_select %p232, %s231, 3
        %s234 = smul.addr %s233, 2
        %s235 = smul.addr %s234, 8
        %s236 = scalar_lea.vmem %s0, %s235
        %s237 = smul.u32 2, %s13
      $region44: #{residual_block_disc.4} parent=39 // pred_fallthru
        _
    $region40: #{residual_block_disc.4} parent=5 // pred_fallthru
      _
    %p238 = scmp.le.s32.totalorder 1, %s13
    %p239 = scmp.lt.s32.totalorder %s13, 3
    %p240 = pnand %p238, %p239
    %p241 = pneg %p240
    // Predicated region
    $region45: #{residual_block_disc.4} parent=5 // pred_check
      _
    $region46: #{residual_block_disc.4} parent=5 // pred_check_branch
      %243 = sbr.rel (%p240) target = $region48
    $region47: #{residual_block_disc.4} parent=5 // pred_region
      %s244 = ssub.s32 %s13, 1
      %s245 = smul.u32 2, %s18
      %p246 = scmp.lt.s32.totalorder %s245, 3
      %s247 = scalar_select %p246, %s245, 3
      %s248 = smul.addr %s247, 2
      %s249 = smul.addr %s248, 8
      %s250 = scalar_lea.vmem %s0, %s249
      %p251 = pneg %p39
      %p252 = pneg %p36
      %p253 = pneg %p60
      %p254 = pneg %p57
      %p255 = pneg %p81
      %p256 = pneg %p78
      %p257 = pneg %p102
      %p258 = pneg %p99
      %p259 = pneg %p123
      %p260 = pneg %p120
      %p261 = pneg %p144
      %p262 = pneg %p141
      %p263 = pneg %p165
      %p264 = pneg %p162
      %p265 = pneg %p191
      %p266 = pneg %p188
      %p267 = scmp.lt.s32.totalorder %s18, 1
      %s268 = scalar_select %p267, %s18, 1
      %s269 = smul.addr %s268, 2
      %s270 = scalar_lea.vmem %s7, %s269
      %s271 = smul.u32 2, %s18
      %p272 = scmp.lt.s32.totalorder %s271, 3
      %s273 = scalar_select %p272, %s271, 3
      %s274 = smul.addr %s273, 2
      %s275 = smul.addr %s274, 8
      %s276 = scalar_lea.vmem %s0, %s275
      %s277 = smul.u32 2, %s18
      %p278 = scmp.lt.s32.totalorder %s18, 1
      %s279 = scalar_select %p278, %s18, 1
      %s280 = smul.addr %s279, 2
      %s281 = scalar_lea.vmem %s7, %s280
      %p283 = scmp.eq.s32.totalorder %s18, 0
      %v284 = vld [vmem:[%s276] sm:$0xff]
      %v285 = vld [vmem:[%s276 + $0x8] sm:$0xff]
      %v286 = vld [vmem:[%s276 + $0x10] sm:$0xff]
      %v287 = vld [vmem:[%s276 + $0x18] sm:$0xff]
      // Predicated region
      $region49: #{residual_block_disc.4} parent=47 // pred_check
        %p288 = pneg %p283
      $region50: #{residual_block_disc.4} parent=47 // pred_check_branch
        %290 = sbr.rel (%p288) target = $region52
      $region51: #{residual_block_disc.4} parent=47 // pred_region
        %291 = vst [vmem:[#allocation2 + $0x7] sm:$0x1] 0.0
        %292 = vst [vmem:[#allocation2 + $0x27] sm:$0x1] 0.0
        %293 = vst [vmem:[#allocation2 + $0x18] sm:$0x1] 0.0
        %294 = vst [vmem:[#allocation2 + $0x38] sm:$0x1] 0.0
      $region52: #{residual_block_disc.4} parent=47 // pred_fallthru
        _
      %295 = vst [vmem:[#allocation2 + $0x8] sm:$0xff] %v284
      %296 = vst [vmem:[#allocation2 + $0x10] sm:$0xff] %v285
      %297 = vst [vmem:[#allocation2 + $0x28] sm:$0xff] %v286
      %298 = vst [vmem:[#allocation2 + $0x30] sm:$0xff] %v287
      %v299 = vld [vmem:[#allocation2 + $0x7] sm:$0xff]
      %v300 = vld [vmem:[#allocation2 + $0xf] sm:$0xff]
      %v301 = vld [vmem:[#allocation2 + $0x27] sm:$0xff]
      %v302 = vld [vmem:[#allocation2 + $0x2f] sm:$0xff]
      %v303 = vpack.c.bf16 %v300, %v299
      %v304 = vpack.c.bf16 %v302, %v301
      %v305 = vld [vmem:[#allocation2 + $0x8] sm:$0xff]
      %v306 = vld [vmem:[#allocation2 + $0x10] sm:$0xff]
      %v307 = vld [vmem:[#allocation2 + $0x28] sm:$0xff]
      %v308 = vld [vmem:[#allocation2 + $0x30] sm:$0xff]
      %v309 = vpack.c.bf16 %v306, %v305
      %v310 = vpack.c.bf16 %v308, %v307
      %v311 = vld [vmem:[#allocation2 + $0x9] sm:$0xff]
      %v312 = vld [vmem:[#allocation2 + $0x11] sm:$0xff]
      %v313 = vld [vmem:[#allocation2 + $0x29] sm:$0xff]
      %v314 = vld [vmem:[#allocation2 + $0x31] sm:$0xff]
      %v315 = vpack.c.bf16 %v312, %v311
      %v316 = vpack.c.bf16 %v314, %v313
      %v317 = vld [vmem:[%s1] sm:$0xf]
      %v318 = vld [vmem:[%s1 + $0x4] sm:$0xf]
      %v319 = vld [vmem:[%s1 + $0x8] sm:$0xf]
      %v320 = vld [vmem:[%s1 + $0xc] sm:$0xf]
      %v321 = vld [vmem:[%s1 + $0x10] sm:$0xf]
      %v322 = vld [vmem:[%s1 + $0x14] sm:$0xf]
      %v323 = vld [vmem:[%s1 + $0x18] sm:$0xf]
      %v324 = vld [vmem:[%s1 + $0x1c] sm:$0xf]
      %v325 = vld [vmem:[%s1 + $0x20] sm:$0xf]
      %v326 = vld [vmem:[%s1 + $0x24] sm:$0xf]
      %v327 = vld [vmem:[%s1 + $0x28] sm:$0xf]
      %v328 = vld [vmem:[%s1 + $0x2c] sm:$0xf]
      %v329 = vld [vmem:[%s1 + $0x30] sm:$0xf]
      %v330 = vld [vmem:[%s1 + $0x34] sm:$0xf]
      %v331 = vld [vmem:[%s1 + $0x38] sm:$0xf]
      %v332 = vld [vmem:[%s1 + $0x3c] sm:$0xf]
      %v333 = vld [vmem:[%s1 + $0x40] sm:$0xf]
      %v334 = vld [vmem:[%s1 + $0x44] sm:$0xf]
      %v335 = vld [vmem:[%s1 + $0x48] sm:$0xf]
      %v336 = vld [vmem:[%s1 + $0x4c] sm:$0xf]
      %v337 = vld [vmem:[%s1 + $0x50] sm:$0xf]
      %v338 = vld [vmem:[%s1 + $0x54] sm:$0xf]
      %v339 = vld [vmem:[%s1 + $0x58] sm:$0xf]
      %v340 = vld [vmem:[%s1 + $0x5c] sm:$0xf]
      %v341 = vld [vmem:[%s1 + $0x60] sm:$0xf]
      %v342 = vld [vmem:[%s1 + $0x64] sm:$0xf]
      %v343 = vld [vmem:[%s1 + $0x68] sm:$0xf]
      %v344 = vld [vmem:[%s1 + $0x6c] sm:$0xf]
      %v345 = vld [vmem:[%s1 + $0x70] sm:$0xf]
      %v346 = vld [vmem:[%s1 + $0x74] sm:$0xf]
      %v347 = vld [vmem:[%s1 + $0x78] sm:$0xf]
      %v348 = vld [vmem:[%s1 + $0x7c] sm:$0xf]
      %v349 = vld [vmem:[%s1 + $0x80] sm:$0xf]
      %v350 = vld [vmem:[%s1 + $0x84] sm:$0xf]
      %v351 = vld [vmem:[%s1 + $0x88] sm:$0xf]
      %v352 = vld [vmem:[%s1 + $0x8c] sm:$0xf]
      %v353 = vld [vmem:[%s1 + $0x90] sm:$0xf]
      %v354 = vld [vmem:[%s1 + $0x94] sm:$0xf]
      %v355 = vld [vmem:[%s1 + $0x98] sm:$0xf]
      %v356 = vld [vmem:[%s1 + $0x9c] sm:$0xf]
      %v357 = vld [vmem:[%s1 + $0xa0] sm:$0xf]
      %v358 = vld [vmem:[%s1 + $0xa4] sm:$0xf]
      %v359 = vld [vmem:[%s1 + $0xa8] sm:$0xf]
      %v360 = vld [vmem:[%s1 + $0xac] sm:$0xf]
      %v361 = vld [vmem:[%s1 + $0xb0] sm:$0xf]
      %v362 = vld [vmem:[%s1 + $0xb4] sm:$0xf]
      %v363 = vld [vmem:[%s1 + $0xb8] sm:$0xf]
      %v364 = vld [vmem:[%s1 + $0xbc] sm:$0xf]
      %v413 = vunpack.c.l.b16 %v317
      %v414 = vunpack.c.l.b16 %v318
      %v415 = vunpack.c.l.b16 %v319
      %v416 = vunpack.c.l.b16 %v320
      %v417 = vunpack.c.l.b16 %v321
      %v418 = vunpack.c.l.b16 %v322
      %v419 = vunpack.c.l.b16 %v323
      %v420 = vunpack.c.l.b16 %v324
      %v421 = vunpack.c.l.b16 %v325
      %v422 = vunpack.c.l.b16 %v326
      %v423 = vunpack.c.l.b16 %v327
      %v424 = vunpack.c.l.b16 %v328
      %v425 = vunpack.c.l.b16 %v329
      %v426 = vunpack.c.l.b16 %v330
      %v427 = vunpack.c.l.b16 %v331
      %v428 = vunpack.c.l.b16 %v332
      %v429 = vunpack.c.l.b16 %v333
      %v430 = vunpack.c.l.b16 %v334
      %v431 = vunpack.c.l.b16 %v335
      %v432 = vunpack.c.l.b16 %v336
      %v433 = vunpack.c.l.b16 %v337
      %v434 = vunpack.c.l.b16 %v338
      %v435 = vunpack.c.l.b16 %v339
      %v436 = vunpack.c.l.b16 %v340
      %v437 = vunpack.c.l.b16 %v341
      %v438 = vunpack.c.l.b16 %v342
      %v439 = vunpack.c.l.b16 %v343
      %v440 = vunpack.c.l.b16 %v344
      %v441 = vunpack.c.l.b16 %v345
      %v442 = vunpack.c.l.b16 %v346
      %v443 = vunpack.c.l.b16 %v347
      %v444 = vunpack.c.l.b16 %v348
      %v445 = vunpack.c.l.b16 %v349
      %v446 = vunpack.c.l.b16 %v350
      %v447 = vunpack.c.l.b16 %v351
      %v448 = vunpack.c.l.b16 %v352
      %v449 = vunpack.c.l.b16 %v353
      %v450 = vunpack.c.l.b16 %v354
      %v451 = vunpack.c.l.b16 %v355
      %v452 = vunpack.c.l.b16 %v356
      %v453 = vunpack.c.l.b16 %v357
      %v454 = vunpack.c.l.b16 %v358
      %v455 = vunpack.c.l.b16 %v359
      %v456 = vunpack.c.l.b16 %v360
      %v457 = vunpack.c.l.b16 %v361
      %v458 = vunpack.c.l.b16 %v362
      %v459 = vunpack.c.l.b16 %v363
      %v460 = vunpack.c.l.b16 %v364
      %v461 = vpack.c.b16 %v414, %v413
      %v462 = vpack.c.b16 %v416, %v415
      %v463 = vpack.c.b16 %v418, %v417
      %v464 = vpack.c.b16 %v420, %v419
      %v465 = vpack.c.b16 %v422, %v421
      %v466 = vpack.c.b16 %v424, %v423
      %v467 = vpack.c.b16 %v426, %v425
      %v468 = vpack.c.b16 %v428, %v427
      %v469 = vpack.c.b16 %v430, %v429
      %v470 = vpack.c.b16 %v432, %v431
      %v471 = vpack.c.b16 %v434, %v433
      %v472 = vpack.c.b16 %v436, %v435
      %v473 = vpack.c.b16 %v438, %v437
      %v474 = vpack.c.b16 %v440, %v439
      %v475 = vpack.c.b16 %v442, %v441
      %v476 = vpack.c.b16 %v444, %v443
      %v477 = vpack.c.b16 %v446, %v445
      %v478 = vpack.c.b16 %v448, %v447
      %v479 = vpack.c.b16 %v450, %v449
      %v480 = vpack.c.b16 %v452, %v451
      %v481 = vpack.c.b16 %v454, %v453
      %v482 = vpack.c.b16 %v456, %v455
      %v483 = vpack.c.b16 %v458, %v457
      %v484 = vpack.c.b16 %v460, %v459
      %509 = vmatprep.subr.bf16.mxu0 0
      %510 = vmatpush1.bf16.msra.mxu0 %v461
      %511 = vmatprep.subr.bf16.mxu0 0
      %512 = vmatpush1.bf16.msra.mxu0 %v462
      %513 = vmatprep.subr.bf16.mxu0 0
      %514 = vmatpush1.bf16.msra.mxu0 %v463
      %515 = vmatprep.subr.bf16.mxu0 0
      %516 = vmatpush1.bf16.msra.mxu0 %v464
      %517 = vmatprep.subr.bf16.mxu0 0
      %518 = vmatpush1.bf16.msra.mxu0 %v465
      %519 = vmatprep.subr.bf16.mxu0 0
      %520 = vmatpush1.bf16.msra.mxu0 %v466
      %521 = vmatprep.subr.bf16.mxu0 0
      %522 = vmatpush1.bf16.msra.mxu0 %v467
      %523 = vmatprep.subr.bf16.mxu0 0
      %524 = vmatpush1.bf16.msra.mxu0 %v468
      %525 = vmatprep.subr.bf16.mxu0 0
      %526 = vmatpush1.bf16.msra.mxu0 %v469
      %527 = vmatprep.subr.bf16.mxu0 0
      %528 = vmatpush1.bf16.msra.mxu0 %v470
      %529 = vmatprep.subr.bf16.mxu0 0
      %530 = vmatpush1.bf16.msra.mxu0 %v471
      %531 = vmatprep.subr.bf16.mxu0 0
      %532 = vmatpush1.bf16.msra.mxu0 %v472
      %533 = vmatprep.subr.bf16.mxu0 0
      %534 = vmatpush1.bf16.msra.mxu0 %v473
      %535 = vmatprep.subr.bf16.mxu0 0
      %536 = vmatpush1.bf16.msra.mxu0 %v474
      %537 = vmatprep.subr.bf16.mxu0 0
      %538 = vmatpush1.bf16.msra.mxu0 %v475
      %539 = vmatprep.subr.bf16.mxu0 0
      %540 = vmatpush1.bf16.msra.mxu0 %v476
      %541 = vmatprep.mubr.bf16.mxu0 %v309
      %542 = vmatmul.mubr.bf16.gmra.mrb[0].mxu0 %v303
      %v543 = vpop.f32.mrb[0].mxu0
      %v544 = vadd.f32 0.0, %v543
      %v545 = vpop.f32.mrb[0].mxu0
      %v546 = vpop.f32.mrb[0].mxu0
      %v547 = vadd.f32 0.0, %v546
      %v548 = vpop.f32.mrb[0].mxu0
      %549 = vmatprep.mubr.bf16.mxu0 %v310
      %550 = vmatmul.mubr.bf16.gmra.mrb[0].mxu0 %v304
      %v551 = vpop.f32.mrb[0].mxu0
      %v552 = vadd.f32 0.0, %v551
      %v553 = vpop.f32.mrb[0].mxu0
      %v554 = vpop.f32.mrb[0].mxu0
      %v555 = vadd.f32 0.0, %v554
      %v556 = vpop.f32.mrb[0].mxu0
      %557 = vdwg.mxu0
      %558 = vmatprep.subr.bf16.mxu0 0
      %559 = vmatpush1.bf16.msra.mxu0 %v477
      %560 = vmatprep.subr.bf16.mxu0 0
      %561 = vmatpush1.bf16.msra.mxu0 %v478
      %562 = vmatprep.subr.bf16.mxu0 0
      %563 = vmatpush1.bf16.msra.mxu0 %v479
      %564 = vmatprep.subr.bf16.mxu0 0
      %565 = vmatpush1.bf16.msra.mxu0 %v480
      %566 = vmatprep.subr.bf16.mxu0 0
      %567 = vmatpush1.bf16.msra.mxu0 %v481
      %568 = vmatprep.subr.bf16.mxu0 0
      %569 = vmatpush1.bf16.msra.mxu0 %v482
      %570 = vmatprep.subr.bf16.mxu0 0
      %571 = vmatpush1.bf16.msra.mxu0 %v483
      %572 = vmatprep.subr.bf16.mxu0 0
      %573 = vmatpush1.bf16.msra.mxu0 %v484
      %574 = vmatprep.subr.bf16.mxu0 0
      %575 = vmatpush1.bf16.msra.mxu0 0
      %576 = vmatprep.subr.bf16.mxu0 0
      %577 = vmatpush1.bf16.msra.mxu0 0
      %578 = vmatprep.subr.bf16.mxu0 0
      %579 = vmatpush1.bf16.msra.mxu0 0
      %580 = vmatprep.subr.bf16.mxu0 0
      %581 = vmatpush1.bf16.msra.mxu0 0
      %582 = vmatprep.subr.bf16.mxu0 0
      %583 = vmatpush1.bf16.msra.mxu0 0
      %584 = vmatprep.subr.bf16.mxu0 0
      %585 = vmatpush1.bf16.msra.mxu0 0
      %586 = vmatprep.subr.bf16.mxu0 0
      %587 = vmatpush1.bf16.msra.mxu0 0
      %588 = vmatprep.subr.bf16.mxu0 0
      %589 = vmatpush1.bf16.msra.mxu0 0
      %590 = vmatprep.mubr.bf16.mxu0 0
      %591 = vmatmul.mubr.bf16.gmra.mrb[0].mxu0 %v315
      %v592 = vpop.f32.mrb[0].mxu0
      %v593 = vadd.f32 %v544, %v592
      %v594 = vpop.f32.mrb[0].mxu0
      %v595 = vpop.f32.mrb[0].mxu0
      %v596 = vadd.f32 %v547, %v595
      %v597 = vpop.f32.mrb[0].mxu0
      %598 = vmatprep.mubr.bf16.mxu0 0
      %599 = vmatmul.mubr.bf16.gmra.mrb[0].mxu0 %v316
      %v600 = vpop.f32.mrb[0].mxu0
      %v601 = vadd.f32 %v552, %v600
      %v602 = vpop.f32.mrb[0].mxu0
      %v603 = vpop.f32.mrb[0].mxu0
      %v604 = vadd.f32 %v555, %v603
      %v605 = vpop.f32.mrb[0].mxu0
      %606 = vdwg.mxu0
      %v607 = vld [vmem:[%s2] sm:$0x1]
      %v609 = vlaneseq
      %v610 = vshrl.u32 %v609, 7
      %v611 = vsub.s32 0, %v610
      %v612 = vrot.slane %v607, %v611
      %v614 = vadd.f32 %v593, %v612
      %v615 = vadd.f32 %v596, %v612
      %v616 = vadd.f32 %v601, %v612
      %v617 = vadd.f32 %v604, %v612
      %v618 = vld [vmem:[%s3] sm:$0x1]
      %v620 = vlaneseq
      %v621 = vshrl.u32 %v620, 7
      %v622 = vsub.s32 0, %v621
      %v623 = vrot.slane %v618, %v622
      %v625 = vmul.f32 %v614, %v623
      %v626 = vmul.f32 %v615, %v623
      %v627 = vmul.f32 %v616, %v623
      %v628 = vmul.f32 %v617, %v623
      %v629 = vld [vmem:[%s4] sm:$0x1]
      %v631 = vlaneseq
      %v632 = vshrl.u32 %v631, 7
      %v633 = vsub.s32 0, %v632
      %v634 = vrot.slane %v629, %v633
      %v636 = vadd.f32 %v625, %v634
      %v637 = vadd.f32 %v626, %v634
      %v638 = vadd.f32 %v627, %v634
      %v639 = vadd.f32 %v628, %v634
      %vm640 = vcmp.ge.f32.partialorder %v636, 0.0
      %vm641 = vcmp.ge.f32.partialorder %v637, 0.0
      %vm642 = vcmp.ge.f32.partialorder %v638, 0.0
      %vm643 = vcmp.ge.f32.partialorder %v639, 0.0
      %v644 = vmul.f32 %v636, 0.2
      %v645 = vmul.f32 %v637, 0.2
      %v646 = vmul.f32 %v638, 0.2
      %v647 = vmul.f32 %v639, 0.2
      %v648 = vsel %vm640, %v636, %v644
      %v649 = vsel %vm641, %v637, %v645
      %v650 = vsel %vm642, %v638, %v646
      %v651 = vsel %vm643, %v639, %v647
      // Predicated region
      $region53: #{residual_block_disc.4} parent=47 // pred_check
        %p652 = pneg %p283
      $region54: #{residual_block_disc.4} parent=47 // pred_check_branch
        %654 = sbr.rel (%p652) target = $region56
      $region55: #{residual_block_disc.4} parent=47 // pred_region
        %655 = vst [vmem:[#allocation3 + $0x7] sm:$0x1] 0.0
        %656 = vst [vmem:[#allocation3 + $0x27] sm:$0x1] 0.0
        %657 = vst [vmem:[#allocation3 + $0x18] sm:$0x1] 0.0
        %658 = vst [vmem:[#allocation3 + $0x38] sm:$0x1] 0.0
      $region56: #{residual_block_disc.4} parent=47 // pred_fallthru
        _
      %659 = vst [vmem:[#allocation3 + $0x8] sm:$0xff] %v648
      %660 = vst [vmem:[#allocation3 + $0x10] sm:$0xff] %v649
      %661 = vst [vmem:[#allocation3 + $0x28] sm:$0xff] %v650
      %662 = vst [vmem:[#allocation3 + $0x30] sm:$0xff] %v651
      %v663 = vld [vmem:[#allocation3 + $0x7] sm:$0xff]
      %v664 = vld [vmem:[#allocation3 + $0xf] sm:$0xff]
      %v665 = vld [vmem:[#allocation3 + $0x27] sm:$0xff]
      %v666 = vld [vmem:[#allocation3 + $0x2f] sm:$0xff]
      %v667 = vpack.c.bf16 %v664, %v663
      %v668 = vpack.c.bf16 %v666, %v665
      %v669 = vld [vmem:[#allocation3 + $0x8] sm:$0xff]
      %v670 = vld [vmem:[#allocation3 + $0x10] sm:$0xff]
      %v671 = vld [vmem:[#allocation3 + $0x28] sm:$0xff]
      %v672 = vld [vmem:[#allocation3 + $0x30] sm:$0xff]
      %v673 = vpack.c.bf16 %v670, %v669
      %v674 = vpack.c.bf16 %v672, %v671
      %v675 = vld [vmem:[#allocation3 + $0x9] sm:$0xff]
      %v676 = vld [vmem:[#allocation3 + $0x11] sm:$0xff]
      %v677 = vld [vmem:[#allocation3 + $0x29] sm:$0xff]
      %v678 = vld [vmem:[#allocation3 + $0x31] sm:$0xff]
      %v679 = vpack.c.bf16 %v676, %v675
      %v680 = vpack.c.bf16 %v678, %v677
      %v681 = vld [vmem:[%s5] sm:$0xf]
      %v682 = vld [vmem:[%s5 + $0x4] sm:$0xf]
      %v683 = vld [vmem:[%s5 + $0x8] sm:$0xf]
      %v684 = vld [vmem:[%s5 + $0xc] sm:$0xf]
      %v685 = vld [vmem:[%s5 + $0x10] sm:$0xf]
      %v686 = vld [vmem:[%s5 + $0x14] sm:$0xf]
      %v687 = vld [vmem:[%s5 + $0x18] sm:$0xf]
      %v688 = vld [vmem:[%s5 + $0x1c] sm:$0xf]
      %v689 = vld [vmem:[%s5 + $0x20] sm:$0xf]
      %v690 = vld [vmem:[%s5 + $0x24] sm:$0xf]
      %v691 = vld [vmem:[%s5 + $0x28] sm:$0xf]
      %v692 = vld [vmem:[%s5 + $0x2c] sm:$0xf]
      %v693 = vld [vmem:[%s5 + $0x30] sm:$0xf]
      %v694 = vld [vmem:[%s5 + $0x34] sm:$0xf]
      %v695 = vld [vmem:[%s5 + $0x38] sm:$0xf]
      %v696 = vld [vmem:[%s5 + $0x3c] sm:$0xf]
      %v697 = vld [vmem:[%s5 + $0x40] sm:$0xf]
      %v698 = vld [vmem:[%s5 + $0x44] sm:$0xf]
      %v699 = vld [vmem:[%s5 + $0x48] sm:$0xf]
      %v700 = vld [vmem:[%s5 + $0x4c] sm:$0xf]
      %v701 = vld [vmem:[%s5 + $0x50] sm:$0xf]
      %v702 = vld [vmem:[%s5 + $0x54] sm:$0xf]
      %v703 = vld [vmem:[%s5 + $0x58] sm:$0xf]
      %v704 = vld [vmem:[%s5 + $0x5c] sm:$0xf]
      %v705 = vld [vmem:[%s5 + $0x60] sm:$0xf]
      %v706 = vld [vmem:[%s5 + $0x64] sm:$0xf]
      %v707 = vld [vmem:[%s5 + $0x68] sm:$0xf]
      %v708 = vld [vmem:[%s5 + $0x6c] sm:$0xf]
      %v709 = vld [vmem:[%s5 + $0x70] sm:$0xf]
      %v710 = vld [vmem:[%s5 + $0x74] sm:$0xf]
      %v711 = vld [vmem:[%s5 + $0x78] sm:$0xf]
      %v712 = vld [vmem:[%s5 + $0x7c] sm:$0xf]
      %v713 = vld [vmem:[%s5 + $0x80] sm:$0xf]
      %v714 = vld [vmem:[%s5 + $0x84] sm:$0xf]
      %v715 = vld [vmem:[%s5 + $0x88] sm:$0xf]
      %v716 = vld [vmem:[%s5 + $0x8c] sm:$0xf]
      %v717 = vld [vmem:[%s5 + $0x90] sm:$0xf]
      %v718 = vld [vmem:[%s5 + $0x94] sm:$0xf]
      %v719 = vld [vmem:[%s5 + $0x98] sm:$0xf]
      %v720 = vld [vmem:[%s5 + $0x9c] sm:$0xf]
      %v721 = vld [vmem:[%s5 + $0xa0] sm:$0xf]
      %v722 = vld [vmem:[%s5 + $0xa4] sm:$0xf]
      %v723 = vld [vmem:[%s5 + $0xa8] sm:$0xf]
      %v724 = vld [vmem:[%s5 + $0xac] sm:$0xf]
      %v725 = vld [vmem:[%s5 + $0xb0] sm:$0xf]
      %v726 = vld [vmem:[%s5 + $0xb4] sm:$0xf]
      %v727 = vld [vmem:[%s5 + $0xb8] sm:$0xf]
      %v728 = vld [vmem:[%s5 + $0xbc] sm:$0xf]
      %v777 = vunpack.c.l.b16 %v681
      %v778 = vunpack.c.l.b16 %v682
      %v779 = vunpack.c.l.b16 %v683
      %v780 = vunpack.c.l.b16 %v684
      %v781 = vunpack.c.l.b16 %v685
      %v782 = vunpack.c.l.b16 %v686
      %v783 = vunpack.c.l.b16 %v687
      %v784 = vunpack.c.l.b16 %v688
      %v785 = vunpack.c.l.b16 %v689
      %v786 = vunpack.c.l.b16 %v690
      %v787 = vunpack.c.l.b16 %v691
      %v788 = vunpack.c.l.b16 %v692
      %v789 = vunpack.c.l.b16 %v693
      %v790 = vunpack.c.l.b16 %v694
      %v791 = vunpack.c.l.b16 %v695
      %v792 = vunpack.c.l.b16 %v696
      %v793 = vunpack.c.l.b16 %v697
      %v794 = vunpack.c.l.b16 %v698
      %v795 = vunpack.c.l.b16 %v699
      %v796 = vunpack.c.l.b16 %v700
      %v797 = vunpack.c.l.b16 %v701
      %v798 = vunpack.c.l.b16 %v702
      %v799 = vunpack.c.l.b16 %v703
      %v800 = vunpack.c.l.b16 %v704
      %v801 = vunpack.c.l.b16 %v705
      %v802 = vunpack.c.l.b16 %v706
      %v803 = vunpack.c.l.b16 %v707
      %v804 = vunpack.c.l.b16 %v708
      %v805 = vunpack.c.l.b16 %v709
      %v806 = vunpack.c.l.b16 %v710
      %v807 = vunpack.c.l.b16 %v711
      %v808 = vunpack.c.l.b16 %v712
      %v809 = vunpack.c.l.b16 %v713
      %v810 = vunpack.c.l.b16 %v714
      %v811 = vunpack.c.l.b16 %v715
      %v812 = vunpack.c.l.b16 %v716
      %v813 = vunpack.c.l.b16 %v717
      %v814 = vunpack.c.l.b16 %v718
      %v815 = vunpack.c.l.b16 %v719
      %v816 = vunpack.c.l.b16 %v720
      %v817 = vunpack.c.l.b16 %v721
      %v818 = vunpack.c.l.b16 %v722
      %v819 = vunpack.c.l.b16 %v723
      %v820 = vunpack.c.l.b16 %v724
      %v821 = vunpack.c.l.b16 %v725
      %v822 = vunpack.c.l.b16 %v726
      %v823 = vunpack.c.l.b16 %v727
      %v824 = vunpack.c.l.b16 %v728
      %v825 = vpack.c.b16 %v778, %v777
      %v826 = vpack.c.b16 %v780, %v779
      %v827 = vpack.c.b16 %v782, %v781
      %v828 = vpack.c.b16 %v784, %v783
      %v829 = vpack.c.b16 %v786, %v785
      %v830 = vpack.c.b16 %v788, %v787
      %v831 = vpack.c.b16 %v790, %v789
      %v832 = vpack.c.b16 %v792, %v791
      %v833 = vpack.c.b16 %v794, %v793
      %v834 = vpack.c.b16 %v796, %v795
      %v835 = vpack.c.b16 %v798, %v797
      %v836 = vpack.c.b16 %v800, %v799
      %v837 = vpack.c.b16 %v802, %v801
      %v838 = vpack.c.b16 %v804, %v803
      %v839 = vpack.c.b16 %v806, %v805
      %v840 = vpack.c.b16 %v808, %v807
      %v841 = vpack.c.b16 %v810, %v809
      %v842 = vpack.c.b16 %v812, %v811
      %v843 = vpack.c.b16 %v814, %v813
      %v844 = vpack.c.b16 %v816, %v815
      %v845 = vpack.c.b16 %v818, %v817
      %v846 = vpack.c.b16 %v820, %v819
      %v847 = vpack.c.b16 %v822, %v821
      %v848 = vpack.c.b16 %v824, %v823
      %873 = vmatprep.subr.bf16.mxu0 0
      %874 = vmatpush1.bf16.msra.mxu0 %v825
      %875 = vmatprep.subr.bf16.mxu0 0
      %876 = vmatpush1.bf16.msra.mxu0 %v826
      %877 = vmatprep.subr.bf16.mxu0 0
      %878 = vmatpush1.bf16.msra.mxu0 %v827
      %879 = vmatprep.subr.bf16.mxu0 0
      %880 = vmatpush1.bf16.msra.mxu0 %v828
      %881 = vmatprep.subr.bf16.mxu0 0
      %882 = vmatpush1.bf16.msra.mxu0 %v829
      %883 = vmatprep.subr.bf16.mxu0 0
      %884 = vmatpush1.bf16.msra.mxu0 %v830
      %885 = vmatprep.subr.bf16.mxu0 0
      %886 = vmatpush1.bf16.msra.mxu0 %v831
      %887 = vmatprep.subr.bf16.mxu0 0
      %888 = vmatpush1.bf16.msra.mxu0 %v832
      %889 = vmatprep.subr.bf16.mxu0 0
      %890 = vmatpush1.bf16.msra.mxu0 %v833
      %891 = vmatprep.subr.bf16.mxu0 0
      %892 = vmatpush1.bf16.msra.mxu0 %v834
      %893 = vmatprep.subr.bf16.mxu0 0
      %894 = vmatpush1.bf16.msra.mxu0 %v835
      %895 = vmatprep.subr.bf16.mxu0 0
      %896 = vmatpush1.bf16.msra.mxu0 %v836
      %897 = vmatprep.subr.bf16.mxu0 0
      %898 = vmatpush1.bf16.msra.mxu0 %v837
      %899 = vmatprep.subr.bf16.mxu0 0
      %900 = vmatpush1.bf16.msra.mxu0 %v838
      %901 = vmatprep.subr.bf16.mxu0 0
      %902 = vmatpush1.bf16.msra.mxu0 %v839
      %903 = vmatprep.subr.bf16.mxu0 0
      %904 = vmatpush1.bf16.msra.mxu0 %v840
      %905 = vmatprep.mubr.bf16.mxu0 %v673
      %906 = vmatmul.mubr.bf16.gmra.mrb[0].mxu0 %v667
      %v907 = vpop.f32.mrb[0].mxu0
      %v908 = vadd.f32 0.0, %v907
      %v909 = vpop.f32.mrb[0].mxu0
      %v910 = vpop.f32.mrb[0].mxu0
      %v911 = vadd.f32 0.0, %v910
      %v912 = vpop.f32.mrb[0].mxu0
      %913 = vmatprep.mubr.bf16.mxu0 %v674
      %914 = vmatmul.mubr.bf16.gmra.mrb[0].mxu0 %v668
      %v915 = vpop.f32.mrb[0].mxu0
      %v916 = vadd.f32 0.0, %v915
      %v917 = vpop.f32.mrb[0].mxu0
      %v918 = vpop.f32.mrb[0].mxu0
      %v919 = vadd.f32 0.0, %v918
      %v920 = vpop.f32.mrb[0].mxu0
      %921 = vdwg.mxu0
      %922 = vmatprep.subr.bf16.mxu0 0
      %923 = vmatpush1.bf16.msra.mxu0 %v841
      %924 = vmatprep.subr.bf16.mxu0 0
      %925 = vmatpush1.bf16.msra.mxu0 %v842
      %926 = vmatprep.subr.bf16.mxu0 0
      %927 = vmatpush1.bf16.msra.mxu0 %v843
      %928 = vmatprep.subr.bf16.mxu0 0
      %929 = vmatpush1.bf16.msra.mxu0 %v844
      %930 = vmatprep.subr.bf16.mxu0 0
      %931 = vmatpush1.bf16.msra.mxu0 %v845
      %932 = vmatprep.subr.bf16.mxu0 0
      %933 = vmatpush1.bf16.msra.mxu0 %v846
      %934 = vmatprep.subr.bf16.mxu0 0
      %935 = vmatpush1.bf16.msra.mxu0 %v847
      %936 = vmatprep.subr.bf16.mxu0 0
      %937 = vmatpush1.bf16.msra.mxu0 %v848
      %938 = vmatprep.subr.bf16.mxu0 0
      %939 = vmatpush1.bf16.msra.mxu0 0
      %940 = vmatprep.subr.bf16.mxu0 0
      %941 = vmatpush1.bf16.msra.mxu0 0
      %942 = vmatprep.subr.bf16.mxu0 0
      %943 = vmatpush1.bf16.msra.mxu0 0
      %944 = vmatprep.subr.bf16.mxu0 0
      %945 = vmatpush1.bf16.msra.mxu0 0
      %946 = vmatprep.subr.bf16.mxu0 0
      %947 = vmatpush1.bf16.msra.mxu0 0
      %948 = vmatprep.subr.bf16.mxu0 0
      %949 = vmatpush1.bf16.msra.mxu0 0
      %950 = vmatprep.subr.bf16.mxu0 0
      %951 = vmatpush1.bf16.msra.mxu0 0
      %952 = vmatprep.subr.bf16.mxu0 0
      %953 = vmatpush1.bf16.msra.mxu0 0
      %954 = vmatprep.mubr.bf16.mxu0 0
      %955 = vmatmul.mubr.bf16.gmra.mrb[0].mxu0 %v679
      %v956 = vpop.f32.mrb[0].mxu0
      %v957 = vadd.f32 %v908, %v956
      %v958 = vpop.f32.mrb[0].mxu0
      %v959 = vpop.f32.mrb[0].mxu0
      %v960 = vadd.f32 %v911, %v959
      %v961 = vpop.f32.mrb[0].mxu0
      %962 = vmatprep.mubr.bf16.mxu0 0
      %963 = vmatmul.mubr.bf16.gmra.mrb[0].mxu0 %v680
      %v964 = vpop.f32.mrb[0].mxu0
      %v965 = vadd.f32 %v916, %v964
      %v966 = vpop.f32.mrb[0].mxu0
      %v967 = vpop.f32.mrb[0].mxu0
      %v968 = vadd.f32 %v919, %v967
      %v969 = vpop.f32.mrb[0].mxu0
      %970 = vdwg.mxu0
      %v971 = vld [vmem:[%s6] sm:$0x1]
      %v973 = vlaneseq
      %v974 = vshrl.u32 %v973, 7
      %v975 = vsub.s32 0, %v974
      %v976 = vrot.slane %v971, %v975
      %v978 = vadd.f32 %v957, %v976
      %v979 = vadd.f32 %v960, %v976
      %v980 = vadd.f32 %v965, %v976
      %v981 = vadd.f32 %v968, %v976
      %v982 = vadd.f32 %v978, %v979
      %v983 = vadd.f32 %v982, %v980
      %v984 = vadd.f32 %v983, %v981
      %v985 = vrot.slane %v984, 4
      %v986 = vadd.f32 %v984, %v985
      %v987 = vrot.slane %v986, 2
      %v988 = vadd.f32 %v986, %v987
      %v989 = vrot.slane %v988, 1
      %v990 = vadd.f32 %v988, %v989
      %v991 = vmul.f32 %v990, 0.03125
      %v992 = vsub.f32 %v978, %v991
      %v993 = vsub.f32 %v979, %v991
      %v994 = vsub.f32 %v980, %v991
      %v995 = vsub.f32 %v981, %v991
      %v996 = vmul.f32 %v992, %v992
      %v997 = vmul.f32 %v993, %v993
      %v998 = vmul.f32 %v994, %v994
      %v999 = vmul.f32 %v995, %v995
      %v1000 = vadd.f32 %v996, %v997
      %v1001 = vadd.f32 %v1000, %v998
      %v1002 = vadd.f32 %v1001, %v999
      %v1003 = vrot.slane %v1002, 4
      %v1004 = vadd.f32 %v1002, %v1003
      %v1005 = vrot.slane %v1004, 2
      %v1006 = vadd.f32 %v1004, %v1005
      %v1007 = vrot.slane %v1006, 1
      %v1008 = vadd.f32 %v1006, %v1007
      %vm1009 = vcmask 1040384
      %v1010 = vsel %vm1009, %v990, %v1008
      %1011 = vst [vmem:[%s281] sm:$0x3] %v1010
      %p1012 = scmp.lt.s32.totalorder %s18, 1
      %s1013 = scalar_select %p1012, %s18, 1
      %s1014 = smul.addr %s1013, 2
      %s1015 = scalar_lea.vmem %s7, %s1014
      // Predicated region
      $region57: #{residual_block_disc.4} parent=47 // pred_check
        %p1016 = pneg %p188
      $region58: #{residual_block_disc.4} parent=47 // pred_check_branch
        %1018 = sbr.rel (%p1016) target = $region60
      $region59: #{residual_block_disc.4} parent=47 // pred_region
        _
      $region60: #{residual_block_disc.4} parent=47 // pred_fallthru
        _
    $region48: #{residual_block_disc.4} parent=5 // pred_fallthru
      _
    %p1019 = scmp.le.s32.totalorder 2, %s13
    // Predicated region
    $region61: #{residual_block_disc.4} parent=5 // pred_check
      %p1020 = pneg %p1019
    $region62: #{residual_block_disc.4} parent=5 // pred_check_branch
      %1022 = sbr.rel (%p1020) target = $region64
    $region63: #{residual_block_disc.4} parent=5 // pred_region
      %s1023 = ssub.s32 %s13, 2
      // Predicated region
      $region65: #{residual_block_disc.4} parent=63 // pred_check
        %p1024 = pneg %p194
      $region66: #{residual_block_disc.4} parent=63 // pred_check_branch
        %1026 = sbr.rel (%p1024) target = $region68
      $region67: #{residual_block_disc.4} parent=63 // pred_region
        %p1027 = scmp.lt.s32.totalorder %s19, 1
        %s1028 = scalar_select %p1027, %s19, 1
        %s1029 = smul.addr %s1028, 2
        %s1030 = scalar_lea.vmem %s7, %s1029
      $region68: #{residual_block_disc.4} parent=63 // pred_fallthru
        _
    $region64: #{residual_block_disc.4} parent=5 // pred_fallthru
      _
  $region6: #{residual_block_disc.4} parent=0 // loop_footer
    %s17 = sadd.s32 1, %s13
  $region7: #{residual_block_disc.4} parent=0 // loop_footer_branch
    %12 = sbr.rel target = $region3
  $region8: #{residual_block_disc.4} parent=0 // loop_exit
    _

// kernel: residual_block_disc.5
$region0: #{residual_block_disc.5}
  #allocation0 [shape = 'u32[]', space=smem, size = 0x4, offset = 0x4, fixed_abs, tag = 'smem constant byte address 0x4 - core index']
  #allocation1 [shape = 'u32[144,128]{1,0:T(1,128)}', space=vmem, size = 0x12000, scoped, tag = 'internal scratch']
  #allocation2 [shape = 'f32[2,32,128]{2,1,0:T(8,128)}', space=vmem, size = 0x8000, scoped, tag = 'scratch operand']
  #allocation3 [shape = 'f32[2,32,128]{2,1,0:T(8,128)}', space=vmem, size = 0x8000, scoped, tag = 'scratch operand']
  %s0 = inlined_call_operand.vmem [shape: f32[4,16,128], index: 0, kind: input, shape index: {}]
  %s1 = inlined_call_operand.vmem [shape: bf16[384,128], index: 1, kind: input, shape index: {}]
  %s2 = inlined_call_operand.vmem [shape: f32[1,128], index: 2, kind: input, shape index: {}]
  %s3 = inlined_call_operand.vmem [shape: f32[1,128], index: 3, kind: input, shape index: {}]
  %s4 = inlined_call_operand.vmem [shape: f32[1,128], index: 4, kind: input, shape index: {}]
  %s5 = inlined_call_operand.vmem [shape: bf16[384,128], index: 5, kind: input, shape index: {}]
  %s6 = inlined_call_operand.vmem [shape: f32[1,128], index: 6, kind: input, shape index: {}]
  %s7 = inlined_call_operand.vmem [shape: f32[1,128], index: 7, kind: input, shape index: {}]
  %s8 = inlined_call_operand.vmem [shape: f32[1,128], index: 8, kind: input, shape index: {}]
  %s9 = inlined_call_operand.vmem [shape: bf16[128,128], index: 9, kind: input, shape index: {}]
  %s10 = inlined_call_operand.vmem [shape: f32[1,128], index: 10, kind: input, shape index: {}]
  %s11 = inlined_call_operand.vmem [shape: f32[4,16,128], index: 11, kind: output, shape index: {}]
  %s12 = sld [smem:[#allocation0]]
  $region85: #{residual_block_disc.5} parent=0
    _
  %s14 = ssub.s32 1, %s12
  %s15 = scalar_select 0, %s14, %s12
  loop: start=0, step=1, limit=4
  $region2: #{residual_block_disc.5} parent=0 // loop_pre_header
    _
  $region3: #{residual_block_disc.5} parent=0 // loop_header
    %s17 = sphi 0, %s21
    %p18 = scmp.ge.s32.totalorder %s17, 4
    %s27 = sphi 0, %s29
    %s30 = sphi 0, %s27
    %s31 = sphi 0, %s30
    %s47 = sphi 0, %s31
    %s51 = sphi 0, %s51
    %s53 = sphi 0, %s51
    %s54 = sphi 0, %s53
    %s68 = sphi 0, %s54
    %s72 = sphi 0, %s72
    %s74 = sphi 0, %s72
    %s75 = sphi 0, %s74
    %s89 = sphi 0, %s75
    %s93 = sphi 0, %s93
    %s95 = sphi 0, %s93
    %s96 = sphi 0, %s95
    %s110 = sphi 0, %s96
    %s114 = sphi 0, %s114
    %s116 = sphi 0, %s114
    %s117 = sphi 0, %s116
    %s131 = sphi 0, %s117
    %s135 = sphi 0, %s135
    %s137 = sphi 0, %s135
    %s138 = sphi 0, %s137
    %s152 = sphi 0, %s138
    %s156 = sphi 0, %s156
    %s158 = sphi 0, %s156
    %s159 = sphi 0, %s158
    %s173 = sphi 0, %s159
    %s177 = sphi 0, %s177
    %s179 = sphi 0, %s177
    %s180 = sphi 0, %s179
    %s194 = sphi 0, %s180
    %s198 = sphi 0, %s198
    %s200 = sphi 0, %s198
    %s201 = sphi 0, %s200
    %s215 = sphi 0, %s201
    %s219 = sphi 0, %s219
    %s221 = sphi 0, %s219
    %s222 = sphi 0, %s221
    %s236 = sphi 0, %s222
    %s240 = sphi 0, %s240
    %s242 = sphi 0, %s240
    %s243 = sphi 0, %s242
    %s257 = sphi 0, %s243
    %s263 = sphi 0, %s265
    %s266 = sphi 0, %s263
    %s267 = sphi 0, %s266
    %s283 = sphi 0, %s267
  $region4: #{residual_block_disc.5} parent=0 // loop_header_branch
    %20 = sbr.rel (%p18) target = $region8
  $region5: #{residual_block_disc.5} parent=0 // loop_body
    %s22 = ssub.s32 %s17, 1
    %s23 = ssub.s32 %s17, 2
    %s24 = sadd.s32 %s17, 1
    %s25 = ssub.s32 %s17, %s24
    %p26 = scmp.eq.s32.totalorder %s25, 0
    %s28 = sadd.s32 %s27, 1
    %s29 = scalar_select %p26, %s27, %s28
    %p32 = pneg %p26
    %p33 = scmp.eq.s32.totalorder %s17, 1
    %p34 = por %p32, %p33
    %p35 = scmp.ne.s32.totalorder %s27, %s30
    %p36 = scmp.eq.s32.totalorder %s17, 0
    %p37 = por %p35, %p36
    %p38 = scmp.ne.s32.totalorder %s27, %s30
    %p39 = scmp.eq.s32.totalorder %s22, 1
    %p40 = por %p38, %p39
    %p41 = scmp.ne.s32.totalorder %s30, %s31
    %p42 = scmp.eq.s32.totalorder %s22, 0
    %p43 = por %p41, %p42
    %p44 = scmp.ne.s32.totalorder %s30, %s31
    %p45 = scmp.eq.s32.totalorder %s23, 1
    %p46 = por %p44, %p45
    %p48 = scmp.ne.s32.totalorder %s31, %s47
    %p49 = scmp.eq.s32.totalorder %s23, 0
    %p50 = por %p48, %p49
    %s52 = sadd.s32 %s51, 1
    %p55 = scmp.eq.s32.totalorder %s17, 1
    %p56 = scmp.ne.s32.totalorder %s51, %s53
    %p57 = scmp.eq.s32.totalorder %s17, 0
    %p58 = por %p56, %p57
    %p59 = scmp.ne.s32.totalorder %s51, %s53
    %p60 = scmp.eq.s32.totalorder %s22, 1
    %p61 = por %p59, %p60
    %p62 = scmp.ne.s32.totalorder %s53, %s54
    %p63 = scmp.eq.s32.totalorder %s22, 0
    %p64 = por %p62, %p63
    %p65 = scmp.ne.s32.totalorder %s53, %s54
    %p66 = scmp.eq.s32.totalorder %s23, 1
    %p67 = por %p65, %p66
    %p69 = scmp.ne.s32.totalorder %s54, %s68
    %p70 = scmp.eq.s32.totalorder %s23, 0
    %p71 = por %p69, %p70
    %s73 = sadd.s32 %s72, 1
    %p76 = scmp.eq.s32.totalorder %s17, 1
    %p77 = scmp.ne.s32.totalorder %s72, %s74
    %p78 = scmp.eq.s32.totalorder %s17, 0
    %p79 = por %p77, %p78
    %p80 = scmp.ne.s32.totalorder %s72, %s74
    %p81 = scmp.eq.s32.totalorder %s22, 1
    %p82 = por %p80, %p81
    %p83 = scmp.ne.s32.totalorder %s74, %s75
    %p84 = scmp.eq.s32.totalorder %s22, 0
    %p85 = por %p83, %p84
    %p86 = scmp.ne.s32.totalorder %s74, %s75
    %p87 = scmp.eq.s32.totalorder %s23, 1
    %p88 = por %p86, %p87
    %p90 = scmp.ne.s32.totalorder %s75, %s89
    %p91 = scmp.eq.s32.totalorder %s23, 0
    %p92 = por %p90, %p91
    %s94 = sadd.s32 %s93, 1
    %p97 = scmp.eq.s32.totalorder %s17, 1
    %p98 = scmp.ne.s32.totalorder %s93, %s95
    %p99 = scmp.eq.s32.totalorder %s17, 0
    %p100 = por %p98, %p99
    %p101 = scmp.ne.s32.totalorder %s93, %s95
    %p102 = scmp.eq.s32.totalorder %s22, 1
    %p103 = por %p101, %p102
    %p104 = scmp.ne.s32.totalorder %s95, %s96
    %p105 = scmp.eq.s32.totalorder %s22, 0
    %p106 = por %p104, %p105
    %p107 = scmp.ne.s32.totalorder %s95, %s96
    %p108 = scmp.eq.s32.totalorder %s23, 1
    %p109 = por %p107, %p108
    %p111 = scmp.ne.s32.totalorder %s96, %s110
    %p112 = scmp.eq.s32.totalorder %s23, 0
    %p113 = por %p111, %p112
    %s115 = sadd.s32 %s114, 1
    %p118 = scmp.eq.s32.totalorder %s17, 1
    %p119 = scmp.ne.s32.totalorder %s114, %s116
    %p120 = scmp.eq.s32.totalorder %s17, 0
    %p121 = por %p119, %p120
    %p122 = scmp.ne.s32.totalorder %s114, %s116
    %p123 = scmp.eq.s32.totalorder %s22, 1
    %p124 = por %p122, %p123
    %p125 = scmp.ne.s32.totalorder %s116, %s117
    %p126 = scmp.eq.s32.totalorder %s22, 0
    %p127 = por %p125, %p126
    %p128 = scmp.ne.s32.totalorder %s116, %s117
    %p129 = scmp.eq.s32.totalorder %s23, 1
    %p130 = por %p128, %p129
    %p132 = scmp.ne.s32.totalorder %s117, %s131
    %p133 = scmp.eq.s32.totalorder %s23, 0
    %p134 = por %p132, %p133
    %s136 = sadd.s32 %s135, 1
    %p139 = scmp.eq.s32.totalorder %s17, 1
    %p140 = scmp.ne.s32.totalorder %s135, %s137
    %p141 = scmp.eq.s32.totalorder %s17, 0
    %p142 = por %p140, %p141
    %p143 = scmp.ne.s32.totalorder %s135, %s137
    %p144 = scmp.eq.s32.totalorder %s22, 1
    %p145 = por %p143, %p144
    %p146 = scmp.ne.s32.totalorder %s137, %s138
    %p147 = scmp.eq.s32.totalorder %s22, 0
    %p148 = por %p146, %p147
    %p149 = scmp.ne.s32.totalorder %s137, %s138
    %p150 = scmp.eq.s32.totalorder %s23, 1
    %p151 = por %p149, %p150
    %p153 = scmp.ne.s32.totalorder %s138, %s152
    %p154 = scmp.eq.s32.totalorder %s23, 0
    %p155 = por %p153, %p154
    %s157 = sadd.s32 %s156, 1
    %p160 = scmp.eq.s32.totalorder %s17, 1
    %p161 = scmp.ne.s32.totalorder %s156, %s158
    %p162 = scmp.eq.s32.totalorder %s17, 0
    %p163 = por %p161, %p162
    %p164 = scmp.ne.s32.totalorder %s156, %s158
    %p165 = scmp.eq.s32.totalorder %s22, 1
    %p166 = por %p164, %p165
    %p167 = scmp.ne.s32.totalorder %s158, %s159
    %p168 = scmp.eq.s32.totalorder %s22, 0
    %p169 = por %p167, %p168
    %p170 = scmp.ne.s32.totalorder %s158, %s159
    %p171 = scmp.eq.s32.totalorder %s23, 1
    %p172 = por %p170, %p171
    %p174 = scmp.ne.s32.totalorder %s159, %s173
    %p175 = scmp.eq.s32.totalorder %s23, 0
    %p176 = por %p174, %p175
    %s178 = sadd.s32 %s177, 1
    %p181 = scmp.eq.s32.totalorder %s17, 1
    %p182 = scmp.ne.s32.totalorder %s177, %s179
    %p183 = scmp.eq.s32.totalorder %s17, 0
    %p184 = por %p182, %p183
    %p185 = scmp.ne.s32.totalorder %s177, %s179
    %p186 = scmp.eq.s32.totalorder %s22, 1
    %p187 = por %p185, %p186
    %p188 = scmp.ne.s32.totalorder %s179, %s180
    %p189 = scmp.eq.s32.totalorder %s22, 0
    %p190 = por %p188, %p189
    %p191 = scmp.ne.s32.totalorder %s179, %s180
    %p192 = scmp.eq.s32.totalorder %s23, 1
    %p193 = por %p191, %p192
    %p195 = scmp.ne.s32.totalorder %s180, %s194
    %p196 = scmp.eq.s32.totalorder %s23, 0
    %p197 = por %p195, %p196
    %s199 = sadd.s32 %s198, 1
    %p202 = scmp.eq.s32.totalorder %s17, 1
    %p203 = scmp.ne.s32.totalorder %s198, %s200
    %p204 = scmp.eq.s32.totalorder %s17, 0
    %p205 = por %p203, %p204
    %p206 = scmp.ne.s32.totalorder %s198, %s200
    %p207 = scmp.eq.s32.totalorder %s22, 1
    %p208 = por %p206, %p207
    %p209 = scmp.ne.s32.totalorder %s200, %s201
    %p210 = scmp.eq.s32.totalorder %s22, 0
    %p211 = por %p209, %p210
    %p212 = scmp.ne.s32.totalorder %s200, %s201
    %p213 = scmp.eq.s32.totalorder %s23, 1
    %p214 = por %p212, %p213
    %p216 = scmp.ne.s32.totalorder %s201, %s215
    %p217 = scmp.eq.s32.totalorder %s23, 0
    %p218 = por %p216, %p217
    %s220 = sadd.s32 %s219, 1
    %p223 = scmp.eq.s32.totalorder %s17, 1
    %p224 = scmp.ne.s32.totalorder %s219, %s221
    %p225 = scmp.eq.s32.totalorder %s17, 0
    %p226 = por %p224, %p225
    %p227 = scmp.ne.s32.totalorder %s219, %s221
    %p228 = scmp.eq.s32.totalorder %s22, 1
    %p229 = por %p227, %p228
    %p230 = scmp.ne.s32.totalorder %s221, %s222
    %p231 = scmp.eq.s32.totalorder %s22, 0
    %p232 = por %p230, %p231
    %p233 = scmp.ne.s32.totalorder %s221, %s222
    %p234 = scmp.eq.s32.totalorder %s23, 1
    %p235 = por %p233, %p234
    %p237 = scmp.ne.s32.totalorder %s222, %s236
    %p238 = scmp.eq.s32.totalorder %s23, 0
    %p239 = por %p237, %p238
    %s241 = sadd.s32 %s240, 1
    %p244 = scmp.eq.s32.totalorder %s17, 1
    %p245 = scmp.ne.s32.totalorder %s240, %s242
    %p246 = scmp.eq.s32.totalorder %s17, 0
    %p247 = por %p245, %p246
    %p248 = scmp.ne.s32.totalorder %s240, %s242
    %p249 = scmp.eq.s32.totalorder %s22, 1
    %p250 = por %p248, %p249
    %p251 = scmp.ne.s32.totalorder %s242, %s243
    %p252 = scmp.eq.s32.totalorder %s22, 0
    %p253 = por %p251, %p252
    %p254 = scmp.ne.s32.totalorder %s242, %s243
    %p255 = scmp.eq.s32.totalorder %s23, 1
    %p256 = por %p254, %p255
    %p258 = scmp.ne.s32.totalorder %s243, %s257
    %p259 = scmp.eq.s32.totalorder %s23, 0
    %p260 = por %p258, %p259
    %s261 = ssub.s32 %s17, %s24
    %p262 = scmp.eq.s32.totalorder %s261, 0
    %s264 = sadd.s32 %s263, 1
    %s265 = scalar_select %p262, %s263, %s264
    %p268 = pneg %p262
    %p269 = scmp.eq.s32.totalorder %s17, 1
    %p270 = por %p268, %p269
    %p271 = scmp.ne.s32.totalorder %s263, %s266
    %p272 = scmp.eq.s32.totalorder %s17, 0
    %p273 = por %p271, %p272
    %p274 = scmp.ne.s32.totalorder %s263, %s266
    %p275 = scmp.eq.s32.totalorder %s22, 1
    %p276 = por %p274, %p275
    %p277 = scmp.ne.s32.totalorder %s266, %s267
    %p278 = scmp.eq.s32.totalorder %s22, 0
    %p279 = por %p277, %p278
    %p280 = scmp.ne.s32.totalorder %s266, %s267
    %p281 = scmp.eq.s32.totalorder %s23, 1
    %p282 = por %p280, %p281
    %p284 = scmp.ne.s32.totalorder %s267, %s283
    %p285 = scmp.eq.s32.totalorder %s23, 0
    %p286 = por %p284, %p285
    %p287 = scmp.le.s32.totalorder 1, %s17
    %p288 = scmp.lt.s32.totalorder %s17, 3
    %p289 = pnand %p287, %p288
    %p290 = pneg %p289
    // Predicated region
    $region9: #{residual_block_disc.5} parent=5 // pred_check
      _
    $region10: #{residual_block_disc.5} parent=5 // pred_check_branch
      %292 = sbr.rel (%p289) target = $region12
    $region11: #{residual_block_disc.5} parent=5 // pred_region
      %s293 = ssub.s32 %s17, 1
      // Predicated region
      $region13: #{residual_block_disc.5} parent=11 // pred_check
        %p294 = pneg %p64
      $region14: #{residual_block_disc.5} parent=11 // pred_check_branch
        %296 = sbr.rel (%p294) target = $region16
      $region15: #{residual_block_disc.5} parent=11 // pred_region
        _
      $region16: #{residual_block_disc.5} parent=11 // pred_fallthru
        _
      // Predicated region
      $region17: #{residual_block_disc.5} parent=11 // pred_check
        %p297 = pneg %p85
      $region18: #{residual_block_disc.5} parent=11 // pred_check_branch
        %299 = sbr.rel (%p297) target = $region20
      $region19: #{residual_block_disc.5} parent=11 // pred_region
        _
      $region20: #{residual_block_disc.5} parent=11 // pred_fallthru
        _
      // Predicated region
      $region21: #{residual_block_disc.5} parent=11 // pred_check
        %p300 = pneg %p106
      $region22: #{residual_block_disc.5} parent=11 // pred_check_branch
        %302 = sbr.rel (%p300) target = $region24
      $region23: #{residual_block_disc.5} parent=11 // pred_region
        _
      $region24: #{residual_block_disc.5} parent=11 // pred_fallthru
        _
      // Predicated region
      $region25: #{residual_block_disc.5} parent=11 // pred_check
        %p303 = pneg %p127
      $region26: #{residual_block_disc.5} parent=11 // pred_check_branch
        %305 = sbr.rel (%p303) target = $region28
      $region27: #{residual_block_disc.5} parent=11 // pred_region
        _
      $region28: #{residual_block_disc.5} parent=11 // pred_fallthru
        _
      // Predicated region
      $region29: #{residual_block_disc.5} parent=11 // pred_check
        %p306 = pneg %p148
      $region30: #{residual_block_disc.5} parent=11 // pred_check_branch
        %308 = sbr.rel (%p306) target = $region32
      $region31: #{residual_block_disc.5} parent=11 // pred_region
        _
      $region32: #{residual_block_disc.5} parent=11 // pred_fallthru
        _
      // Predicated region
      $region33: #{residual_block_disc.5} parent=11 // pred_check
        %p309 = pneg %p169
      $region34: #{residual_block_disc.5} parent=11 // pred_check_branch
        %311 = sbr.rel (%p309) target = $region36
      $region35: #{residual_block_disc.5} parent=11 // pred_region
        _
      $region36: #{residual_block_disc.5} parent=11 // pred_fallthru
        _
      // Predicated region
      $region37: #{residual_block_disc.5} parent=11 // pred_check
        %p312 = pneg %p190
      $region38: #{residual_block_disc.5} parent=11 // pred_check_branch
        %314 = sbr.rel (%p312) target = $region40
      $region39: #{residual_block_disc.5} parent=11 // pred_region
        _
      $region40: #{residual_block_disc.5} parent=11 // pred_fallthru
        _
      // Predicated region
      $region41: #{residual_block_disc.5} parent=11 // pred_check
        %p315 = pneg %p211
      $region42: #{residual_block_disc.5} parent=11 // pred_check_branch
        %317 = sbr.rel (%p315) target = $region44
      $region43: #{residual_block_disc.5} parent=11 // pred_region
        _
      $region44: #{residual_block_disc.5} parent=11 // pred_fallthru
        _
      // Predicated region
      $region45: #{residual_block_disc.5} parent=11 // pred_check
        %p318 = pneg %p232
      $region46: #{residual_block_disc.5} parent=11 // pred_check_branch
        %320 = sbr.rel (%p318) target = $region48
      $region47: #{residual_block_disc.5} parent=11 // pred_region
        _
      $region48: #{residual_block_disc.5} parent=11 // pred_fallthru
        _
      // Predicated region
      $region49: #{residual_block_disc.5} parent=11 // pred_check
        %p321 = pneg %p253
      $region50: #{residual_block_disc.5} parent=11 // pred_check_branch
        %323 = sbr.rel (%p321) target = $region52
      $region51: #{residual_block_disc.5} parent=11 // pred_region
        _
      $region52: #{residual_block_disc.5} parent=11 // pred_fallthru
        _
    $region12: #{residual_block_disc.5} parent=5 // pred_fallthru
      _
    %p324 = scmp.lt.s32.totalorder %s17, 2
    // Predicated region
    $region53: #{residual_block_disc.5} parent=5 // pred_check
      %p325 = pneg %p324
    $region54: #{residual_block_disc.5} parent=5 // pred_check_branch
      %327 = sbr.rel (%p325) target = $region56
    $region55: #{residual_block_disc.5} parent=5 // pred_region
      // Predicated region
      $region57: #{residual_block_disc.5} parent=55 // pred_check
        %p328 = pneg %p37
      $region58: #{residual_block_disc.5} parent=55 // pred_check_branch
        %330 = sbr.rel (%p328) target = $region60
      $region59: #{residual_block_disc.5} parent=55 // pred_region
        %s331 = smul.u32 2, %s17
        %p332 = scmp.lt.s32.totalorder %s331, 3
        %s333 = scalar_select %p332, %s331, 3
        %s334 = smul.addr %s333, 2
        %s335 = smul.addr %s334, 8
        %s336 = scalar_lea.vmem %s0, %s335
        %s337 = smul.u32 2, %s17
      $region60: #{residual_block_disc.5} parent=55 // pred_fallthru
        _
    $region56: #{residual_block_disc.5} parent=5 // pred_fallthru
      _
    %p338 = scmp.le.s32.totalorder 1, %s17
    %p339 = scmp.lt.s32.totalorder %s17, 3
    %p340 = pnand %p338, %p339
    %p341 = pneg %p340
    // Predicated region
    $region61: #{residual_block_disc.5} parent=5 // pred_check
      _
    $region62: #{residual_block_disc.5} parent=5 // pred_check_branch
      %343 = sbr.rel (%p340) target = $region64
    $region63: #{residual_block_disc.5} parent=5 // pred_region
      %s344 = ssub.s32 %s17, 1
      %s345 = smul.u32 2, %s22
      %p346 = scmp.lt.s32.totalorder %s345, 3
      %s347 = scalar_select %p346, %s345, 3
      %s348 = smul.addr %s347, 2
      %s349 = smul.addr %s348, 8
      %s350 = scalar_lea.vmem %s0, %s349
      %p351 = pneg %p43
      %p352 = pneg %p40
      %p353 = pneg %p64
      %p354 = pneg %p61
      %p355 = pneg %p85
      %p356 = pneg %p82
      %p357 = pneg %p106
      %p358 = pneg %p103
      %p359 = pneg %p127
      %p360 = pneg %p124
      %p361 = pneg %p148
      %p362 = pneg %p145
      %p363 = pneg %p169
      %p364 = pneg %p166
      %p365 = pneg %p190
      %p366 = pneg %p187
      %p367 = pneg %p211
      %p368 = pneg %p208
      %p369 = pneg %p232
      %p370 = pneg %p229
      %p371 = pneg %p253
      %p372 = pneg %p250
      %p373 = pneg %p279
      %p374 = pneg %p276
      %s375 = smul.u32 2, %s22
      %p376 = scmp.lt.s32.totalorder %s375, 3
      %s377 = scalar_select %p376, %s375, 3
      %s378 = smul.addr %s377, 2
      %s379 = smul.addr %s378, 8
      %s380 = scalar_lea.vmem %s11, %s379
      %s381 = smul.u32 2, %s22
      %p382 = scmp.lt.s32.totalorder %s381, 3
      %s383 = scalar_select %p382, %s381, 3
      %s384 = smul.addr %s383, 2
      %s385 = smul.addr %s384, 8
      %s386 = scalar_lea.vmem %s0, %s385
      %s387 = smul.u32 2, %s22
      %s388 = smul.u32 2, %s22
      %p389 = scmp.lt.s32.totalorder %s388, 3
      %s390 = scalar_select %p389, %s388, 3
      %s391 = smul.addr %s390, 2
      %s392 = smul.addr %s391, 8
      %s393 = scalar_lea.vmem %s11, %s392
      %s394 = smul.u32 2, %s22
      %p396 = scmp.eq.s32.totalorder %s22, 0
      %v397 = vld [vmem:[%s386] sm:$0xff]
      %v398 = vld [vmem:[%s386 + $0x8] sm:$0xff]
      %v399 = vld [vmem:[%s386 + $0x10] sm:$0xff]
      %v400 = vld [vmem:[%s386 + $0x18] sm:$0xff]
      // Predicated region
      $region65: #{residual_block_disc.5} parent=63 // pred_check
        %p401 = pneg %p396
      $region66: #{residual_block_disc.5} parent=63 // pred_check_branch
        %403 = sbr.rel (%p401) target = $region68
      $region67: #{residual_block_disc.5} parent=63 // pred_region
        %404 = vst [vmem:[#allocation2 + $0x7] sm:$0x1] 0.0
        %405 = vst [vmem:[#allocation2 + $0x27] sm:$0x1] 0.0
        %406 = vst [vmem:[#allocation2 + $0x18] sm:$0x1] 0.0
        %407 = vst [vmem:[#allocation2 + $0x38] sm:$0x1] 0.0
      $region68: #{residual_block_disc.5} parent=63 // pred_fallthru
        _
      %408 = vst [vmem:[#allocation2 + $0x8] sm:$0xff] %v397
      %409 = vst [vmem:[#allocation2 + $0x10] sm:$0xff] %v398
      %410 = vst [vmem:[#allocation2 + $0x28] sm:$0xff] %v399
      %411 = vst [vmem:[#allocation2 + $0x30] sm:$0xff] %v400
      %v412 = vld [vmem:[#allocation2 + $0x7] sm:$0xff]
      %v413 = vld [vmem:[#allocation2 + $0xf] sm:$0xff]
      %v414 = vld [vmem:[#allocation2 + $0x27] sm:$0xff]
      %v415 = vld [vmem:[#allocation2 + $0x2f] sm:$0xff]
      %v416 = vpack.c.bf16 %v413, %v412
      %v417 = vpack.c.bf16 %v415, %v414
      %v418 = vld [vmem:[#allocation2 + $0x8] sm:$0xff]
      %v419 = vld [vmem:[#allocation2 + $0x10] sm:$0xff]
      %v420 = vld [vmem:[#allocation2 + $0x28] sm:$0xff]
      %v421 = vld [vmem:[#allocation2 + $0x30] sm:$0xff]
      %v422 = vpack.c.bf16 %v419, %v418
      %v423 = vpack.c.bf16 %v421, %v420
      %v424 = vld [vmem:[#allocation2 + $0x9] sm:$0xff]
      %v425 = vld [vmem:[#allocation2 + $0x11] sm:$0xff]
      %v426 = vld [vmem:[#allocation2 + $0x29] sm:$0xff]
      %v427 = vld [vmem:[#allocation2 + $0x31] sm:$0xff]
      %v428 = vpack.c.bf16 %v425, %v424
      %v429 = vpack.c.bf16 %v427, %v426
      %v430 = vld [vmem:[%s1] sm:$0xf]
      %v431 = vld [vmem:[%s1 + $0x4] sm:$0xf]
      %v432 = vld [vmem:[%s1 + $0x8] sm:$0xf]
      %v433 = vld [vmem:[%s1 + $0xc] sm:$0xf]
      %v434 = vld [vmem:[%s1 + $0x10] sm:$0xf]
      %v435 = vld [vmem:[%s1 + $0x14] sm:$0xf]
      %v436 = vld [vmem:[%s1 + $0x18] sm:$0xf]
      %v437 = vld [vmem:[%s1 + $0x1c] sm:$0xf]
      %v438 = vld [vmem:[%s1 + $0x20] sm:$0xf]
      %v439 = vld [vmem:[%s1 + $0x24] sm:$0xf]
      %v440 = vld [vmem:[%s1 + $0x28] sm:$0xf]
      %v441 = vld [vmem:[%s1 + $0x2c] sm:$0xf]
      %v442 = vld [vmem:[%s1 + $0x30] sm:$0xf]
      %v443 = vld [vmem:[%s1 + $0x34] sm:$0xf]
      %v444 = vld [vmem:[%s1 + $0x38] sm:$0xf]
      %v445 = vld [vmem:[%s1 + $0x3c] sm:$0xf]
      %v446 = vld [vmem:[%s1 + $0x40] sm:$0xf]
      %v447 = vld [vmem:[%s1 + $0x44] sm:$0xf]
      %v448 = vld [vmem:[%s1 + $0x48] sm:$0xf]
      %v449 = vld [vmem:[%s1 + $0x4c] sm:$0xf]
      %v450 = vld [vmem:[%s1 + $0x50] sm:$0xf]
      %v451 = vld [vmem:[%s1 + $0x54] sm:$0xf]
      %v452 = vld [vmem:[%s1 + $0x58] sm:$0xf]
      %v453 = vld [vmem:[%s1 + $0x5c] sm:$0xf]
      %v454 = vld [vmem:[%s1 + $0x60] sm:$0xf]
      %v455 = vld [vmem:[%s1 + $0x64] sm:$0xf]
      %v456 = vld [vmem:[%s1 + $0x68] sm:$0xf]
      %v457 = vld [vmem:[%s1 + $0x6c] sm:$0xf]
      %v458 = vld [vmem:[%s1 + $0x70] sm:$0xf]
      %v459 = vld [vmem:[%s1 + $0x74] sm:$0xf]
      %v460 = vld [vmem:[%s1 + $0x78] sm:$0xf]
      %v461 = vld [vmem:[%s1 + $0x7c] sm:$0xf]
      %v462 = vld [vmem:[%s1 + $0x80] sm:$0xf]
      %v463 = vld [vmem:[%s1 + $0x84] sm:$0xf]
      %v464 = vld [vmem:[%s1 + $0x88] sm:$0xf]
      %v465 = vld [vmem:[%s1 + $0x8c] sm:$0xf]
      %v466 = vld [vmem:[%s1 + $0x90] sm:$0xf]
      %v467 = vld [vmem:[%s1 + $0x94] sm:$0xf]
      %v468 = vld [vmem:[%s1 + $0x98] sm:$0xf]
      %v469 = vld [vmem:[%s1 + $0x9c] sm:$0xf]
      %v470 = vld [vmem:[%s1 + $0xa0] sm:$0xf]
      %v471 = vld [vmem:[%s1 + $0xa4] sm:$0xf]
      %v472 = vld [vmem:[%s1 + $0xa8] sm:$0xf]
      %v473 = vld [vmem:[%s1 + $0xac] sm:$0xf]
      %v474 = vld [vmem:[%s1 + $0xb0] sm:$0xf]
      %v475 = vld [vmem:[%s1 + $0xb4] sm:$0xf]
      %v476 = vld [vmem:[%s1 + $0xb8] sm:$0xf]
      %v477 = vld [vmem:[%s1 + $0xbc] sm:$0xf]
      %v526 = vunpack.c.l.b16 %v430
      %v527 = vunpack.c.l.b16 %v431
      %v528 = vunpack.c.l.b16 %v432
      %v529 = vunpack.c.l.b16 %v433
      %v530 = vunpack.c.l.b16 %v434
      %v531 = vunpack.c.l.b16 %v435
      %v532 = vunpack.c.l.b16 %v436
      %v533 = vunpack.c.l.b16 %v437
      %v534 = vunpack.c.l.b16 %v438
      %v535 = vunpack.c.l.b16 %v439
      %v536 = vunpack.c.l.b16 %v440
      %v537 = vunpack.c.l.b16 %v441
      %v538 = vunpack.c.l.b16 %v442
      %v539 = vunpack.c.l.b16 %v443
      %v540 = vunpack.c.l.b16 %v444
      %v541 = vunpack.c.l.b16 %v445
      %v542 = vunpack.c.l.b16 %v446
      %v543 = vunpack.c.l.b16 %v447
      %v544 = vunpack.c.l.b16 %v448
      %v545 = vunpack.c.l.b16 %v449
      %v546 = vunpack.c.l.b16 %v450
      %v547 = vunpack.c.l.b16 %v451
      %v548 = vunpack.c.l.b16 %v452
      %v549 = vunpack.c.l.b16 %v453
      %v550 = vunpack.c.l.b16 %v454
      %v551 = vunpack.c.l.b16 %v455
      %v552 = vunpack.c.l.b16 %v456
      %v553 = vunpack.c.l.b16 %v457
      %v554 = vunpack.c.l.b16 %v458
      %v555 = vunpack.c.l.b16 %v459
      %v556 = vunpack.c.l.b16 %v460
      %v557 = vunpack.c.l.b16 %v461
      %v558 = vunpack.c.l.b16 %v462
      %v559 = vunpack.c.l.b16 %v463
      %v560 = vunpack.c.l.b16 %v464
      %v561 = vunpack.c.l.b16 %v465
      %v562 = vunpack.c.l.b16 %v466
      %v563 = vunpack.c.l.b16 %v467
      %v564 = vunpack.c.l.b16 %v468
      %v565 = vunpack.c.l.b16 %v469
      %v566 = vunpack.c.l.b16 %v470
      %v567 = vunpack.c.l.b16 %v471
      %v568 = vunpack.c.l.b16 %v472
      %v569 = vunpack.c.l.b16 %v473
      %v570 = vunpack.c.l.b16 %v474
      %v571 = vunpack.c.l.b16 %v475
      %v572 = vunpack.c.l.b16 %v476
      %v573 = vunpack.c.l.b16 %v477
      %v574 = vpack.c.b16 %v527, %v526
      %v575 = vpack.c.b16 %v529, %v528
      %v576 = vpack.c.b16 %v531, %v530
      %v577 = vpack.c.b16 %v533, %v532
      %v578 = vpack.c.b16 %v535, %v534
      %v579 = vpack.c.b16 %v537, %v536
      %v580 = vpack.c.b16 %v539, %v538
      %v581 = vpack.c.b16 %v541, %v540
      %v582 = vpack.c.b16 %v543, %v542
      %v583 = vpack.c.b16 %v545, %v544
      %v584 = vpack.c.b16 %v547, %v546
      %v585 = vpack.c.b16 %v549, %v548
      %v586 = vpack.c.b16 %v551, %v550
      %v587 = vpack.c.b16 %v553, %v552
      %v588 = vpack.c.b16 %v555, %v554
      %v589 = vpack.c.b16 %v557, %v556
      %v590 = vpack.c.b16 %v559, %v558
      %v591 = vpack.c.b16 %v561, %v560
      %v592 = vpack.c.b16 %v563, %v562
      %v593 = vpack.c.b16 %v565, %v564
      %v594 = vpack.c.b16 %v567, %v566
      %v595 = vpack.c.b16 %v569, %v568
      %v596 = vpack.c.b16 %v571, %v570
      %v597 = vpack.c.b16 %v573, %v572
      %622 = vmatprep.subr.bf16.mxu0 0
      %623 = vmatpush1.bf16.msra.mxu0 %v574
      %624 = vmatprep.subr.bf16.mxu0 0
      %625 = vmatpush1.bf16.msra.mxu0 %v575
      %626 = vmatprep.subr.bf16.mxu0 0
      %627 = vmatpush1.bf16.msra.mxu0 %v576
      %628 = vmatprep.subr.bf16.mxu0 0
      %629 = vmatpush1.bf16.msra.mxu0 %v577
      %630 = vmatprep.subr.bf16.mxu0 0
      %631 = vmatpush1.bf16.msra.mxu0 %v578
      %632 = vmatprep.subr.bf16.mxu0 0
      %633 = vmatpush1.bf16.msra.mxu0 %v579
      %634 = vmatprep.subr.bf16.mxu0 0
      %635 = vmatpush1.bf16.msra.mxu0 %v580
      %636 = vmatprep.subr.bf16.mxu0 0
      %637 = vmatpush1.bf16.msra.mxu0 %v581
      %638 = vmatprep.subr.bf16.mxu0 0
      %639 = vmatpush1.bf16.msra.mxu0 %v582
      %640 = vmatprep.subr.bf16.mxu0 0
      %641 = vmatpush1.bf16.msra.mxu0 %v583
      %642 = vmatprep.subr.bf16.mxu0 0
      %643 = vmatpush1.bf16.msra.mxu0 %v584
      %644 = vmatprep.subr.bf16.mxu0 0
      %645 = vmatpush1.bf16.msra.mxu0 %v585
      %646 = vmatprep.subr.bf16.mxu0 0
      %647 = vmatpush1.bf16.msra.mxu0 %v586
      %648 = vmatprep.subr.bf16.mxu0 0
      %649 = vmatpush1.bf16.msra.mxu0 %v587
      %650 = vmatprep.subr.bf16.mxu0 0
      %651 = vmatpush1.bf16.msra.mxu0 %v588
      %652 = vmatprep.subr.bf16.mxu0 0
      %653 = vmatpush1.bf16.msra.mxu0 %v589
      %654 = vmatprep.mubr.bf16.mxu0 %v422
      %655 = vmatmul.mubr.bf16.gmra.mrb[0].mxu0 %v416
      %v656 = vpop.f32.mrb[0].mxu0
      %v657 = vadd.f32 0.0, %v656
      %v658 = vpop.f32.mrb[0].mxu0
      %v659 = vpop.f32.mrb[0].mxu0
      %v660 = vadd.f32 0.0, %v659
      %v661 = vpop.f32.mrb[0].mxu0
      %662 = vmatprep.mubr.bf16.mxu0 %v423
      %663 = vmatmul.mubr.bf16.gmra.mrb[0].mxu0 %v417
      %v664 = vpop.f32.mrb[0].mxu0
      %v665 = vadd.f32 0.0, %v664
      %v666 = vpop.f32.mrb[0].mxu0
      %v667 = vpop.f32.mrb[0].mxu0
      %v668 = vadd.f32 0.0, %v667
      %v669 = vpop.f32.mrb[0].mxu0
      %670 = vdwg.mxu0
      %671 = vmatprep.subr.bf16.mxu0 0
      %672 = vmatpush1.bf16.msra.mxu0 %v590
      %673 = vmatprep.subr.bf16.mxu0 0
      %674 = vmatpush1.bf16.msra.mxu0 %v591
      %675 = vmatprep.subr.bf16.mxu0 0
      %676 = vmatpush1.bf16.msra.mxu0 %v592
      %677 = vmatprep.subr.bf16.mxu0 0
      %678 = vmatpush1.bf16.msra.mxu0 %v593
      %679 = vmatprep.subr.bf16.mxu0 0
      %680 = vmatpush1.bf16.msra.mxu0 %v594
      %681 = vmatprep.subr.bf16.mxu0 0
      %682 = vmatpush1.bf16.msra.mxu0 %v595
      %683 = vmatprep.subr.bf16.mxu0 0
      %684 = vmatpush1.bf16.msra.mxu0 %v596
      %685 = vmatprep.subr.bf16.mxu0 0
      %686 = vmatpush1.bf16.msra.mxu0 %v597
      %687 = vmatprep.subr.bf16.mxu0 0
      %688 = vmatpush1.bf16.msra.mxu0 0
      %689 = vmatprep.subr.bf16.mxu0 0
      %690 = vmatpush1.bf16.msra.mxu0 0
      %691 = vmatprep.subr.bf16.mxu0 0
      %692 = vmatpush1.bf16.msra.mxu0 0
      %693 = vmatprep.subr.bf16.mxu0 0
      %694 = vmatpush1.bf16.msra.mxu0 0
      %695 = vmatprep.subr.bf16.mxu0 0
      %696 = vmatpush1.bf16.msra.mxu0 0
      %697 = vmatprep.subr.bf16.mxu0 0
      %698 = vmatpush1.bf16.msra.mxu0 0
      %699 = vmatprep.subr.bf16.mxu0 0
      %700 = vmatpush1.bf16.msra.mxu0 0
      %701 = vmatprep.subr.bf16.mxu0 0
      %702 = vmatpush1.bf16.msra.mxu0 0
      %703 = vmatprep.mubr.bf16.mxu0 0
      %704 = vmatmul.mubr.bf16.gmra.mrb[0].mxu0 %v428
      %v705 = vpop.f32.mrb[0].mxu0
      %v706 = vadd.f32 %v657, %v705
      %v707 = vpop.f32.mrb[0].mxu0
      %v708 = vpop.f32.mrb[0].mxu0
      %v709 = vadd.f32 %v660, %v708
      %v710 = vpop.f32.mrb[0].mxu0
      %711 = vmatprep.mubr.bf16.mxu0 0
      %712 = vmatmul.mubr.bf16.gmra.mrb[0].mxu0 %v429
      %v713 = vpop.f32.mrb[0].mxu0
      %v714 = vadd.f32 %v665, %v713
      %v715 = vpop.f32.mrb[0].mxu0
      %v716 = vpop.f32.mrb[0].mxu0
      %v717 = vadd.f32 %v668, %v716
      %v718 = vpop.f32.mrb[0].mxu0
      %719 = vdwg.mxu0
      %v720 = vld [vmem:[%s2] sm:$0x1]
      %v722 = vlaneseq
      %v723 = vshrl.u32 %v722, 7
      %v724 = vsub.s32 0, %v723
      %v725 = vrot.slane %v720, %v724
      %v727 = vadd.f32 %v706, %v725
      %v728 = vadd.f32 %v709, %v725
      %v729 = vadd.f32 %v714, %v725
      %v730 = vadd.f32 %v717, %v725
      %v731 = vld [vmem:[%s3] sm:$0x1]
      %v733 = vlaneseq
      %v734 = vshrl.u32 %v733, 7
      %v735 = vsub.s32 0, %v734
      %v736 = vrot.slane %v731, %v735
      %v738 = vmul.f32 %v727, %v736
      %v739 = vmul.f32 %v728, %v736
      %v740 = vmul.f32 %v729, %v736
      %v741 = vmul.f32 %v730, %v736
      %v742 = vld [vmem:[%s4] sm:$0x1]
      %v744 = vlaneseq
      %v745 = vshrl.u32 %v744, 7
      %v746 = vsub.s32 0, %v745
      %v747 = vrot.slane %v742, %v746
      %v749 = vadd.f32 %v738, %v747
      %v750 = vadd.f32 %v739, %v747
      %v751 = vadd.f32 %v740, %v747
      %v752 = vadd.f32 %v741, %v747
      %vm753 = vcmp.ge.f32.partialorder %v749, 0.0
      %vm754 = vcmp.ge.f32.partialorder %v750, 0.0
      %vm755 = vcmp.ge.f32.partialorder %v751, 0.0
      %vm756 = vcmp.ge.f32.partialorder %v752, 0.0
      %v757 = vmul.f32 %v749, 0.2
      %v758 = vmul.f32 %v750, 0.2
      %v759 = vmul.f32 %v751, 0.2
      %v760 = vmul.f32 %v752, 0.2
      %v761 = vsel %vm753, %v749, %v757
      %v762 = vsel %vm754, %v750, %v758
      %v763 = vsel %vm755, %v751, %v759
      %v764 = vsel %vm756, %v752, %v760
      // Predicated region
      $region69: #{residual_block_disc.5} parent=63 // pred_check
        %p765 = pneg %p396
      $region70: #{residual_block_disc.5} parent=63 // pred_check_branch
        %767 = sbr.rel (%p765) target = $region72
      $region71: #{residual_block_disc.5} parent=63 // pred_region
        %768 = vst [vmem:[#allocation3 + $0x7] sm:$0x1] 0.0
        %769 = vst [vmem:[#allocation3 + $0x27] sm:$0x1] 0.0
        %770 = vst [vmem:[#allocation3 + $0x18] sm:$0x1] 0.0
        %771 = vst [vmem:[#allocation3 + $0x38] sm:$0x1] 0.0
      $region72: #{residual_block_disc.5} parent=63 // pred_fallthru
        _
      %772 = vst [vmem:[#allocation3 + $0x8] sm:$0xff] %v761
      %773 = vst [vmem:[#allocation3 + $0x10] sm:$0xff] %v762
      %774 = vst [vmem:[#allocation3 + $0x28] sm:$0xff] %v763
      %775 = vst [vmem:[#allocation3 + $0x30] sm:$0xff] %v764
      %v776 = vld [vmem:[#allocation3 + $0x7] sm:$0xff]
      %v777 = vld [vmem:[#allocation3 + $0xf] sm:$0xff]
      %v778 = vld [vmem:[#allocation3 + $0x27] sm:$0xff]
      %v779 = vld [vmem:[#allocation3 + $0x2f] sm:$0xff]
      %v780 = vpack.c.bf16 %v777, %v776
      %v781 = vpack.c.bf16 %v779, %v778
      %v782 = vld [vmem:[#allocation3 + $0x8] sm:$0xff]
      %v783 = vld [vmem:[#allocation3 + $0x10] sm:$0xff]
      %v784 = vld [vmem:[#allocation3 + $0x28] sm:$0xff]
      %v785 = vld [vmem:[#allocation3 + $0x30] sm:$0xff]
      %v786 = vpack.c.bf16 %v783, %v782
      %v787 = vpack.c.bf16 %v785, %v784
      %v788 = vld [vmem:[#allocation3 + $0x9] sm:$0xff]
      %v789 = vld [vmem:[#allocation3 + $0x11] sm:$0xff]
      %v790 = vld [vmem:[#allocation3 + $0x29] sm:$0xff]
      %v791 = vld [vmem:[#allocation3 + $0x31] sm:$0xff]
      %v792 = vpack.c.bf16 %v789, %v788
      %v793 = vpack.c.bf16 %v791, %v790
      %v794 = vld [vmem:[%s5] sm:$0xf]
      %v795 = vld [vmem:[%s5 + $0x4] sm:$0xf]
      %v796 = vld [vmem:[%s5 + $0x8] sm:$0xf]
      %v797 = vld [vmem:[%s5 + $0xc] sm:$0xf]
      %v798 = vld [vmem:[%s5 + $0x10] sm:$0xf]
      %v799 = vld [vmem:[%s5 + $0x14] sm:$0xf]
      %v800 = vld [vmem:[%s5 + $0x18] sm:$0xf]
      %v801 = vld [vmem:[%s5 + $0x1c] sm:$0xf]
      %v802 = vld [vmem:[%s5 + $0x20] sm:$0xf]
      %v803 = vld [vmem:[%s5 + $0x24] sm:$0xf]
      %v804 = vld [vmem:[%s5 + $0x28] sm:$0xf]
      %v805 = vld [vmem:[%s5 + $0x2c] sm:$0xf]
      %v806 = vld [vmem:[%s5 + $0x30] sm:$0xf]
      %v807 = vld [vmem:[%s5 + $0x34] sm:$0xf]
      %v808 = vld [vmem:[%s5 + $0x38] sm:$0xf]
      %v809 = vld [vmem:[%s5 + $0x3c] sm:$0xf]
      %v810 = vld [vmem:[%s5 + $0x40] sm:$0xf]
      %v811 = vld [vmem:[%s5 + $0x44] sm:$0xf]
      %v812 = vld [vmem:[%s5 + $0x48] sm:$0xf]
      %v813 = vld [vmem:[%s5 + $0x4c] sm:$0xf]
      %v814 = vld [vmem:[%s5 + $0x50] sm:$0xf]
      %v815 = vld [vmem:[%s5 + $0x54] sm:$0xf]
      %v816 = vld [vmem:[%s5 + $0x58] sm:$0xf]
      %v817 = vld [vmem:[%s5 + $0x5c] sm:$0xf]
      %v818 = vld [vmem:[%s5 + $0x60] sm:$0xf]
      %v819 = vld [vmem:[%s5 + $0x64] sm:$0xf]
      %v820 = vld [vmem:[%s5 + $0x68] sm:$0xf]
      %v821 = vld [vmem:[%s5 + $0x6c] sm:$0xf]
      %v822 = vld [vmem:[%s5 + $0x70] sm:$0xf]
      %v823 = vld [vmem:[%s5 + $0x74] sm:$0xf]
      %v824 = vld [vmem:[%s5 + $0x78] sm:$0xf]
      %v825 = vld [vmem:[%s5 + $0x7c] sm:$0xf]
      %v826 = vld [vmem:[%s5 + $0x80] sm:$0xf]
      %v827 = vld [vmem:[%s5 + $0x84] sm:$0xf]
      %v828 = vld [vmem:[%s5 + $0x88] sm:$0xf]
      %v829 = vld [vmem:[%s5 + $0x8c] sm:$0xf]
      %v830 = vld [vmem:[%s5 + $0x90] sm:$0xf]
      %v831 = vld [vmem:[%s5 + $0x94] sm:$0xf]
      %v832 = vld [vmem:[%s5 + $0x98] sm:$0xf]
      %v833 = vld [vmem:[%s5 + $0x9c] sm:$0xf]
      %v834 = vld [vmem:[%s5 + $0xa0] sm:$0xf]
      %v835 = vld [vmem:[%s5 + $0xa4] sm:$0xf]
      %v836 = vld [vmem:[%s5 + $0xa8] sm:$0xf]
      %v837 = vld [vmem:[%s5 + $0xac] sm:$0xf]
      %v838 = vld [vmem:[%s5 + $0xb0] sm:$0xf]
      %v839 = vld [vmem:[%s5 + $0xb4] sm:$0xf]
      %v840 = vld [vmem:[%s5 + $0xb8] sm:$0xf]
      %v841 = vld [vmem:[%s5 + $0xbc] sm:$0xf]
      %v890 = vunpack.c.l.b16 %v794
      %v891 = vunpack.c.l.b16 %v795
      %v892 = vunpack.c.l.b16 %v796
      %v893 = vunpack.c.l.b16 %v797
      %v894 = vunpack.c.l.b16 %v798
      %v895 = vunpack.c.l.b16 %v799
      %v896 = vunpack.c.l.b16 %v800
      %v897 = vunpack.c.l.b16 %v801
      %v898 = vunpack.c.l.b16 %v802
      %v899 = vunpack.c.l.b16 %v803
      %v900 = vunpack.c.l.b16 %v804
      %v901 = vunpack.c.l.b16 %v805
      %v902 = vunpack.c.l.b16 %v806
      %v903 = vunpack.c.l.b16 %v807
      %v904 = vunpack.c.l.b16 %v808
      %v905 = vunpack.c.l.b16 %v809
      %v906 = vunpack.c.l.b16 %v810
      %v907 = vunpack.c.l.b16 %v811
      %v908 = vunpack.c.l.b16 %v812
      %v909 = vunpack.c.l.b16 %v813
      %v910 = vunpack.c.l.b16 %v814
      %v911 = vunpack.c.l.b16 %v815
      %v912 = vunpack.c.l.b16 %v816
      %v913 = vunpack.c.l.b16 %v817
      %v914 = vunpack.c.l.b16 %v818
      %v915 = vunpack.c.l.b16 %v819
      %v916 = vunpack.c.l.b16 %v820
      %v917 = vunpack.c.l.b16 %v821
      %v918 = vunpack.c.l.b16 %v822
      %v919 = vunpack.c.l.b16 %v823
      %v920 = vunpack.c.l.b16 %v824
      %v921 = vunpack.c.l.b16 %v825
      %v922 = vunpack.c.l.b16 %v826
      %v923 = vunpack.c.l.b16 %v827
      %v924 = vunpack.c.l.b16 %v828
      %v925 = vunpack.c.l.b16 %v829
      %v926 = vunpack.c.l.b16 %v830
      %v927 = vunpack.c.l.b16 %v831
      %v928 = vunpack.c.l.b16 %v832
      %v929 = vunpack.c.l.b16 %v833
      %v930 = vunpack.c.l.b16 %v834
      %v931 = vunpack.c.l.b16 %v835
      %v932 = vunpack.c.l.b16 %v836
      %v933 = vunpack.c.l.b16 %v837
      %v934 = vunpack.c.l.b16 %v838
      %v935 = vunpack.c.l.b16 %v839
      %v936 = vunpack.c.l.b16 %v840
      %v937 = vunpack.c.l.b16 %v841
      %v938 = vpack.c.b16 %v891, %v890
      %v939 = vpack.c.b16 %v893, %v892
      %v940 = vpack.c.b16 %v895, %v894
      %v941 = vpack.c.b16 %v897, %v896
      %v942 = vpack.c.b16 %v899, %v898
      %v943 = vpack.c.b16 %v901, %v900
      %v944 = vpack.c.b16 %v903, %v902
      %v945 = vpack.c.b16 %v905, %v904
      %v946 = vpack.c.b16 %v907, %v906
      %v947 = vpack.c.b16 %v909, %v908
      %v948 = vpack.c.b16 %v911, %v910
      %v949 = vpack.c.b16 %v913, %v912
      %v950 = vpack.c.b16 %v915, %v914
      %v951 = vpack.c.b16 %v917, %v916
      %v952 = vpack.c.b16 %v919, %v918
      %v953 = vpack.c.b16 %v921, %v920
      %v954 = vpack.c.b16 %v923, %v922
      %v955 = vpack.c.b16 %v925, %v924
      %v956 = vpack.c.b16 %v927, %v926
      %v957 = vpack.c.b16 %v929, %v928
      %v958 = vpack.c.b16 %v931, %v930
      %v959 = vpack.c.b16 %v933, %v932
      %v960 = vpack.c.b16 %v935, %v934
      %v961 = vpack.c.b16 %v937, %v936
      %986 = vmatprep.subr.bf16.mxu0 0
      %987 = vmatpush1.bf16.msra.mxu0 %v938
      %988 = vmatprep.subr.bf16.mxu0 0
      %989 = vmatpush1.bf16.msra.mxu0 %v939
      %990 = vmatprep.subr.bf16.mxu0 0
      %991 = vmatpush1.bf16.msra.mxu0 %v940
      %992 = vmatprep.subr.bf16.mxu0 0
      %993 = vmatpush1.bf16.msra.mxu0 %v941
      %994 = vmatprep.subr.bf16.mxu0 0
      %995 = vmatpush1.bf16.msra.mxu0 %v942
      %996 = vmatprep.subr.bf16.mxu0 0
      %997 = vmatpush1.bf16.msra.mxu0 %v943
      %998 = vmatprep.subr.bf16.mxu0 0
      %999 = vmatpush1.bf16.msra.mxu0 %v944
      %1000 = vmatprep.subr.bf16.mxu0 0
      %1001 = vmatpush1.bf16.msra.mxu0 %v945
      %1002 = vmatprep.subr.bf16.mxu0 0
      %1003 = vmatpush1.bf16.msra.mxu0 %v946
      %1004 = vmatprep.subr.bf16.mxu0 0
      %1005 = vmatpush1.bf16.msra.mxu0 %v947
      %1006 = vmatprep.subr.bf16.mxu0 0
      %1007 = vmatpush1.bf16.msra.mxu0 %v948
      %1008 = vmatprep.subr.bf16.mxu0 0
      %1009 = vmatpush1.bf16.msra.mxu0 %v949
      %1010 = vmatprep.subr.bf16.mxu0 0
      %1011 = vmatpush1.bf16.msra.mxu0 %v950
      %1012 = vmatprep.subr.bf16.mxu0 0
      %1013 = vmatpush1.bf16.msra.mxu0 %v951
      %1014 = vmatprep.subr.bf16.mxu0 0
      %1015 = vmatpush1.bf16.msra.mxu0 %v952
      %1016 = vmatprep.subr.bf16.mxu0 0
      %1017 = vmatpush1.bf16.msra.mxu0 %v953
      %1018 = vmatprep.mubr.bf16.mxu0 %v786
      %1019 = vmatmul.mubr.bf16.gmra.mrb[0].mxu0 %v780
      %v1020 = vpop.f32.mrb[0].mxu0
      %v1021 = vadd.f32 0.0, %v1020
      %v1022 = vpop.f32.mrb[0].mxu0
      %v1023 = vpop.f32.mrb[0].mxu0
      %v1024 = vadd.f32 0.0, %v1023
      %v1025 = vpop.f32.mrb[0].mxu0
      %1026 = vmatprep.mubr.bf16.mxu0 %v787
      %1027 = vmatmul.mubr.bf16.gmra.mrb[0].mxu0 %v781
      %v1028 = vpop.f32.mrb[0].mxu0
      %v1029 = vadd.f32 0.0, %v1028
      %v1030 = vpop.f32.mrb[0].mxu0
      %v1031 = vpop.f32.mrb[0].mxu0
      %v1032 = vadd.f32 0.0, %v1031
      %v1033 = vpop.f32.mrb[0].mxu0
      %1034 = vdwg.mxu0
      %1035 = vmatprep.subr.bf16.mxu0 0
      %1036 = vmatpush1.bf16.msra.mxu0 %v954
      %1037 = vmatprep.subr.bf16.mxu0 0
      %1038 = vmatpush1.bf16.msra.mxu0 %v955
      %1039 = vmatprep.subr.bf16.mxu0 0
      %1040 = vmatpush1.bf16.msra.mxu0 %v956
      %1041 = vmatprep.subr.bf16.mxu0 0
      %1042 = vmatpush1.bf16.msra.mxu0 %v957
      %1043 = vmatprep.subr.bf16.mxu0 0
      %1044 = vmatpush1.bf16.msra.mxu0 %v958
      %1045 = vmatprep.subr.bf16.mxu0 0
      %1046 = vmatpush1.bf16.msra.mxu0 %v959
      %1047 = vmatprep.subr.bf16.mxu0 0
      %1048 = vmatpush1.bf16.msra.mxu0 %v960
      %1049 = vmatprep.subr.bf16.mxu0 0
      %1050 = vmatpush1.bf16.msra.mxu0 %v961
      %1051 = vmatprep.subr.bf16.mxu0 0
      %1052 = vmatpush1.bf16.msra.mxu0 0
      %1053 = vmatprep.subr.bf16.mxu0 0
      %1054 = vmatpush1.bf16.msra.mxu0 0
      %1055 = vmatprep.subr.bf16.mxu0 0
      %1056 = vmatpush1.bf16.msra.mxu0 0
      %1057 = vmatprep.subr.bf16.mxu0 0
      %1058 = vmatpush1.bf16.msra.mxu0 0
      %1059 = vmatprep.subr.bf16.mxu0 0
      %1060 = vmatpush1.bf16.msra.mxu0 0
      %1061 = vmatprep.subr.bf16.mxu0 0
      %1062 = vmatpush1.bf16.msra.mxu0 0
      %1063 = vmatprep.subr.bf16.mxu0 0
      %1064 = vmatpush1.bf16.msra.mxu0 0
      %1065 = vmatprep.subr.bf16.mxu0 0
      %1066 = vmatpush1.bf16.msra.mxu0 0
      %1067 = vmatprep.mubr.bf16.mxu0 0
      %1068 = vmatmul.mubr.bf16.gmra.mrb[0].mxu0 %v792
      %v1069 = vpop.f32.mrb[0].mxu0
      %v1070 = vadd.f32 %v1021, %v1069
      %v1071 = vpop.f32.mrb[0].mxu0
      %v1072 = vpop.f32.mrb[0].mxu0
      %v1073 = vadd.f32 %v1024, %v1072
      %v1074 = vpop.f32.mrb[0].mxu0
      %1075 = vmatprep.mubr.bf16.mxu0 0
      %1076 = vmatmul.mubr.bf16.gmra.mrb[0].mxu0 %v793
      %v1077 = vpop.f32.mrb[0].mxu0
      %v1078 = vadd.f32 %v1029, %v1077
      %v1079 = vpop.f32.mrb[0].mxu0
      %v1080 = vpop.f32.mrb[0].mxu0
      %v1081 = vadd.f32 %v1032, %v1080
      %v1082 = vpop.f32.mrb[0].mxu0
      %1083 = vdwg.mxu0
      %v1084 = vld [vmem:[%s6] sm:$0x1]
      %v1086 = vlaneseq
      %v1087 = vshrl.u32 %v1086, 7
      %v1088 = vsub.s32 0, %v1087
      %v1089 = vrot.slane %v1084, %v1088
      %v1091 = vadd.f32 %v1070, %v1089
      %v1092 = vadd.f32 %v1073, %v1089
      %v1093 = vadd.f32 %v1078, %v1089
      %v1094 = vadd.f32 %v1081, %v1089
      %v1095 = vld [vmem:[%s7] sm:$0x1]
      %v1097 = vlaneseq
      %v1098 = vshrl.u32 %v1097, 7
      %v1099 = vsub.s32 0, %v1098
      %v1100 = vrot.slane %v1095, %v1099
      %v1102 = vmul.f32 %v1091, %v1100
      %v1103 = vmul.f32 %v1092, %v1100
      %v1104 = vmul.f32 %v1093, %v1100
      %v1105 = vmul.f32 %v1094, %v1100
      %v1106 = vld [vmem:[%s8] sm:$0x1]
      %v1108 = vlaneseq
      %v1109 = vshrl.u32 %v1108, 7
      %v1110 = vsub.s32 0, %v1109
      %v1111 = vrot.slane %v1106, %v1110
      %v1113 = vadd.f32 %v1102, %v1111
      %v1114 = vadd.f32 %v1103, %v1111
      %v1115 = vadd.f32 %v1104, %v1111
      %v1116 = vadd.f32 %v1105, %v1111
      %v1117 = vld [vmem:[%s386] sm:$0xff]
      %v1118 = vld [vmem:[%s386 + $0x8] sm:$0xff]
      %v1119 = vld [vmem:[%s386 + $0x10] sm:$0xff]
      %v1120 = vld [vmem:[%s386 + $0x18] sm:$0xff]
      %v1121 = vpack.c.bf16 %v1118, %v1117
      %v1122 = vpack.c.bf16 %v1120, %v1119
      %v1123 = vld [vmem:[%s9] sm:$0xf]
      %v1124 = vld [vmem:[%s9 + $0x4] sm:$0xf]
      %v1125 = vld [vmem:[%s9 + $0x8] sm:$0xf]
      %v1126 = vld [vmem:[%s9 + $0xc] sm:$0xf]
      %v1127 = vld [vmem:[%s9 + $0x10] sm:$0xf]
      %v1128 = vld [vmem:[%s9 + $0x14] sm:$0xf]
      %v1129 = vld [vmem:[%s9 + $0x18] sm:$0xf]
      %v1130 = vld [vmem:[%s9 + $0x1c] sm:$0xf]
      %v1131 = vld [vmem:[%s9 + $0x20] sm:$0xf]
      %v1132 = vld [vmem:[%s9 + $0x24] sm:$0xf]
      %v1133 = vld [vmem:[%s9 + $0x28] sm:$0xf]
      %v1134 = vld [vmem:[%s9 + $0x2c] sm:$0xf]
      %v1135 = vld [vmem:[%s9 + $0x30] sm:$0xf]
      %v1136 = vld [vmem:[%s9 + $0x34] sm:$0xf]
      %v1137 = vld [vmem:[%s9 + $0x38] sm:$0xf]
      %v1138 = vld [vmem:[%s9 + $0x3c] sm:$0xf]
      %v1155 = vunpack.c.l.b16 %v1123
      %v1156 = vunpack.c.l.b16 %v1124
      %v1157 = vunpack.c.l.b16 %v1125
      %v1158 = vunpack.c.l.b16 %v1126
      %v1159 = vunpack.c.l.b16 %v1127
      %v1160 = vunpack.c.l.b16 %v1128
      %v1161 = vunpack.c.l.b16 %v1129
      %v1162 = vunpack.c.l.b16 %v1130
      %v1163 = vunpack.c.l.b16 %v1131
      %v1164 = vunpack.c.l.b16 %v1132
      %v1165 = vunpack.c.l.b16 %v1133
      %v1166 = vunpack.c.l.b16 %v1134
      %v1167 = vunpack.c.l.b16 %v1135
      %v1168 = vunpack.c.l.b16 %v1136
      %v1169 = vunpack.c.l.b16 %v1137
      %v1170 = vunpack.c.l.b16 %v1138
      %v1171 = vpack.c.b16 %v1156, %v1155
      %v1172 = vpack.c.b16 %v1158, %v1157
      %v1173 = vpack.c.b16 %v1160, %v1159
      %v1174 = vpack.c.b16 %v1162, %v1161
      %v1175 = vpack.c.b16 %v1164, %v1163
      %v1176 = vpack.c.b16 %v1166, %v1165
      %v1177 = vpack.c.b16 %v1168, %v1167
      %v1178 = vpack.c.b16 %v1170, %v1169
      %1187 = vmatprep.subr.bf16.mxu0 0
      %1188 = vmatpush1.bf16.msra.mxu0 %v1171
      %1189 = vmatprep.subr.bf16.mxu0 0
      %1190 = vmatpush1.bf16.msra.mxu0 %v1172
      %1191 = vmatprep.subr.bf16.mxu0 0
      %1192 = vmatpush1.bf16.msra.mxu0 %v1173
      %1193 = vmatprep.subr.bf16.mxu0 0
      %1194 = vmatpush1.bf16.msra.mxu0 %v1174
      %1195 = vmatprep.subr.bf16.mxu0 0
      %1196 = vmatpush1.bf16.msra.mxu0 %v1175
      %1197 = vmatprep.subr.bf16.mxu0 0
      %1198 = vmatpush1.bf16.msra.mxu0 %v1176
      %1199 = vmatprep.subr.bf16.mxu0 0
      %1200 = vmatpush1.bf16.msra.mxu0 %v1177
      %1201 = vmatprep.subr.bf16.mxu0 0
      %1202 = vmatpush1.bf16.msra.mxu0 %v1178
      %1203 = vmatprep.subr.bf16.mxu0 0
      %1204 = vmatpush1.bf16.msra.mxu0 0
      %1205 = vmatprep.subr.bf16.mxu0 0
      %1206 = vmatpush1.bf16.msra.mxu0 0
      %1207 = vmatprep.subr.bf16.mxu0 0
      %1208 = vmatpush1.bf16.msra.mxu0 0
      %1209 = vmatprep.subr.bf16.mxu0 0
      %1210 = vmatpush1.bf16.msra.mxu0 0
      %1211 = vmatprep.subr.bf16.mxu0 0
      %1212 = vmatpush1.bf16.msra.mxu0 0
      %1213 = vmatprep.subr.bf16.mxu0 0
      %1214 = vmatpush1.bf16.msra.mxu0 0
      %1215 = vmatprep.subr.bf16.mxu0 0
      %1216 = vmatpush1.bf16.msra.mxu0 0
      %1217 = vmatprep.subr.bf16.mxu0 0
      %1218 = vmatpush1.bf16.msra.mxu0 0
      %1219 = vmatprep.mubr.bf16.mxu0 0
      %1220 = vmatmul.mubr.bf16.gmra.mrb[0].mxu0 %v1121
      %v1221 = vpop.f32.mrb[0].mxu0
      %v1222 = vadd.f32 0.0, %v1221
      %v1223 = vpop.f32.mrb[0].mxu0
      %v1224 = vpop.f32.mrb[0].mxu0
      %v1225 = vadd.f32 0.0, %v1224
      %v1226 = vpop.f32.mrb[0].mxu0
      %1227 = vmatprep.mubr.bf16.mxu0 0
      %1228 = vmatmul.mubr.bf16.gmra.mrb[0].mxu0 %v1122
      %v1229 = vpop.f32.mrb[0].mxu0
      %v1230 = vadd.f32 0.0, %v1229
      %v1231 = vpop.f32.mrb[0].mxu0
      %v1232 = vpop.f32.mrb[0].mxu0
      %v1233 = vadd.f32 0.0, %v1232
      %v1234 = vpop.f32.mrb[0].mxu0
      %1235 = vdwg.mxu0
      %v1236 = vadd.f32 %v1113, %v1222
      %v1237 = vadd.f32 %v1114, %v1225
      %v1238 = vadd.f32 %v1115, %v1230
      %v1239 = vadd.f32 %v1116, %v1233
      %v1240 = vld [vmem:[%s10] sm:$0x1]
      %v1242 = vlaneseq
      %v1243 = vshrl.u32 %v1242, 7
      %v1244 = vsub.s32 0, %v1243
      %v1245 = vrot.slane %v1240, %v1244
      %v1247 = vadd.f32 %v1236, %v1245
      %v1248 = vadd.f32 %v1237, %v1245
      %v1249 = vadd.f32 %v1238, %v1245
      %v1250 = vadd.f32 %v1239, %v1245
      %vm1251 = vcmp.ge.f32.partialorder %v1247, 0.0
      %vm1252 = vcmp.ge.f32.partialorder %v1248, 0.0
      %vm1253 = vcmp.ge.f32.partialorder %v1249, 0.0
      %vm1254 = vcmp.ge.f32.partialorder %v1250, 0.0
      %v1255 = vmul.f32 %v1247, 0.2
      %v1256 = vmul.f32 %v1248, 0.2
      %v1257 = vmul.f32 %v1249, 0.2
      %v1258 = vmul.f32 %v1250, 0.2
      %v1259 = vsel %vm1251, %v1247, %v1255
      %v1260 = vsel %vm1252, %v1248, %v1256
      %v1261 = vsel %vm1253, %v1249, %v1257
      %v1262 = vsel %vm1254, %v1250, %v1258
      %1263 = vst [vmem:[%s393] sm:$0xff] %v1259
      %1264 = vst [vmem:[%s393 + $0x8] sm:$0xff] %v1260
      %1265 = vst [vmem:[%s393 + $0x10] sm:$0xff] %v1261
      %1266 = vst [vmem:[%s393 + $0x18] sm:$0xff] %v1262
      %s1267 = smul.u32 2, %s22
      %p1268 = scmp.lt.s32.totalorder %s1267, 3
      %s1269 = scalar_select %p1268, %s1267, 3
      %s1270 = smul.addr %s1269, 2
      %s1271 = smul.addr %s1270, 8
      %s1272 = scalar_lea.vmem %s11, %s1271
      // Predicated region
      $region73: #{residual_block_disc.5} parent=63 // pred_check
        %p1273 = pneg %p276
      $region74: #{residual_block_disc.5} parent=63 // pred_check_branch
        %1275 = sbr.rel (%p1273) target = $region76
      $region75: #{residual_block_disc.5} parent=63 // pred_region
        %s1276 = smul.u32 2, %s22
      $region76: #{residual_block_disc.5} parent=63 // pred_fallthru
        _
    $region64: #{residual_block_disc.5} parent=5 // pred_fallthru
      _
    %p1277 = scmp.le.s32.totalorder 2, %s17
    // Predicated region
    $region77: #{residual_block_disc.5} parent=5 // pred_check
      %p1278 = pneg %p1277
    $region78: #{residual_block_disc.5} parent=5 // pred_check_branch
      %1280 = sbr.rel (%p1278) target = $region80
    $region79: #{residual_block_disc.5} parent=5 // pred_region
      %s1281 = ssub.s32 %s17, 2
      // Predicated region
      $region81: #{residual_block_disc.5} parent=79 // pred_check
        %p1282 = pneg %p282
      $region82: #{residual_block_disc.5} parent=79 // pred_check_branch
        %1284 = sbr.rel (%p1282) target = $region84
      $region83: #{residual_block_disc.5} parent=79 // pred_region
        %s1285 = smul.u32 2, %s23
        %p1286 = scmp.lt.s32.totalorder %s1285, 3
        %s1287 = scalar_select %p1286, %s1285, 3
        %s1288 = smul.addr %s1287, 2
        %s1289 = smul.addr %s1288, 8
        %s1290 = scalar_lea.vmem %s11, %s1289
      $region84: #{residual_block_disc.5} parent=79 // pred_fallthru
        _
    $region80: #{residual_block_disc.5} parent=5 // pred_fallthru
      _
  $region6: #{residual_block_disc.5} parent=0 // loop_footer
    %s21 = sadd.s32 1, %s17
  $region7: #{residual_block_disc.5} parent=0 // loop_footer_branch
    %16 = sbr.rel target = $region3
  $region8: #{residual_block_disc.5} parent=0 // loop_exit
    _

</llo_original>
